<compile_context>
chip_gen: v6e
topology: v6e:2x2x1
jax: 0.10.0
libtpu: 0.0.40
codegen_flags: <defaults>
</compile_context>

<pallas_src>
import jax
import jax.numpy as jnp
from jax import lax
from jax.experimental import pallas as pl
from jax.experimental.pallas import tpu as pltpu


def _sigmoid(z):
    # shared by kernel and reference so both use the identical formula
    return 1.0 / (1.0 + jnp.exp(-z))


def graph_attn_forward(hid_sents, cur_sent, f_prev, graph_m, lmbd=0.9,
                       batch_block=128):
    """Pallas implementation of Graph_Attn.forward.

    Args:
      hid_sents: [B, n_sent, d_hid] f32
      cur_sent:  [B, 1, d_hid] f32
      f_prev:    [B, n_sent + 1] f32
      graph_m:   [d_hid, d_hid] f32 -- synthetic graph bilinear weight
    Returns:
      weighted_sents: [B, 1, d_hid] f32
      f_curr:         [B, n_sent + 1] f32
      idxes:          [B] int32
    """
    B, Ns, Dh = hid_sents.shape
    N = Ns + 1
    assert f_prev.shape == (B, N)
    lmbd = float(lmbd)

    # ---- lane-major layout plumbing (batch -> lane axis) -------------------
    topic = jnp.concatenate([cur_sent, hid_sents], axis=1).astype(jnp.float32)  # (B,N,Dh)
    topicT = jnp.transpose(topic, (1, 2, 0))                                    # (N,Dh,B)
    fprevT = jnp.transpose(f_prev.astype(jnp.float32), (1, 0))[:, None, :]      # (N,1,B)
    mT = graph_m.astype(jnp.float32).T                                          # (Dh,Dh) = M^T

    # ---- batch blocking -----------------------------------------------------
    # B <= batch_block: one exact block, no padded/garbage batches.
    # B  > batch_block: lane-dense 128-wide blocks (>=2 parallel grid steps, so
    #                   v7x megacore shards the batch axis).
    if B <= batch_block:
        Bblk, n_blocks, Bp = B, 1, B
    else:
        Bblk = int(batch_block)
        n_blocks = pl.cdiv(B, Bblk)
        Bp = n_blocks * Bblk
        pad = Bp - B
        if pad:   # TODO(synk): could clamp/overlap-read the last block instead of padding
            topicT = jnp.pad(topicT, ((0, 0), (0, 0), (0, pad)))
            fprevT = jnp.pad(fprevT, ((0, 0), (0, 0), (0, pad)))

    def kernel(topic_ref, fprev_ref, mT_ref, wout_ref, fcurr_ref):
        t = topic_ref[...]            # (N, Dh, Bblk)   [n, d, b]
        fp = fprev_ref[...]           # (N, 1, Bblk)
        mTv = mT_ref[...]             # (Dh, Dh)  = M^T

        # hoisted iotas
        ii = lax.broadcasted_iota(jnp.int32, (N, 1, 1), 0)      # sentence/row index i
        ii_sq = lax.broadcasted_iota(jnp.int32, (N, N, 1), 0)
        jj_sq = lax.broadcasted_iota(jnp.int32, (N, N, 1), 1)

        # ---- graph: W = sigmoid(T M T^T) -----------------------------------
        # (1) TM: N lane-dense (Dh,Dh)@(Dh,Bblk) MXU matmuls (no M replication,
        #     no per-batch tiny matmuls).
        # (2) S : 9x9 bilinear form on the VPU (multiply + sublane reduce over Dh).
        s_rows = []
        for n in range(N):
            tm_n = jnp.dot(mTv, t[n], preferred_element_type=jnp.float32)  # (Dh, Bblk) = (T M)[n]
            s_rows.append(jnp.sum(tm_n[None, :, :] * t, axis=1))           # (N, Bblk): s[n, m, b]
        s = jnp.stack(s_rows, axis=0)          # (N, N, Bblk)
        w = _sigmoid(s)                        # adjacency W[i, j, b]

        # degrees: true ROW sums (exactly the reference's D), P = W D^{-1}
        rs = jnp.sum(w, axis=1)                # (N, Bblk): rs[i, b] = sum_j W[i,j,b]
        p = w / rs[None, :, :]                 # P[i,j,b] = W[i,j,b] / rs[j,b]

        eye = jnp.where(ii_sq == jj_sq, 1.0, 0.0)                     # (N, N, 1)
        a = eye - lmbd * p                                            # (N, N, Bblk)
        x = jnp.broadcast_to(jnp.where(ii == 0, 1.0, 0.0), (N, 1, Bblk))   # e0

        # ---- Importance_Score: x = A^{-1} e0, unrolled Gauss-Jordan ---------
        # A = I - lmbd*P with P column-stochastic (symmetric synthetic graph),
        # so A is strictly column diagonally dominant -> no pivoting needed.
        # Exact reciprocals (error would compound over N steps).
        for k in range(N):
            row_k = a[k]                              # (N, Bblk)   A[k, :, :]
            inv_piv = 1.0 / row_k[k:k + 1, :]         # (1, Bblk)
            row_kn = row_k * inv_piv                  # normalized pivot row
            xk_n = x[k] * inv_piv                     # (1, Bblk)
            fac = jnp.where(ii == k, 0.0, a[:, k:k + 1, :])           # (N, 1, Bblk)
            a = jnp.where(ii == k, row_kn[None, :, :],
                          a - fac * row_kn[None, :, :])
            x = jnp.where(ii == k, xk_n[None, :, :],
                          x - fac * xk_n[None, :, :])

        f_col = (1.0 - lmbd) * x                      # (N, 1, Bblk)

        # ---- cal_attn --------------------------------------------------------
        scores = jnp.maximum(f_col - fp, 0.0)         # (N, 1, Bblk)
        ssum = jnp.sum(scores, axis=0, keepdims=True)  # (1, 1, Bblk)
        # NOTE: exact divide (the approximate EUP reciprocal broke tolerances);
        # if every f_curr <= f_prev, ssum == 0 and attn is NaN -- same as the
        # PyTorch reference.
        attn = scores / ssum                          # (N, 1, Bblk)

        # weighted sum over hid sentences (slot 0 = cur_sent gets weight 0)
        attn_hid = jnp.where(ii > 0, attn, 0.0)       # (N, 1, Bblk)
        wout_ref[...] = jnp.sum(attn_hid * t, axis=0)  # (Dh, Bblk) lane-dense
        fcurr_ref[...] = f_col                         # (N, 1, Bblk) lane-dense rows

    out_shapes = (
        jax.ShapeDtypeStruct((Dh, Bp), jnp.float32),
        jax.ShapeDtypeStruct((N, 1, Bp), jnp.float32),
    )
    grid_spec = pltpu.PrefetchScalarGridSpec(
        num_scalar_prefetch=0,
        grid=(n_blocks,),
        in_specs=[
            pl.BlockSpec((N, Dh, Bblk), lambda b: (0, 0, b)),
            pl.BlockSpec((N, 1, Bblk), lambda b: (0, 0, b)),
            # constant weight; at large Dh single-buffer it:
            #   pl.BlockSpec((Dh, Dh), lambda b: (0, 0), pipeline_mode=pl.Buffered(1))
            pl.BlockSpec((Dh, Dh), lambda b: (0, 0)),
        ],
        out_specs=[
            pl.BlockSpec((Dh, Bblk), lambda b: (0, b)),
            pl.BlockSpec((N, 1, Bblk), lambda b: (0, 0, b)),
        ],
    )
    weightedT, fcurrT = pl.pallas_call(
        kernel,
        out_shape=out_shapes,
        grid_spec=grid_spec,
        compiler_params=pltpu.CompilerParams(
            dimension_semantics=("parallel",),        # batch blocks independent (v7x megacore)
            vmem_limit_bytes=32 * 1024 * 1024),       # explicit budget (v5e default is 16 MiB)
    )(topicT, fprevT, mT)

    weighted = weightedT[:, :B].T[:, None, :]         # (B, 1, Dh)
    f_curr = fcurrT[:, 0, :B].T                        # (B, N)
    # argmax of attn == argmax of relu(f_curr - f_prev): normalisation is a
    # positive per-batch scalar (review: idx output dropped from the kernel).
    idxes = jnp.argmax(jnp.maximum(f_curr - f_prev, 0.0), axis=1).astype(jnp.int32)
    return weighted, f_curr, idxes


def reference(hid_sents, cur_sent, f_prev, graph_m, lmbd=0.9):
    """Pure-JAX reference matching the PyTorch semantics."""
    B, Ns, Dh = hid_sents.shape
    N = Ns + 1
    hp = jax.lax.Precision.HIGHEST
    topic = jnp.concatenate([cur_sent, hid_sents], axis=1)
    s = jnp.einsum('bnd,de,bme->bnm', topic, graph_m, topic, precision=hp)
    w_adj = _sigmoid(s)
    rowsum = w_adj.sum(-1)                                   # diag of D
    inv_d = jax.vmap(jnp.diag)(1.0 / rowsum)
    eye = jnp.eye(N, dtype=jnp.float32)[None]
    score = jnp.linalg.inv(
        eye - lmbd * jnp.einsum('bij,bjk->bik', w_adj, inv_d, precision=hp))
    f_curr = (1.0 - lmbd) * score[:, :, 0]
    attn_scores = jnp.maximum(f_curr - f_prev, 0.0)
    attn = attn_scores / attn_scores.sum(-1, keepdims=True)
    weighted = (hid_sents * attn[:, 1:, None]).sum(1, keepdims=True)
    idxes = jnp.argmax(attn, axis=1).astype(jnp.int32)
    return weighted, f_curr, idxes


if __name__ == "__main__":
    key = jax.random.PRNGKey(0)
    B, Ns, Dh = 2, 8, 32
    N = Ns + 1
    k1, k2, k3, k4 = jax.random.split(key, 4)

    hid_sents = jax.random.normal(k1, (B, Ns, Dh), jnp.float32)
    cur_sent = jax.random.normal(k2, (B, 1, Dh), jnp.float32)
    f_prev = 0.01 * jax.random.uniform(k3, (B, N), jnp.float32)

    g = jax.random.normal(k4, (Dh, Dh), jnp.float32)
    graph_m = 0.02 * (g + g.T)          # symmetric graph bilinear weight
    lmbd = 0.9

    w_out, f_curr, idxes = graph_attn_forward(hid_sents, cur_sent, f_prev,
                                              graph_m, lmbd)
    jax.block_until_ready((w_out, f_curr, idxes))

    w_ref, f_ref, idx_ref = reference(hid_sents, cur_sent, f_prev, graph_m, lmbd)
    assert w_out.shape == (B, 1, Dh) and f_curr.shape == (B, N) and idxes.shape == (B,)
    assert jnp.allclose(w_out, w_ref, atol=5e-4, rtol=2e-3), \
        float(jnp.max(jnp.abs(w_out - w_ref)))
    assert jnp.allclose(f_curr, f_ref, atol=5e-4, rtol=2e-3), \
        float(jnp.max(jnp.abs(f_curr - f_ref)))
    assert jnp.array_equal(idxes, idx_ref)

    print("KERNEL_OK")
</pallas_src>

<mosaic_0001>
module attributes {stable_mosaic.version = 11 : i64} {
  func.func @kernel(%arg0: i32, %arg1: memref<9x32x2xf32, #tpu.memory_space<vmem>>, %arg2: memref<9x1x2xf32, #tpu.memory_space<vmem>>, %arg3: memref<32x32xf32, #tpu.memory_space<vmem>>, %arg4: memref<32x2xf32, #tpu.memory_space<vmem>>, %arg5: memref<9x1x2xf32, #tpu.memory_space<vmem>>) attributes {dimension_semantics = [#tpu.dimension_semantics<parallel>], iteration_bounds = array<i64: 1>, scalar_prefetch = 0 : i64, scratch_operands = 0 : i64, tpu.core_type = #tpu.core_type<tc>, window_params = [{transform_indices = @transform_0, window_bounds = array<i64: 9, 32, 2>}, {transform_indices = @transform_1, window_bounds = array<i64: 9, 1, 2>}, {pipeline_mode = #tpu.pipeline_mode<synchronous>, transform_indices = @transform_2, window_bounds = array<i64: 32, 32>}, {transform_indices = @transform_3, window_bounds = array<i64: 32, 2>}, {transform_indices = @transform_4, window_bounds = array<i64: 9, 1, 2>}]} {
    %c0 = arith.constant 0 : index
    %c0_0 = arith.constant 0 : index
    %c0_1 = arith.constant 0 : index
    %0 = vector.load %arg1[%c0, %c0_0, %c0_1] : memref<9x32x2xf32, #tpu.memory_space<vmem>>, vector<9x32x2xf32>
    %c0_2 = arith.constant 0 : index
    %c0_3 = arith.constant 0 : index
    %c0_4 = arith.constant 0 : index
    %1 = vector.load %arg2[%c0_2, %c0_3, %c0_4] : memref<9x1x2xf32, #tpu.memory_space<vmem>>, vector<9x1x2xf32>
    %c0_5 = arith.constant 0 : index
    %c0_6 = arith.constant 0 : index
    %2 = vector.load %arg3[%c0_5, %c0_6] : memref<32x32xf32, #tpu.memory_space<vmem>>, vector<32x32xf32>
    %3 = tpu.iota {dimensions = array<i32: 0>} : vector<9x1x1xi32>
    %4 = tpu.iota {dimensions = array<i32: 0>} : vector<9x9x1xi32>
    %5 = tpu.iota {dimensions = array<i32: 1>} : vector<9x9x1xi32>
    %6 = vector.extract_strided_slice %0 {offsets = [0, 0, 0], sizes = [1, 32, 2], strides = [1, 1, 1]} : vector<9x32x2xf32> to vector<1x32x2xf32>
    %7 = vector.shape_cast %6 : vector<1x32x2xf32> to vector<32x2xf32>
    %cst = arith.constant dense<0.000000e+00> : vector<32x2xf32>
    %8 = tpu.matmul %2, %7, %cst {dimension_numbers = #tpu.dot_dimension_numbers<[1], [0], [0], [1], [0, 0, 1, 1], [], []>} : vector<32x32xf32>, vector<32x2xf32>, vector<32x2xf32> -> vector<32x2xf32>
    %9 = vector.shape_cast %8 : vector<32x2xf32> to vector<1x32x2xf32>
    %10 = vector.broadcast %9 : vector<1x32x2xf32> to vector<9x32x2xf32>
    %11 = arith.mulf %10, %0 : vector<9x32x2xf32>
    %cst_7 = arith.constant dense<0.000000e+00> : vector<9x2xf32>
    %12 = vector.multi_reduction <add>, %11, %cst_7 [1] : vector<9x32x2xf32> to vector<9x2xf32>
    %13 = vector.extract_strided_slice %0 {offsets = [1, 0, 0], sizes = [1, 32, 2], strides = [1, 1, 1]} : vector<9x32x2xf32> to vector<1x32x2xf32>
    %14 = vector.shape_cast %13 : vector<1x32x2xf32> to vector<32x2xf32>
    %cst_8 = arith.constant dense<0.000000e+00> : vector<32x2xf32>
    %15 = tpu.matmul %2, %14, %cst_8 {dimension_numbers = #tpu.dot_dimension_numbers<[1], [0], [0], [1], [0, 0, 1, 1], [], []>} : vector<32x32xf32>, vector<32x2xf32>, vector<32x2xf32> -> vector<32x2xf32>
    %16 = vector.shape_cast %15 : vector<32x2xf32> to vector<1x32x2xf32>
    %17 = vector.broadcast %16 : vector<1x32x2xf32> to vector<9x32x2xf32>
    %18 = arith.mulf %17, %0 : vector<9x32x2xf32>
    %cst_9 = arith.constant dense<0.000000e+00> : vector<9x2xf32>
    %19 = vector.multi_reduction <add>, %18, %cst_9 [1] : vector<9x32x2xf32> to vector<9x2xf32>
    %20 = vector.extract_strided_slice %0 {offsets = [2, 0, 0], sizes = [1, 32, 2], strides = [1, 1, 1]} : vector<9x32x2xf32> to vector<1x32x2xf32>
    %21 = vector.shape_cast %20 : vector<1x32x2xf32> to vector<32x2xf32>
    %cst_10 = arith.constant dense<0.000000e+00> : vector<32x2xf32>
    %22 = tpu.matmul %2, %21, %cst_10 {dimension_numbers = #tpu.dot_dimension_numbers<[1], [0], [0], [1], [0, 0, 1, 1], [], []>} : vector<32x32xf32>, vector<32x2xf32>, vector<32x2xf32> -> vector<32x2xf32>
    %23 = vector.shape_cast %22 : vector<32x2xf32> to vector<1x32x2xf32>
    %24 = vector.broadcast %23 : vector<1x32x2xf32> to vector<9x32x2xf32>
    %25 = arith.mulf %24, %0 : vector<9x32x2xf32>
    %cst_11 = arith.constant dense<0.000000e+00> : vector<9x2xf32>
    %26 = vector.multi_reduction <add>, %25, %cst_11 [1] : vector<9x32x2xf32> to vector<9x2xf32>
    %27 = vector.extract_strided_slice %0 {offsets = [3, 0, 0], sizes = [1, 32, 2], strides = [1, 1, 1]} : vector<9x32x2xf32> to vector<1x32x2xf32>
    %28 = vector.shape_cast %27 : vector<1x32x2xf32> to vector<32x2xf32>
    %cst_12 = arith.constant dense<0.000000e+00> : vector<32x2xf32>
    %29 = tpu.matmul %2, %28, %cst_12 {dimension_numbers = #tpu.dot_dimension_numbers<[1], [0], [0], [1], [0, 0, 1, 1], [], []>} : vector<32x32xf32>, vector<32x2xf32>, vector<32x2xf32> -> vector<32x2xf32>
    %30 = vector.shape_cast %29 : vector<32x2xf32> to vector<1x32x2xf32>
    %31 = vector.broadcast %30 : vector<1x32x2xf32> to vector<9x32x2xf32>
    %32 = arith.mulf %31, %0 : vector<9x32x2xf32>
    %cst_13 = arith.constant dense<0.000000e+00> : vector<9x2xf32>
    %33 = vector.multi_reduction <add>, %32, %cst_13 [1] : vector<9x32x2xf32> to vector<9x2xf32>
    %34 = vector.extract_strided_slice %0 {offsets = [4, 0, 0], sizes = [1, 32, 2], strides = [1, 1, 1]} : vector<9x32x2xf32> to vector<1x32x2xf32>
    %35 = vector.shape_cast %34 : vector<1x32x2xf32> to vector<32x2xf32>
    %cst_14 = arith.constant dense<0.000000e+00> : vector<32x2xf32>
    %36 = tpu.matmul %2, %35, %cst_14 {dimension_numbers = #tpu.dot_dimension_numbers<[1], [0], [0], [1], [0, 0, 1, 1], [], []>} : vector<32x32xf32>, vector<32x2xf32>, vector<32x2xf32> -> vector<32x2xf32>
    %37 = vector.shape_cast %36 : vector<32x2xf32> to vector<1x32x2xf32>
    %38 = vector.broadcast %37 : vector<1x32x2xf32> to vector<9x32x2xf32>
    %39 = arith.mulf %38, %0 : vector<9x32x2xf32>
    %cst_15 = arith.constant dense<0.000000e+00> : vector<9x2xf32>
    %40 = vector.multi_reduction <add>, %39, %cst_15 [1] : vector<9x32x2xf32> to vector<9x2xf32>
    %41 = vector.extract_strided_slice %0 {offsets = [5, 0, 0], sizes = [1, 32, 2], strides = [1, 1, 1]} : vector<9x32x2xf32> to vector<1x32x2xf32>
    %42 = vector.shape_cast %41 : vector<1x32x2xf32> to vector<32x2xf32>
    %cst_16 = arith.constant dense<0.000000e+00> : vector<32x2xf32>
    %43 = tpu.matmul %2, %42, %cst_16 {dimension_numbers = #tpu.dot_dimension_numbers<[1], [0], [0], [1], [0, 0, 1, 1], [], []>} : vector<32x32xf32>, vector<32x2xf32>, vector<32x2xf32> -> vector<32x2xf32>
    %44 = vector.shape_cast %43 : vector<32x2xf32> to vector<1x32x2xf32>
    %45 = vector.broadcast %44 : vector<1x32x2xf32> to vector<9x32x2xf32>
    %46 = arith.mulf %45, %0 : vector<9x32x2xf32>
    %cst_17 = arith.constant dense<0.000000e+00> : vector<9x2xf32>
    %47 = vector.multi_reduction <add>, %46, %cst_17 [1] : vector<9x32x2xf32> to vector<9x2xf32>
    %48 = vector.extract_strided_slice %0 {offsets = [6, 0, 0], sizes = [1, 32, 2], strides = [1, 1, 1]} : vector<9x32x2xf32> to vector<1x32x2xf32>
    %49 = vector.shape_cast %48 : vector<1x32x2xf32> to vector<32x2xf32>
    %cst_18 = arith.constant dense<0.000000e+00> : vector<32x2xf32>
    %50 = tpu.matmul %2, %49, %cst_18 {dimension_numbers = #tpu.dot_dimension_numbers<[1], [0], [0], [1], [0, 0, 1, 1], [], []>} : vector<32x32xf32>, vector<32x2xf32>, vector<32x2xf32> -> vector<32x2xf32>
    %51 = vector.shape_cast %50 : vector<32x2xf32> to vector<1x32x2xf32>
    %52 = vector.broadcast %51 : vector<1x32x2xf32> to vector<9x32x2xf32>
    %53 = arith.mulf %52, %0 : vector<9x32x2xf32>
    %cst_19 = arith.constant dense<0.000000e+00> : vector<9x2xf32>
    %54 = vector.multi_reduction <add>, %53, %cst_19 [1] : vector<9x32x2xf32> to vector<9x2xf32>
    %55 = vector.extract_strided_slice %0 {offsets = [7, 0, 0], sizes = [1, 32, 2], strides = [1, 1, 1]} : vector<9x32x2xf32> to vector<1x32x2xf32>
    %56 = vector.shape_cast %55 : vector<1x32x2xf32> to vector<32x2xf32>
    %cst_20 = arith.constant dense<0.000000e+00> : vector<32x2xf32>
    %57 = tpu.matmul %2, %56, %cst_20 {dimension_numbers = #tpu.dot_dimension_numbers<[1], [0], [0], [1], [0, 0, 1, 1], [], []>} : vector<32x32xf32>, vector<32x2xf32>, vector<32x2xf32> -> vector<32x2xf32>
    %58 = vector.shape_cast %57 : vector<32x2xf32> to vector<1x32x2xf32>
    %59 = vector.broadcast %58 : vector<1x32x2xf32> to vector<9x32x2xf32>
    %60 = arith.mulf %59, %0 : vector<9x32x2xf32>
    %cst_21 = arith.constant dense<0.000000e+00> : vector<9x2xf32>
    %61 = vector.multi_reduction <add>, %60, %cst_21 [1] : vector<9x32x2xf32> to vector<9x2xf32>
    %62 = vector.extract_strided_slice %0 {offsets = [8, 0, 0], sizes = [1, 32, 2], strides = [1, 1, 1]} : vector<9x32x2xf32> to vector<1x32x2xf32>
    %63 = vector.shape_cast %62 : vector<1x32x2xf32> to vector<32x2xf32>
    %cst_22 = arith.constant dense<0.000000e+00> : vector<32x2xf32>
    %64 = tpu.matmul %2, %63, %cst_22 {dimension_numbers = #tpu.dot_dimension_numbers<[1], [0], [0], [1], [0, 0, 1, 1], [], []>} : vector<32x32xf32>, vector<32x2xf32>, vector<32x2xf32> -> vector<32x2xf32>
    %65 = vector.shape_cast %64 : vector<32x2xf32> to vector<1x32x2xf32>
    %66 = vector.broadcast %65 : vector<1x32x2xf32> to vector<9x32x2xf32>
    %67 = arith.mulf %66, %0 : vector<9x32x2xf32>
    %cst_23 = arith.constant dense<0.000000e+00> : vector<9x2xf32>
    %68 = vector.multi_reduction <add>, %67, %cst_23 [1] : vector<9x32x2xf32> to vector<9x2xf32>
    %69 = vector.shape_cast %12 : vector<9x2xf32> to vector<1x9x2xf32>
    %70 = vector.shape_cast %19 : vector<9x2xf32> to vector<1x9x2xf32>
    %71 = vector.shape_cast %26 : vector<9x2xf32> to vector<1x9x2xf32>
    %72 = vector.shape_cast %33 : vector<9x2xf32> to vector<1x9x2xf32>
    %73 = vector.shape_cast %40 : vector<9x2xf32> to vector<1x9x2xf32>
    %74 = vector.shape_cast %47 : vector<9x2xf32> to vector<1x9x2xf32>
    %75 = vector.shape_cast %54 : vector<9x2xf32> to vector<1x9x2xf32>
    %76 = vector.shape_cast %61 : vector<9x2xf32> to vector<1x9x2xf32>
    %77 = vector.shape_cast %68 : vector<9x2xf32> to vector<1x9x2xf32>
    %78 = tpu.concatenate %69, %70, %71, %72, %73, %74, %75, %76, %77 in 0 : vector<1x9x2xf32>, vector<1x9x2xf32>, vector<1x9x2xf32>, vector<1x9x2xf32>, vector<1x9x2xf32>, vector<1x9x2xf32>, vector<1x9x2xf32>, vector<1x9x2xf32>, vector<1x9x2xf32> -> vector<9x9x2xf32>
    %cst_24 = arith.constant 0.000000e+00 : f32
    %79 = vector.broadcast %cst_24 : f32 to vector<9x9x2xf32>
    %80 = arith.subf %79, %78 : vector<9x9x2xf32>
    %81 = math.exp %80 : vector<9x9x2xf32>
    %cst_25 = arith.constant 1.000000e+00 : f32
    %82 = vector.broadcast %cst_25 : f32 to vector<9x9x2xf32>
    %83 = arith.addf %82, %81 : vector<9x9x2xf32>
    %cst_26 = arith.constant 1.000000e+00 : f32
    %84 = vector.broadcast %cst_26 : f32 to vector<9x9x2xf32>
    %85 = arith.divf %84, %83 : vector<9x9x2xf32>
    %cst_27 = arith.constant dense<0.000000e+00> : vector<9x2xf32>
    %86 = vector.multi_reduction <add>, %85, %cst_27 [1] : vector<9x9x2xf32> to vector<9x2xf32>
    %87 = vector.shape_cast %86 : vector<9x2xf32> to vector<1x9x2xf32>
    %88 = vector.broadcast %87 : vector<1x9x2xf32> to vector<9x9x2xf32>
    %89 = arith.divf %85, %88 : vector<9x9x2xf32>
    %90 = arith.cmpi eq, %4, %5 : vector<9x9x1xi32>
    %cst_28 = arith.constant 1.000000e+00 : f32
    %cst_29 = arith.constant 0.000000e+00 : f32
    %91 = vector.broadcast %cst_28 : f32 to vector<9x9x1xf32>
    %92 = vector.broadcast %cst_29 : f32 to vector<9x9x1xf32>
    %93 = arith.select %90, %91, %92 : vector<9x9x1xi1>, vector<9x9x1xf32>
    %cst_30 = arith.constant 0.899999976 : f32
    %94 = vector.broadcast %cst_30 : f32 to vector<9x9x2xf32>
    %95 = arith.mulf %94, %89 : vector<9x9x2xf32>
    %96 = vector.broadcast %93 : vector<9x9x1xf32> to vector<9x9x2xf32>
    %97 = arith.subf %96, %95 : vector<9x9x2xf32>
    %c0_i32 = arith.constant 0 : i32
    %98 = vector.broadcast %c0_i32 : i32 to vector<9x1x1xi32>
    %99 = arith.cmpi eq, %3, %98 : vector<9x1x1xi32>
    %cst_31 = arith.constant 1.000000e+00 : f32
    %cst_32 = arith.constant 0.000000e+00 : f32
    %100 = vector.broadcast %cst_31 : f32 to vector<9x1x1xf32>
    %101 = vector.broadcast %cst_32 : f32 to vector<9x1x1xf32>
    %102 = arith.select %99, %100, %101 : vector<9x1x1xi1>, vector<9x1x1xf32>
    %103 = vector.shape_cast %102 : vector<9x1x1xf32> to vector<9x1x1xf32>
    %104 = vector.broadcast %103 : vector<9x1x1xf32> to vector<9x1x2xf32>
    %105 = vector.extract_strided_slice %97 {offsets = [0, 0, 0], sizes = [1, 9, 2], strides = [1, 1, 1]} : vector<9x9x2xf32> to vector<1x9x2xf32>
    %106 = vector.shape_cast %105 : vector<1x9x2xf32> to vector<9x2xf32>
    %107 = vector.extract_strided_slice %106 {offsets = [0, 0], sizes = [1, 2], strides = [1, 1]} : vector<9x2xf32> to vector<1x2xf32>
    %cst_33 = arith.constant 1.000000e+00 : f32
    %108 = vector.broadcast %cst_33 : f32 to vector<1x2xf32>
    %109 = arith.divf %108, %107 : vector<1x2xf32>
    %110 = vector.broadcast %109 : vector<1x2xf32> to vector<9x2xf32>
    %111 = arith.mulf %106, %110 : vector<9x2xf32>
    %112 = vector.extract_strided_slice %104 {offsets = [0, 0, 0], sizes = [1, 1, 2], strides = [1, 1, 1]} : vector<9x1x2xf32> to vector<1x1x2xf32>
    %113 = vector.shape_cast %112 : vector<1x1x2xf32> to vector<1x2xf32>
    %114 = arith.mulf %113, %109 : vector<1x2xf32>
    %c0_i32_34 = arith.constant 0 : i32
    %115 = vector.broadcast %c0_i32_34 : i32 to vector<9x1x1xi32>
    %116 = arith.cmpi eq, %3, %115 : vector<9x1x1xi32>
    %117 = vector.extract_strided_slice %97 {offsets = [0, 0, 0], sizes = [9, 1, 2], strides = [1, 1, 1]} : vector<9x9x2xf32> to vector<9x1x2xf32>
    %cst_35 = arith.constant 0.000000e+00 : f32
    %118 = vector.shape_cast %116 : vector<9x1x1xi1> to vector<9x1x1xi1>
    %119 = vector.broadcast %118 : vector<9x1x1xi1> to vector<9x1x2xi1>
    %120 = vector.broadcast %cst_35 : f32 to vector<9x1x2xf32>
    %121 = arith.select %119, %120, %117 : vector<9x1x2xi1>, vector<9x1x2xf32>
    %c0_i32_36 = arith.constant 0 : i32
    %122 = vector.broadcast %c0_i32_36 : i32 to vector<9x1x1xi32>
    %123 = arith.cmpi eq, %3, %122 : vector<9x1x1xi32>
    %124 = vector.shape_cast %111 : vector<9x2xf32> to vector<1x9x2xf32>
    %125 = vector.shape_cast %111 : vector<9x2xf32> to vector<1x9x2xf32>
    %126 = vector.broadcast %121 : vector<9x1x2xf32> to vector<9x9x2xf32>
    %127 = vector.broadcast %125 : vector<1x9x2xf32> to vector<9x9x2xf32>
    %128 = arith.mulf %126, %127 : vector<9x9x2xf32>
    %129 = arith.subf %97, %128 : vector<9x9x2xf32>
    %130 = vector.shape_cast %123 : vector<9x1x1xi1> to vector<9x1x1xi1>
    %131 = vector.broadcast %130 : vector<9x1x1xi1> to vector<9x9x2xi1>
    %132 = vector.shape_cast %124 : vector<1x9x2xf32> to vector<1x9x2xf32>
    %133 = vector.broadcast %132 : vector<1x9x2xf32> to vector<9x9x2xf32>
    %134 = arith.select %131, %133, %129 : vector<9x9x2xi1>, vector<9x9x2xf32>
    %c0_i32_37 = arith.constant 0 : i32
    %135 = vector.broadcast %c0_i32_37 : i32 to vector<9x1x1xi32>
    %136 = arith.cmpi eq, %3, %135 : vector<9x1x1xi32>
    %137 = vector.shape_cast %114 : vector<1x2xf32> to vector<1x1x2xf32>
    %138 = vector.shape_cast %114 : vector<1x2xf32> to vector<1x1x2xf32>
    %139 = vector.broadcast %138 : vector<1x1x2xf32> to vector<9x1x2xf32>
    %140 = arith.mulf %121, %139 : vector<9x1x2xf32>
    %141 = arith.subf %104, %140 : vector<9x1x2xf32>
    %142 = vector.shape_cast %136 : vector<9x1x1xi1> to vector<9x1x1xi1>
    %143 = vector.broadcast %142 : vector<9x1x1xi1> to vector<9x1x2xi1>
    %144 = vector.shape_cast %137 : vector<1x1x2xf32> to vector<1x1x2xf32>
    %145 = vector.broadcast %144 : vector<1x1x2xf32> to vector<9x1x2xf32>
    %146 = arith.select %143, %145, %141 : vector<9x1x2xi1>, vector<9x1x2xf32>
    %147 = vector.extract_strided_slice %134 {offsets = [1, 0, 0], sizes = [1, 9, 2], strides = [1, 1, 1]} : vector<9x9x2xf32> to vector<1x9x2xf32>
    %148 = vector.shape_cast %147 : vector<1x9x2xf32> to vector<9x2xf32>
    %149 = vector.extract_strided_slice %148 {offsets = [1, 0], sizes = [1, 2], strides = [1, 1]} : vector<9x2xf32> to vector<1x2xf32>
    %cst_38 = arith.constant 1.000000e+00 : f32
    %150 = vector.broadcast %cst_38 : f32 to vector<1x2xf32>
    %151 = arith.divf %150, %149 : vector<1x2xf32>
    %152 = vector.broadcast %151 : vector<1x2xf32> to vector<9x2xf32>
    %153 = arith.mulf %148, %152 : vector<9x2xf32>
    %154 = vector.extract_strided_slice %146 {offsets = [1, 0, 0], sizes = [1, 1, 2], strides = [1, 1, 1]} : vector<9x1x2xf32> to vector<1x1x2xf32>
    %155 = vector.shape_cast %154 : vector<1x1x2xf32> to vector<1x2xf32>
    %156 = arith.mulf %155, %151 : vector<1x2xf32>
    %c1_i32 = arith.constant 1 : i32
    %157 = vector.broadcast %c1_i32 : i32 to vector<9x1x1xi32>
    %158 = arith.cmpi eq, %3, %157 : vector<9x1x1xi32>
    %159 = vector.extract_strided_slice %134 {offsets = [0, 1, 0], sizes = [9, 1, 2], strides = [1, 1, 1]} : vector<9x9x2xf32> to vector<9x1x2xf32>
    %cst_39 = arith.constant 0.000000e+00 : f32
    %160 = vector.shape_cast %158 : vector<9x1x1xi1> to vector<9x1x1xi1>
    %161 = vector.broadcast %160 : vector<9x1x1xi1> to vector<9x1x2xi1>
    %162 = vector.broadcast %cst_39 : f32 to vector<9x1x2xf32>
    %163 = arith.select %161, %162, %159 : vector<9x1x2xi1>, vector<9x1x2xf32>
    %c1_i32_40 = arith.constant 1 : i32
    %164 = vector.broadcast %c1_i32_40 : i32 to vector<9x1x1xi32>
    %165 = arith.cmpi eq, %3, %164 : vector<9x1x1xi32>
    %166 = vector.shape_cast %153 : vector<9x2xf32> to vector<1x9x2xf32>
    %167 = vector.shape_cast %153 : vector<9x2xf32> to vector<1x9x2xf32>
    %168 = vector.broadcast %163 : vector<9x1x2xf32> to vector<9x9x2xf32>
    %169 = vector.broadcast %167 : vector<1x9x2xf32> to vector<9x9x2xf32>
    %170 = arith.mulf %168, %169 : vector<9x9x2xf32>
    %171 = arith.subf %134, %170 : vector<9x9x2xf32>
    %172 = vector.shape_cast %165 : vector<9x1x1xi1> to vector<9x1x1xi1>
    %173 = vector.broadcast %172 : vector<9x1x1xi1> to vector<9x9x2xi1>
    %174 = vector.shape_cast %166 : vector<1x9x2xf32> to vector<1x9x2xf32>
    %175 = vector.broadcast %174 : vector<1x9x2xf32> to vector<9x9x2xf32>
    %176 = arith.select %173, %175, %171 : vector<9x9x2xi1>, vector<9x9x2xf32>
    %c1_i32_41 = arith.constant 1 : i32
    %177 = vector.broadcast %c1_i32_41 : i32 to vector<9x1x1xi32>
    %178 = arith.cmpi eq, %3, %177 : vector<9x1x1xi32>
    %179 = vector.shape_cast %156 : vector<1x2xf32> to vector<1x1x2xf32>
    %180 = vector.shape_cast %156 : vector<1x2xf32> to vector<1x1x2xf32>
    %181 = vector.broadcast %180 : vector<1x1x2xf32> to vector<9x1x2xf32>
    %182 = arith.mulf %163, %181 : vector<9x1x2xf32>
    %183 = arith.subf %146, %182 : vector<9x1x2xf32>
    %184 = vector.shape_cast %178 : vector<9x1x1xi1> to vector<9x1x1xi1>
    %185 = vector.broadcast %184 : vector<9x1x1xi1> to vector<9x1x2xi1>
    %186 = vector.shape_cast %179 : vector<1x1x2xf32> to vector<1x1x2xf32>
    %187 = vector.broadcast %186 : vector<1x1x2xf32> to vector<9x1x2xf32>
    %188 = arith.select %185, %187, %183 : vector<9x1x2xi1>, vector<9x1x2xf32>
    %189 = vector.extract_strided_slice %176 {offsets = [2, 0, 0], sizes = [1, 9, 2], strides = [1, 1, 1]} : vector<9x9x2xf32> to vector<1x9x2xf32>
    %190 = vector.shape_cast %189 : vector<1x9x2xf32> to vector<9x2xf32>
    %191 = vector.extract_strided_slice %190 {offsets = [2, 0], sizes = [1, 2], strides = [1, 1]} : vector<9x2xf32> to vector<1x2xf32>
    %cst_42 = arith.constant 1.000000e+00 : f32
    %192 = vector.broadcast %cst_42 : f32 to vector<1x2xf32>
    %193 = arith.divf %192, %191 : vector<1x2xf32>
    %194 = vector.broadcast %193 : vector<1x2xf32> to vector<9x2xf32>
    %195 = arith.mulf %190, %194 : vector<9x2xf32>
    %196 = vector.extract_strided_slice %188 {offsets = [2, 0, 0], sizes = [1, 1, 2], strides = [1, 1, 1]} : vector<9x1x2xf32> to vector<1x1x2xf32>
    %197 = vector.shape_cast %196 : vector<1x1x2xf32> to vector<1x2xf32>
    %198 = arith.mulf %197, %193 : vector<1x2xf32>
    %c2_i32 = arith.constant 2 : i32
    %199 = vector.broadcast %c2_i32 : i32 to vector<9x1x1xi32>
    %200 = arith.cmpi eq, %3, %199 : vector<9x1x1xi32>
    %201 = vector.extract_strided_slice %176 {offsets = [0, 2, 0], sizes = [9, 1, 2], strides = [1, 1, 1]} : vector<9x9x2xf32> to vector<9x1x2xf32>
    %cst_43 = arith.constant 0.000000e+00 : f32
    %202 = vector.shape_cast %200 : vector<9x1x1xi1> to vector<9x1x1xi1>
    %203 = vector.broadcast %202 : vector<9x1x1xi1> to vector<9x1x2xi1>
    %204 = vector.broadcast %cst_43 : f32 to vector<9x1x2xf32>
    %205 = arith.select %203, %204, %201 : vector<9x1x2xi1>, vector<9x1x2xf32>
    %c2_i32_44 = arith.constant 2 : i32
    %206 = vector.broadcast %c2_i32_44 : i32 to vector<9x1x1xi32>
    %207 = arith.cmpi eq, %3, %206 : vector<9x1x1xi32>
    %208 = vector.shape_cast %195 : vector<9x2xf32> to vector<1x9x2xf32>
    %209 = vector.shape_cast %195 : vector<9x2xf32> to vector<1x9x2xf32>
    %210 = vector.broadcast %205 : vector<9x1x2xf32> to vector<9x9x2xf32>
    %211 = vector.broadcast %209 : vector<1x9x2xf32> to vector<9x9x2xf32>
    %212 = arith.mulf %210, %211 : vector<9x9x2xf32>
    %213 = arith.subf %176, %212 : vector<9x9x2xf32>
    %214 = vector.shape_cast %207 : vector<9x1x1xi1> to vector<9x1x1xi1>
    %215 = vector.broadcast %214 : vector<9x1x1xi1> to vector<9x9x2xi1>
    %216 = vector.shape_cast %208 : vector<1x9x2xf32> to vector<1x9x2xf32>
    %217 = vector.broadcast %216 : vector<1x9x2xf32> to vector<9x9x2xf32>
    %218 = arith.select %215, %217, %213 : vector<9x9x2xi1>, vector<9x9x2xf32>
    %c2_i32_45 = arith.constant 2 : i32
    %219 = vector.broadcast %c2_i32_45 : i32 to vector<9x1x1xi32>
    %220 = arith.cmpi eq, %3, %219 : vector<9x1x1xi32>
    %221 = vector.shape_cast %198 : vector<1x2xf32> to vector<1x1x2xf32>
    %222 = vector.shape_cast %198 : vector<1x2xf32> to vector<1x1x2xf32>
    %223 = vector.broadcast %222 : vector<1x1x2xf32> to vector<9x1x2xf32>
    %224 = arith.mulf %205, %223 : vector<9x1x2xf32>
    %225 = arith.subf %188, %224 : vector<9x1x2xf32>
    %226 = vector.shape_cast %220 : vector<9x1x1xi1> to vector<9x1x1xi1>
    %227 = vector.broadcast %226 : vector<9x1x1xi1> to vector<9x1x2xi1>
    %228 = vector.shape_cast %221 : vector<1x1x2xf32> to vector<1x1x2xf32>
    %229 = vector.broadcast %228 : vector<1x1x2xf32> to vector<9x1x2xf32>
    %230 = arith.select %227, %229, %225 : vector<9x1x2xi1>, vector<9x1x2xf32>
    %231 = vector.extract_strided_slice %218 {offsets = [3, 0, 0], sizes = [1, 9, 2], strides = [1, 1, 1]} : vector<9x9x2xf32> to vector<1x9x2xf32>
    %232 = vector.shape_cast %231 : vector<1x9x2xf32> to vector<9x2xf32>
    %233 = vector.extract_strided_slice %232 {offsets = [3, 0], sizes = [1, 2], strides = [1, 1]} : vector<9x2xf32> to vector<1x2xf32>
    %cst_46 = arith.constant 1.000000e+00 : f32
    %234 = vector.broadcast %cst_46 : f32 to vector<1x2xf32>
    %235 = arith.divf %234, %233 : vector<1x2xf32>
    %236 = vector.broadcast %235 : vector<1x2xf32> to vector<9x2xf32>
    %237 = arith.mulf %232, %236 : vector<9x2xf32>
    %238 = vector.extract_strided_slice %230 {offsets = [3, 0, 0], sizes = [1, 1, 2], strides = [1, 1, 1]} : vector<9x1x2xf32> to vector<1x1x2xf32>
    %239 = vector.shape_cast %238 : vector<1x1x2xf32> to vector<1x2xf32>
    %240 = arith.mulf %239, %235 : vector<1x2xf32>
    %c3_i32 = arith.constant 3 : i32
    %241 = vector.broadcast %c3_i32 : i32 to vector<9x1x1xi32>
    %242 = arith.cmpi eq, %3, %241 : vector<9x1x1xi32>
    %243 = vector.extract_strided_slice %218 {offsets = [0, 3, 0], sizes = [9, 1, 2], strides = [1, 1, 1]} : vector<9x9x2xf32> to vector<9x1x2xf32>
    %cst_47 = arith.constant 0.000000e+00 : f32
    %244 = vector.shape_cast %242 : vector<9x1x1xi1> to vector<9x1x1xi1>
    %245 = vector.broadcast %244 : vector<9x1x1xi1> to vector<9x1x2xi1>
    %246 = vector.broadcast %cst_47 : f32 to vector<9x1x2xf32>
    %247 = arith.select %245, %246, %243 : vector<9x1x2xi1>, vector<9x1x2xf32>
    %c3_i32_48 = arith.constant 3 : i32
    %248 = vector.broadcast %c3_i32_48 : i32 to vector<9x1x1xi32>
    %249 = arith.cmpi eq, %3, %248 : vector<9x1x1xi32>
    %250 = vector.shape_cast %237 : vector<9x2xf32> to vector<1x9x2xf32>
    %251 = vector.shape_cast %237 : vector<9x2xf32> to vector<1x9x2xf32>
    %252 = vector.broadcast %247 : vector<9x1x2xf32> to vector<9x9x2xf32>
    %253 = vector.broadcast %251 : vector<1x9x2xf32> to vector<9x9x2xf32>
    %254 = arith.mulf %252, %253 : vector<9x9x2xf32>
    %255 = arith.subf %218, %254 : vector<9x9x2xf32>
    %256 = vector.shape_cast %249 : vector<9x1x1xi1> to vector<9x1x1xi1>
    %257 = vector.broadcast %256 : vector<9x1x1xi1> to vector<9x9x2xi1>
    %258 = vector.shape_cast %250 : vector<1x9x2xf32> to vector<1x9x2xf32>
    %259 = vector.broadcast %258 : vector<1x9x2xf32> to vector<9x9x2xf32>
    %260 = arith.select %257, %259, %255 : vector<9x9x2xi1>, vector<9x9x2xf32>
    %c3_i32_49 = arith.constant 3 : i32
    %261 = vector.broadcast %c3_i32_49 : i32 to vector<9x1x1xi32>
    %262 = arith.cmpi eq, %3, %261 : vector<9x1x1xi32>
    %263 = vector.shape_cast %240 : vector<1x2xf32> to vector<1x1x2xf32>
    %264 = vector.shape_cast %240 : vector<1x2xf32> to vector<1x1x2xf32>
    %265 = vector.broadcast %264 : vector<1x1x2xf32> to vector<9x1x2xf32>
    %266 = arith.mulf %247, %265 : vector<9x1x2xf32>
    %267 = arith.subf %230, %266 : vector<9x1x2xf32>
    %268 = vector.shape_cast %262 : vector<9x1x1xi1> to vector<9x1x1xi1>
    %269 = vector.broadcast %268 : vector<9x1x1xi1> to vector<9x1x2xi1>
    %270 = vector.shape_cast %263 : vector<1x1x2xf32> to vector<1x1x2xf32>
    %271 = vector.broadcast %270 : vector<1x1x2xf32> to vector<9x1x2xf32>
    %272 = arith.select %269, %271, %267 : vector<9x1x2xi1>, vector<9x1x2xf32>
    %273 = vector.extract_strided_slice %260 {offsets = [4, 0, 0], sizes = [1, 9, 2], strides = [1, 1, 1]} : vector<9x9x2xf32> to vector<1x9x2xf32>
    %274 = vector.shape_cast %273 : vector<1x9x2xf32> to vector<9x2xf32>
    %275 = vector.extract_strided_slice %274 {offsets = [4, 0], sizes = [1, 2], strides = [1, 1]} : vector<9x2xf32> to vector<1x2xf32>
    %cst_50 = arith.constant 1.000000e+00 : f32
    %276 = vector.broadcast %cst_50 : f32 to vector<1x2xf32>
    %277 = arith.divf %276, %275 : vector<1x2xf32>
    %278 = vector.broadcast %277 : vector<1x2xf32> to vector<9x2xf32>
    %279 = arith.mulf %274, %278 : vector<9x2xf32>
    %280 = vector.extract_strided_slice %272 {offsets = [4, 0, 0], sizes = [1, 1, 2], strides = [1, 1, 1]} : vector<9x1x2xf32> to vector<1x1x2xf32>
    %281 = vector.shape_cast %280 : vector<1x1x2xf32> to vector<1x2xf32>
    %282 = arith.mulf %281, %277 : vector<1x2xf32>
    %c4_i32 = arith.constant 4 : i32
    %283 = vector.broadcast %c4_i32 : i32 to vector<9x1x1xi32>
    %284 = arith.cmpi eq, %3, %283 : vector<9x1x1xi32>
    %285 = vector.extract_strided_slice %260 {offsets = [0, 4, 0], sizes = [9, 1, 2], strides = [1, 1, 1]} : vector<9x9x2xf32> to vector<9x1x2xf32>
    %cst_51 = arith.constant 0.000000e+00 : f32
    %286 = vector.shape_cast %284 : vector<9x1x1xi1> to vector<9x1x1xi1>
    %287 = vector.broadcast %286 : vector<9x1x1xi1> to vector<9x1x2xi1>
    %288 = vector.broadcast %cst_51 : f32 to vector<9x1x2xf32>
    %289 = arith.select %287, %288, %285 : vector<9x1x2xi1>, vector<9x1x2xf32>
    %c4_i32_52 = arith.constant 4 : i32
    %290 = vector.broadcast %c4_i32_52 : i32 to vector<9x1x1xi32>
    %291 = arith.cmpi eq, %3, %290 : vector<9x1x1xi32>
    %292 = vector.shape_cast %279 : vector<9x2xf32> to vector<1x9x2xf32>
    %293 = vector.shape_cast %279 : vector<9x2xf32> to vector<1x9x2xf32>
    %294 = vector.broadcast %289 : vector<9x1x2xf32> to vector<9x9x2xf32>
    %295 = vector.broadcast %293 : vector<1x9x2xf32> to vector<9x9x2xf32>
    %296 = arith.mulf %294, %295 : vector<9x9x2xf32>
    %297 = arith.subf %260, %296 : vector<9x9x2xf32>
    %298 = vector.shape_cast %291 : vector<9x1x1xi1> to vector<9x1x1xi1>
    %299 = vector.broadcast %298 : vector<9x1x1xi1> to vector<9x9x2xi1>
    %300 = vector.shape_cast %292 : vector<1x9x2xf32> to vector<1x9x2xf32>
    %301 = vector.broadcast %300 : vector<1x9x2xf32> to vector<9x9x2xf32>
    %302 = arith.select %299, %301, %297 : vector<9x9x2xi1>, vector<9x9x2xf32>
    %c4_i32_53 = arith.constant 4 : i32
    %303 = vector.broadcast %c4_i32_53 : i32 to vector<9x1x1xi32>
    %304 = arith.cmpi eq, %3, %303 : vector<9x1x1xi32>
    %305 = vector.shape_cast %282 : vector<1x2xf32> to vector<1x1x2xf32>
    %306 = vector.shape_cast %282 : vector<1x2xf32> to vector<1x1x2xf32>
    %307 = vector.broadcast %306 : vector<1x1x2xf32> to vector<9x1x2xf32>
    %308 = arith.mulf %289, %307 : vector<9x1x2xf32>
    %309 = arith.subf %272, %308 : vector<9x1x2xf32>
    %310 = vector.shape_cast %304 : vector<9x1x1xi1> to vector<9x1x1xi1>
    %311 = vector.broadcast %310 : vector<9x1x1xi1> to vector<9x1x2xi1>
    %312 = vector.shape_cast %305 : vector<1x1x2xf32> to vector<1x1x2xf32>
    %313 = vector.broadcast %312 : vector<1x1x2xf32> to vector<9x1x2xf32>
    %314 = arith.select %311, %313, %309 : vector<9x1x2xi1>, vector<9x1x2xf32>
    %315 = vector.extract_strided_slice %302 {offsets = [5, 0, 0], sizes = [1, 9, 2], strides = [1, 1, 1]} : vector<9x9x2xf32> to vector<1x9x2xf32>
    %316 = vector.shape_cast %315 : vector<1x9x2xf32> to vector<9x2xf32>
    %317 = vector.extract_strided_slice %316 {offsets = [5, 0], sizes = [1, 2], strides = [1, 1]} : vector<9x2xf32> to vector<1x2xf32>
    %cst_54 = arith.constant 1.000000e+00 : f32
    %318 = vector.broadcast %cst_54 : f32 to vector<1x2xf32>
    %319 = arith.divf %318, %317 : vector<1x2xf32>
    %320 = vector.broadcast %319 : vector<1x2xf32> to vector<9x2xf32>
    %321 = arith.mulf %316, %320 : vector<9x2xf32>
    %322 = vector.extract_strided_slice %314 {offsets = [5, 0, 0], sizes = [1, 1, 2], strides = [1, 1, 1]} : vector<9x1x2xf32> to vector<1x1x2xf32>
    %323 = vector.shape_cast %322 : vector<1x1x2xf32> to vector<1x2xf32>
    %324 = arith.mulf %323, %319 : vector<1x2xf32>
    %c5_i32 = arith.constant 5 : i32
    %325 = vector.broadcast %c5_i32 : i32 to vector<9x1x1xi32>
    %326 = arith.cmpi eq, %3, %325 : vector<9x1x1xi32>
    %327 = vector.extract_strided_slice %302 {offsets = [0, 5, 0], sizes = [9, 1, 2], strides = [1, 1, 1]} : vector<9x9x2xf32> to vector<9x1x2xf32>
    %cst_55 = arith.constant 0.000000e+00 : f32
    %328 = vector.shape_cast %326 : vector<9x1x1xi1> to vector<9x1x1xi1>
    %329 = vector.broadcast %328 : vector<9x1x1xi1> to vector<9x1x2xi1>
    %330 = vector.broadcast %cst_55 : f32 to vector<9x1x2xf32>
    %331 = arith.select %329, %330, %327 : vector<9x1x2xi1>, vector<9x1x2xf32>
    %c5_i32_56 = arith.constant 5 : i32
    %332 = vector.broadcast %c5_i32_56 : i32 to vector<9x1x1xi32>
    %333 = arith.cmpi eq, %3, %332 : vector<9x1x1xi32>
    %334 = vector.shape_cast %321 : vector<9x2xf32> to vector<1x9x2xf32>
    %335 = vector.shape_cast %321 : vector<9x2xf32> to vector<1x9x2xf32>
    %336 = vector.broadcast %331 : vector<9x1x2xf32> to vector<9x9x2xf32>
    %337 = vector.broadcast %335 : vector<1x9x2xf32> to vector<9x9x2xf32>
    %338 = arith.mulf %336, %337 : vector<9x9x2xf32>
    %339 = arith.subf %302, %338 : vector<9x9x2xf32>
    %340 = vector.shape_cast %333 : vector<9x1x1xi1> to vector<9x1x1xi1>
    %341 = vector.broadcast %340 : vector<9x1x1xi1> to vector<9x9x2xi1>
    %342 = vector.shape_cast %334 : vector<1x9x2xf32> to vector<1x9x2xf32>
    %343 = vector.broadcast %342 : vector<1x9x2xf32> to vector<9x9x2xf32>
    %344 = arith.select %341, %343, %339 : vector<9x9x2xi1>, vector<9x9x2xf32>
    %c5_i32_57 = arith.constant 5 : i32
    %345 = vector.broadcast %c5_i32_57 : i32 to vector<9x1x1xi32>
    %346 = arith.cmpi eq, %3, %345 : vector<9x1x1xi32>
    %347 = vector.shape_cast %324 : vector<1x2xf32> to vector<1x1x2xf32>
    %348 = vector.shape_cast %324 : vector<1x2xf32> to vector<1x1x2xf32>
    %349 = vector.broadcast %348 : vector<1x1x2xf32> to vector<9x1x2xf32>
    %350 = arith.mulf %331, %349 : vector<9x1x2xf32>
    %351 = arith.subf %314, %350 : vector<9x1x2xf32>
    %352 = vector.shape_cast %346 : vector<9x1x1xi1> to vector<9x1x1xi1>
    %353 = vector.broadcast %352 : vector<9x1x1xi1> to vector<9x1x2xi1>
    %354 = vector.shape_cast %347 : vector<1x1x2xf32> to vector<1x1x2xf32>
    %355 = vector.broadcast %354 : vector<1x1x2xf32> to vector<9x1x2xf32>
    %356 = arith.select %353, %355, %351 : vector<9x1x2xi1>, vector<9x1x2xf32>
    %357 = vector.extract_strided_slice %344 {offsets = [6, 0, 0], sizes = [1, 9, 2], strides = [1, 1, 1]} : vector<9x9x2xf32> to vector<1x9x2xf32>
    %358 = vector.shape_cast %357 : vector<1x9x2xf32> to vector<9x2xf32>
    %359 = vector.extract_strided_slice %358 {offsets = [6, 0], sizes = [1, 2], strides = [1, 1]} : vector<9x2xf32> to vector<1x2xf32>
    %cst_58 = arith.constant 1.000000e+00 : f32
    %360 = vector.broadcast %cst_58 : f32 to vector<1x2xf32>
    %361 = arith.divf %360, %359 : vector<1x2xf32>
    %362 = vector.broadcast %361 : vector<1x2xf32> to vector<9x2xf32>
    %363 = arith.mulf %358, %362 : vector<9x2xf32>
    %364 = vector.extract_strided_slice %356 {offsets = [6, 0, 0], sizes = [1, 1, 2], strides = [1, 1, 1]} : vector<9x1x2xf32> to vector<1x1x2xf32>
    %365 = vector.shape_cast %364 : vector<1x1x2xf32> to vector<1x2xf32>
    %366 = arith.mulf %365, %361 : vector<1x2xf32>
    %c6_i32 = arith.constant 6 : i32
    %367 = vector.broadcast %c6_i32 : i32 to vector<9x1x1xi32>
    %368 = arith.cmpi eq, %3, %367 : vector<9x1x1xi32>
    %369 = vector.extract_strided_slice %344 {offsets = [0, 6, 0], sizes = [9, 1, 2], strides = [1, 1, 1]} : vector<9x9x2xf32> to vector<9x1x2xf32>
    %cst_59 = arith.constant 0.000000e+00 : f32
    %370 = vector.shape_cast %368 : vector<9x1x1xi1> to vector<9x1x1xi1>
    %371 = vector.broadcast %370 : vector<9x1x1xi1> to vector<9x1x2xi1>
    %372 = vector.broadcast %cst_59 : f32 to vector<9x1x2xf32>
    %373 = arith.select %371, %372, %369 : vector<9x1x2xi1>, vector<9x1x2xf32>
    %c6_i32_60 = arith.constant 6 : i32
    %374 = vector.broadcast %c6_i32_60 : i32 to vector<9x1x1xi32>
    %375 = arith.cmpi eq, %3, %374 : vector<9x1x1xi32>
    %376 = vector.shape_cast %363 : vector<9x2xf32> to vector<1x9x2xf32>
    %377 = vector.shape_cast %363 : vector<9x2xf32> to vector<1x9x2xf32>
    %378 = vector.broadcast %373 : vector<9x1x2xf32> to vector<9x9x2xf32>
    %379 = vector.broadcast %377 : vector<1x9x2xf32> to vector<9x9x2xf32>
    %380 = arith.mulf %378, %379 : vector<9x9x2xf32>
    %381 = arith.subf %344, %380 : vector<9x9x2xf32>
    %382 = vector.shape_cast %375 : vector<9x1x1xi1> to vector<9x1x1xi1>
    %383 = vector.broadcast %382 : vector<9x1x1xi1> to vector<9x9x2xi1>
    %384 = vector.shape_cast %376 : vector<1x9x2xf32> to vector<1x9x2xf32>
    %385 = vector.broadcast %384 : vector<1x9x2xf32> to vector<9x9x2xf32>
    %386 = arith.select %383, %385, %381 : vector<9x9x2xi1>, vector<9x9x2xf32>
    %c6_i32_61 = arith.constant 6 : i32
    %387 = vector.broadcast %c6_i32_61 : i32 to vector<9x1x1xi32>
    %388 = arith.cmpi eq, %3, %387 : vector<9x1x1xi32>
    %389 = vector.shape_cast %366 : vector<1x2xf32> to vector<1x1x2xf32>
    %390 = vector.shape_cast %366 : vector<1x2xf32> to vector<1x1x2xf32>
    %391 = vector.broadcast %390 : vector<1x1x2xf32> to vector<9x1x2xf32>
    %392 = arith.mulf %373, %391 : vector<9x1x2xf32>
    %393 = arith.subf %356, %392 : vector<9x1x2xf32>
    %394 = vector.shape_cast %388 : vector<9x1x1xi1> to vector<9x1x1xi1>
    %395 = vector.broadcast %394 : vector<9x1x1xi1> to vector<9x1x2xi1>
    %396 = vector.shape_cast %389 : vector<1x1x2xf32> to vector<1x1x2xf32>
    %397 = vector.broadcast %396 : vector<1x1x2xf32> to vector<9x1x2xf32>
    %398 = arith.select %395, %397, %393 : vector<9x1x2xi1>, vector<9x1x2xf32>
    %399 = vector.extract_strided_slice %386 {offsets = [7, 0, 0], sizes = [1, 9, 2], strides = [1, 1, 1]} : vector<9x9x2xf32> to vector<1x9x2xf32>
    %400 = vector.shape_cast %399 : vector<1x9x2xf32> to vector<9x2xf32>
    %401 = vector.extract_strided_slice %400 {offsets = [7, 0], sizes = [1, 2], strides = [1, 1]} : vector<9x2xf32> to vector<1x2xf32>
    %cst_62 = arith.constant 1.000000e+00 : f32
    %402 = vector.broadcast %cst_62 : f32 to vector<1x2xf32>
    %403 = arith.divf %402, %401 : vector<1x2xf32>
    %404 = vector.broadcast %403 : vector<1x2xf32> to vector<9x2xf32>
    %405 = arith.mulf %400, %404 : vector<9x2xf32>
    %406 = vector.extract_strided_slice %398 {offsets = [7, 0, 0], sizes = [1, 1, 2], strides = [1, 1, 1]} : vector<9x1x2xf32> to vector<1x1x2xf32>
    %407 = vector.shape_cast %406 : vector<1x1x2xf32> to vector<1x2xf32>
    %408 = arith.mulf %407, %403 : vector<1x2xf32>
    %c7_i32 = arith.constant 7 : i32
    %409 = vector.broadcast %c7_i32 : i32 to vector<9x1x1xi32>
    %410 = arith.cmpi eq, %3, %409 : vector<9x1x1xi32>
    %411 = vector.extract_strided_slice %386 {offsets = [0, 7, 0], sizes = [9, 1, 2], strides = [1, 1, 1]} : vector<9x9x2xf32> to vector<9x1x2xf32>
    %cst_63 = arith.constant 0.000000e+00 : f32
    %412 = vector.shape_cast %410 : vector<9x1x1xi1> to vector<9x1x1xi1>
    %413 = vector.broadcast %412 : vector<9x1x1xi1> to vector<9x1x2xi1>
    %414 = vector.broadcast %cst_63 : f32 to vector<9x1x2xf32>
    %415 = arith.select %413, %414, %411 : vector<9x1x2xi1>, vector<9x1x2xf32>
    %c7_i32_64 = arith.constant 7 : i32
    %416 = vector.broadcast %c7_i32_64 : i32 to vector<9x1x1xi32>
    %417 = arith.cmpi eq, %3, %416 : vector<9x1x1xi32>
    %418 = vector.shape_cast %405 : vector<9x2xf32> to vector<1x9x2xf32>
    %419 = vector.shape_cast %405 : vector<9x2xf32> to vector<1x9x2xf32>
    %420 = vector.broadcast %415 : vector<9x1x2xf32> to vector<9x9x2xf32>
    %421 = vector.broadcast %419 : vector<1x9x2xf32> to vector<9x9x2xf32>
    %422 = arith.mulf %420, %421 : vector<9x9x2xf32>
    %423 = arith.subf %386, %422 : vector<9x9x2xf32>
    %424 = vector.shape_cast %417 : vector<9x1x1xi1> to vector<9x1x1xi1>
    %425 = vector.broadcast %424 : vector<9x1x1xi1> to vector<9x9x2xi1>
    %426 = vector.shape_cast %418 : vector<1x9x2xf32> to vector<1x9x2xf32>
    %427 = vector.broadcast %426 : vector<1x9x2xf32> to vector<9x9x2xf32>
    %428 = arith.select %425, %427, %423 : vector<9x9x2xi1>, vector<9x9x2xf32>
    %c7_i32_65 = arith.constant 7 : i32
    %429 = vector.broadcast %c7_i32_65 : i32 to vector<9x1x1xi32>
    %430 = arith.cmpi eq, %3, %429 : vector<9x1x1xi32>
    %431 = vector.shape_cast %408 : vector<1x2xf32> to vector<1x1x2xf32>
    %432 = vector.shape_cast %408 : vector<1x2xf32> to vector<1x1x2xf32>
    %433 = vector.broadcast %432 : vector<1x1x2xf32> to vector<9x1x2xf32>
    %434 = arith.mulf %415, %433 : vector<9x1x2xf32>
    %435 = arith.subf %398, %434 : vector<9x1x2xf32>
    %436 = vector.shape_cast %430 : vector<9x1x1xi1> to vector<9x1x1xi1>
    %437 = vector.broadcast %436 : vector<9x1x1xi1> to vector<9x1x2xi1>
    %438 = vector.shape_cast %431 : vector<1x1x2xf32> to vector<1x1x2xf32>
    %439 = vector.broadcast %438 : vector<1x1x2xf32> to vector<9x1x2xf32>
    %440 = arith.select %437, %439, %435 : vector<9x1x2xi1>, vector<9x1x2xf32>
    %441 = vector.extract_strided_slice %428 {offsets = [8, 0, 0], sizes = [1, 9, 2], strides = [1, 1, 1]} : vector<9x9x2xf32> to vector<1x9x2xf32>
    %442 = vector.shape_cast %441 : vector<1x9x2xf32> to vector<9x2xf32>
    %443 = vector.extract_strided_slice %442 {offsets = [8, 0], sizes = [1, 2], strides = [1, 1]} : vector<9x2xf32> to vector<1x2xf32>
    %cst_66 = arith.constant 1.000000e+00 : f32
    %444 = vector.broadcast %cst_66 : f32 to vector<1x2xf32>
    %445 = arith.divf %444, %443 : vector<1x2xf32>
    %446 = vector.extract_strided_slice %440 {offsets = [8, 0, 0], sizes = [1, 1, 2], strides = [1, 1, 1]} : vector<9x1x2xf32> to vector<1x1x2xf32>
    %447 = vector.shape_cast %446 : vector<1x1x2xf32> to vector<1x2xf32>
    %448 = arith.mulf %447, %445 : vector<1x2xf32>
    %c8_i32 = arith.constant 8 : i32
    %449 = vector.broadcast %c8_i32 : i32 to vector<9x1x1xi32>
    %450 = arith.cmpi eq, %3, %449 : vector<9x1x1xi32>
    %451 = vector.extract_strided_slice %428 {offsets = [0, 8, 0], sizes = [9, 1, 2], strides = [1, 1, 1]} : vector<9x9x2xf32> to vector<9x1x2xf32>
    %cst_67 = arith.constant 0.000000e+00 : f32
    %452 = vector.shape_cast %450 : vector<9x1x1xi1> to vector<9x1x1xi1>
    %453 = vector.broadcast %452 : vector<9x1x1xi1> to vector<9x1x2xi1>
    %454 = vector.broadcast %cst_67 : f32 to vector<9x1x2xf32>
    %455 = arith.select %453, %454, %451 : vector<9x1x2xi1>, vector<9x1x2xf32>
    %c8_i32_68 = arith.constant 8 : i32
    %456 = vector.broadcast %c8_i32_68 : i32 to vector<9x1x1xi32>
    %457 = arith.cmpi eq, %3, %456 : vector<9x1x1xi32>
    %458 = vector.shape_cast %448 : vector<1x2xf32> to vector<1x1x2xf32>
    %459 = vector.shape_cast %448 : vector<1x2xf32> to vector<1x1x2xf32>
    %460 = vector.broadcast %459 : vector<1x1x2xf32> to vector<9x1x2xf32>
    %461 = arith.mulf %455, %460 : vector<9x1x2xf32>
    %462 = arith.subf %440, %461 : vector<9x1x2xf32>
    %463 = vector.shape_cast %457 : vector<9x1x1xi1> to vector<9x1x1xi1>
    %464 = vector.broadcast %463 : vector<9x1x1xi1> to vector<9x1x2xi1>
    %465 = vector.shape_cast %458 : vector<1x1x2xf32> to vector<1x1x2xf32>
    %466 = vector.broadcast %465 : vector<1x1x2xf32> to vector<9x1x2xf32>
    %467 = arith.select %464, %466, %462 : vector<9x1x2xi1>, vector<9x1x2xf32>
    %cst_69 = arith.constant 1.000000e-01 : f32
    %468 = vector.broadcast %cst_69 : f32 to vector<9x1x2xf32>
    %469 = arith.mulf %468, %467 : vector<9x1x2xf32>
    %470 = arith.subf %469, %1 : vector<9x1x2xf32>
    %cst_70 = arith.constant 0.000000e+00 : f32
    %471 = vector.broadcast %cst_70 : f32 to vector<9x1x2xf32>
    %472 = arith.maximumf %470, %471 : vector<9x1x2xf32>
    %cst_71 = arith.constant dense<0.000000e+00> : vector<1x2xf32>
    %473 = vector.multi_reduction <add>, %472, %cst_71 [0] : vector<9x1x2xf32> to vector<1x2xf32>
    %474 = vector.shape_cast %473 : vector<1x2xf32> to vector<1x1x2xf32>
    %475 = vector.broadcast %474 : vector<1x1x2xf32> to vector<9x1x2xf32>
    %476 = arith.divf %472, %475 : vector<9x1x2xf32>
    %c0_i32_72 = arith.constant 0 : i32
    %477 = vector.broadcast %c0_i32_72 : i32 to vector<9x1x1xi32>
    %478 = arith.cmpi sgt, %3, %477 : vector<9x1x1xi32>
    %cst_73 = arith.constant 0.000000e+00 : f32
    %479 = vector.shape_cast %478 : vector<9x1x1xi1> to vector<9x1x1xi1>
    %480 = vector.broadcast %479 : vector<9x1x1xi1> to vector<9x1x2xi1>
    %481 = vector.broadcast %cst_73 : f32 to vector<9x1x2xf32>
    %482 = arith.select %480, %476, %481 : vector<9x1x2xi1>, vector<9x1x2xf32>
    %483 = vector.broadcast %482 : vector<9x1x2xf32> to vector<9x32x2xf32>
    %484 = arith.mulf %483, %0 : vector<9x32x2xf32>
    %cst_74 = arith.constant dense<0.000000e+00> : vector<32x2xf32>
    %485 = vector.multi_reduction <add>, %484, %cst_74 [0] : vector<9x32x2xf32> to vector<32x2xf32>
    %c0_75 = arith.constant 0 : index
    %c0_76 = arith.constant 0 : index
    %486 = vector.load %arg4[%c0_75, %c0_76] : memref<32x2xf32, #tpu.memory_space<vmem>>, vector<32x2xf32>
    tpu.vector_store %arg4[%c0_75, %c0_76], %485 {strides = array<i32>} : memref<32x2xf32, #tpu.memory_space<vmem>>, vector<32x2xf32>,
    %c0_77 = arith.constant 0 : index
    %c0_78 = arith.constant 0 : index
    %c0_79 = arith.constant 0 : index
    %487 = vector.load %arg5[%c0_77, %c0_78, %c0_79] : memref<9x1x2xf32, #tpu.memory_space<vmem>>, vector<9x1x2xf32>
    tpu.vector_store %arg5[%c0_77, %c0_78, %c0_79], %469 {strides = array<i32>} : memref<9x1x2xf32, #tpu.memory_space<vmem>>, vector<9x1x2xf32>,
    return
  }
  func.func @transform_0(%arg0: i32) -> (i32, i32, i32) {
    %c0_i32 = arith.constant 0 : i32
    %c0_i32_0 = arith.constant 0 : i32
    %c0_i32_1 = arith.constant 0 : i32
    return %c0_i32, %c0_i32_0, %arg0 : i32, i32, i32
  }
  func.func @transform_1(%arg0: i32) -> (i32, i32, i32) {
    %c0_i32 = arith.constant 0 : i32
    %c0_i32_0 = arith.constant 0 : i32
    %c0_i32_1 = arith.constant 0 : i32
    return %c0_i32, %c0_i32_0, %arg0 : i32, i32, i32
  }
  func.func @transform_2(%arg0: i32) -> (i32, i32) {
    %c0_i32 = arith.constant 0 : i32
    %c0_i32_0 = arith.constant 0 : i32
    %c0_i32_1 = arith.constant 0 : i32
    return %c0_i32, %c0_i32_0 : i32, i32
  }
  func.func @transform_3(%arg0: i32) -> (i32, i32) {
    %c0_i32 = arith.constant 0 : i32
    %c0_i32_0 = arith.constant 0 : i32
    return %c0_i32, %arg0 : i32, i32
  }
  func.func @transform_4(%arg0: i32) -> (i32, i32, i32) {
    %c0_i32 = arith.constant 0 : i32
    %c0_i32_0 = arith.constant 0 : i32
    %c0_i32_1 = arith.constant 0 : i32
    return %c0_i32, %c0_i32_0, %arg0 : i32, i32, i32
  }
}

</mosaic_0001>

<llo_original>
// kernel: tpu_custom_call.1
$region0: #{tpu_custom_call.1}
  #allocation0 [shape = 'u32[]', space=smem, size = 0x4, offset = 0x4, fixed_abs, tag = 'smem constant byte address 0x4 - core index']
  #allocation1 [shape = 'u32[144,128]{1,0:T(1,128)}', space=vmem, size = 0x12000, scoped, tag = 'internal scratch']
  %s0 = inlined_call_operand.vmem [shape: f32[9,32,2], index: 0, kind: input, shape index: {}]
  %s1 = inlined_call_operand.vmem [shape: f32[9,1,2], index: 1, kind: input, shape index: {}]
  %s2 = inlined_call_operand.vmem [shape: f32[32,32], index: 2, kind: input, shape index: {}]
  %s3 = inlined_call_operand.vmem [shape: f32[32,2], index: 3, kind: output, shape index: {0}]
  %s4 = inlined_call_operand.vmem [shape: f32[9,1,2], index: 4, kind: output, shape index: {1}]
  %5 = xla_tuple %s3, %s4
  %s6 = sld [smem:[#allocation0]]
  $region30: #{tpu_custom_call.1} parent=0
    _
  %s8 = ssub.s32 1, %s6
  %s9 = scalar_select 0, %s8, %s6
  // Predicated region
  $region2: #{tpu_custom_call.1} parent=0 // pred_check
    _
  $region3: #{tpu_custom_call.1} parent=0 // pred_check_branch
    %11 = sbr.rel (0) target = $region5
  $region4: #{tpu_custom_call.1} parent=0 // pred_region
    _
  $region5: #{tpu_custom_call.1} parent=0 // pred_fallthru
    _
  // Predicated region
  $region6: #{tpu_custom_call.1} parent=0 // pred_check
    _
  $region7: #{tpu_custom_call.1} parent=0 // pred_check_branch
    %13 = sbr.rel (0) target = $region9
  $region8: #{tpu_custom_call.1} parent=0 // pred_region
    _
  $region9: #{tpu_custom_call.1} parent=0 // pred_fallthru
    _
  // Predicated region
  $region10: #{tpu_custom_call.1} parent=0 // pred_check
    _
  $region11: #{tpu_custom_call.1} parent=0 // pred_check_branch
    %15 = sbr.rel (0) target = $region13
  $region12: #{tpu_custom_call.1} parent=0 // pred_region
    _
  $region13: #{tpu_custom_call.1} parent=0 // pred_fallthru
    _
  %v16 = vld [vmem:[%s0] sm:$0xff]
  %v17 = vld [vmem:[%s0 + $0x8] sm:$0xff]
  %v18 = vld [vmem:[%s0 + $0x10] sm:$0xff]
  %v19 = vld [vmem:[%s0 + $0x18] sm:$0xff]
  %v20 = vld [vmem:[%s0 + $0x20] sm:$0xff]
  %v21 = vld [vmem:[%s0 + $0x28] sm:$0xff]
  %v22 = vld [vmem:[%s0 + $0x30] sm:$0xff]
  %v23 = vld [vmem:[%s0 + $0x38] sm:$0xff]
  %v24 = vld [vmem:[%s0 + $0x40] sm:$0xff]
  %v25 = vld [vmem:[%s0 + $0x48] sm:$0xff]
  %v26 = vld [vmem:[%s0 + $0x50] sm:$0xff]
  %v27 = vld [vmem:[%s0 + $0x58] sm:$0xff]
  %v28 = vld [vmem:[%s0 + $0x60] sm:$0xff]
  %v29 = vld [vmem:[%s0 + $0x68] sm:$0xff]
  %v30 = vld [vmem:[%s0 + $0x70] sm:$0xff]
  %v31 = vld [vmem:[%s0 + $0x78] sm:$0xff]
  %v32 = vld [vmem:[%s0 + $0x80] sm:$0xff]
  %v33 = vld [vmem:[%s0 + $0x88] sm:$0xff]
  %v34 = vld [vmem:[%s0 + $0x90] sm:$0xff]
  %v35 = vld [vmem:[%s0 + $0x98] sm:$0xff]
  %v36 = vld [vmem:[%s0 + $0xa0] sm:$0xff]
  %v37 = vld [vmem:[%s0 + $0xa8] sm:$0xff]
  %v38 = vld [vmem:[%s0 + $0xb0] sm:$0xff]
  %v39 = vld [vmem:[%s0 + $0xb8] sm:$0xff]
  %v40 = vld [vmem:[%s0 + $0xc0] sm:$0xff]
  %v41 = vld [vmem:[%s0 + $0xc8] sm:$0xff]
  %v42 = vld [vmem:[%s0 + $0xd0] sm:$0xff]
  %v43 = vld [vmem:[%s0 + $0xd8] sm:$0xff]
  %v44 = vld [vmem:[%s0 + $0xe0] sm:$0xff]
  %v45 = vld [vmem:[%s0 + $0xe8] sm:$0xff]
  %v46 = vld [vmem:[%s0 + $0xf0] sm:$0xff]
  %v47 = vld [vmem:[%s0 + $0xf8] sm:$0xff]
  %v48 = vld [vmem:[%s0 + $0x100] sm:$0xff]
  %v49 = vld [vmem:[%s0 + $0x108] sm:$0xff]
  %v50 = vld [vmem:[%s0 + $0x110] sm:$0xff]
  %v51 = vld [vmem:[%s0 + $0x118] sm:$0xff]
  %v52 = vld [vmem:[%s1] sm:$0x1]
  %v53 = vld [vmem:[%s1 + $0x1] sm:$0x1]
  %v54 = vld [vmem:[%s1 + $0x2] sm:$0x1]
  %v55 = vld [vmem:[%s1 + $0x3] sm:$0x1]
  %v56 = vld [vmem:[%s1 + $0x4] sm:$0x1]
  %v57 = vld [vmem:[%s1 + $0x5] sm:$0x1]
  %v58 = vld [vmem:[%s1 + $0x6] sm:$0x1]
  %v59 = vld [vmem:[%s1 + $0x7] sm:$0x1]
  %v60 = vld [vmem:[%s1 + $0x8] sm:$0x1]
  %v61 = vld [vmem:[%s2] sm:$0xff]
  %v62 = vld [vmem:[%s2 + $0x8] sm:$0xff]
  %v63 = vld [vmem:[%s2 + $0x10] sm:$0xff]
  %v64 = vld [vmem:[%s2 + $0x18] sm:$0xff]
  %v65 = vlaneseq
  %v66 = vshrl.u32 %v65, 7
  %v67 = vadd.s32 %v66, 8
  %vm68 = vcmask 261120
  %v70 = vsel %vm68, %v61, 0
  %v73 = vsel %vm68, %v62, 0
  %v76 = vsel %vm68, %v63, 0
  %v79 = vsel %vm68, %v64, 0
  %81 = vmatprep.subr.mxu0 0.0
  %82 = vmatpush1.msra.mxu0 0.0
  %83 = vmatprep.subr.mxu0 0.0
  %84 = vmatpush1.msra.mxu0 0.0
  %85 = vmatprep.subr.mxu0 0.0
  %86 = vmatpush1.msra.mxu0 0.0
  %87 = vmatprep.subr.mxu0 0.0
  %88 = vmatpush1.msra.mxu0 0.0
  %89 = vmatprep.subr.mxu0 0.0
  %90 = vmatpush1.msra.mxu0 0.0
  %91 = vmatprep.subr.mxu0 0.0
  %92 = vmatpush1.msra.mxu0 0.0
  %93 = vmatprep.subr.mxu0 0.0
  %94 = vmatpush1.msra.mxu0 0.0
  %95 = vmatprep.subr.mxu0 0.0
  %96 = vmatpush1.msra.mxu0 0.0
  %97 = vmatprep.subr.mxu0 0.0
  %98 = vmatpush1.msra.mxu0 0.0
  %99 = vmatprep.subr.mxu0 0.0
  %100 = vmatpush1.msra.mxu0 0.0
  %101 = vmatprep.subr.mxu0 0.0
  %102 = vmatpush1.msra.mxu0 0.0
  %103 = vmatprep.subr.mxu0 0.0
  %104 = vmatpush1.msra.mxu0 0.0
  %105 = vmatprep.subr.mxu0 0.0
  %106 = vmatpush1.msra.mxu0 %v19
  %107 = vmatprep.subr.mxu0 0.0
  %108 = vmatpush1.msra.mxu0 %v18
  %109 = vmatprep.subr.mxu0 0.0
  %110 = vmatpush1.msra.mxu0 %v17
  %111 = vmatprep.subr.mxu0 0.0
  %112 = vmatpush1.msra.mxu0 %v16
  %113 = vmatprep.subr.mxu0 0.0
  %114 = vmatpush2.msra.mxu0 0.0
  %115 = vmatprep.subr.mxu0 0.0
  %116 = vmatpush2.msra.mxu0 0.0
  %117 = vmatprep.subr.mxu0 0.0
  %118 = vmatpush2.msra.mxu0 0.0
  %119 = vmatprep.subr.mxu0 0.0
  %120 = vmatpush2.msra.mxu0 0.0
  %121 = vmatprep.subr.mxu0 0.0
  %122 = vmatpush2.msra.mxu0 0.0
  %123 = vmatprep.subr.mxu0 0.0
  %124 = vmatpush2.msra.mxu0 0.0
  %125 = vmatprep.subr.mxu0 0.0
  %126 = vmatpush2.msra.mxu0 0.0
  %127 = vmatprep.subr.mxu0 0.0
  %128 = vmatpush2.msra.mxu0 0.0
  %129 = vmatprep.subr.mxu0 0.0
  %130 = vmatpush2.msra.mxu0 0.0
  %131 = vmatprep.subr.mxu0 0.0
  %132 = vmatpush2.msra.mxu0 0.0
  %133 = vmatprep.subr.mxu0 0.0
  %134 = vmatpush2.msra.mxu0 0.0
  %135 = vmatprep.subr.mxu0 0.0
  %136 = vmatpush2.msra.mxu0 0.0
  %137 = vmatprep.subr.mxu0 0.0
  %138 = vmatpush2.msra.mxu0 0.0
  %139 = vmatprep.subr.mxu0 0.0
  %140 = vmatpush2.msra.mxu0 0.0
  %141 = vmatprep.subr.mxu0 0.0
  %142 = vmatpush2.msra.mxu0 0.0
  %143 = vmatprep.subr.mxu0 0.0
  %144 = vmatpush2.msra.mxu0 0.0
  %145 = vmatprep.mubr.f32.mxu0 0.0
  %146 = vmatmul.mubr.f32.gmra.mxu0 %v70
  %v147 = vpop.f32.mrf.mxu0
  %v148 = vadd.f32 0.0, %v147
  %v149 = vpop.f32.mrf.mxu0
  %150 = vmatprep.mubr.f32.mxu0 0.0
  %151 = vmatmul.mubr.f32.gmra.mxu0 %v73
  %v152 = vpop.f32.mrf.mxu0
  %v153 = vadd.f32 0.0, %v152
  %v154 = vpop.f32.mrf.mxu0
  %155 = vmatprep.mubr.f32.mxu0 0.0
  %156 = vmatmul.mubr.f32.gmra.mxu0 %v76
  %v157 = vpop.f32.mrf.mxu0
  %v158 = vadd.f32 0.0, %v157
  %v159 = vpop.f32.mrf.mxu0
  %160 = vmatprep.mubr.f32.mxu0 0.0
  %161 = vmatmul.mubr.f32.gmra.mxu0 %v79
  %v162 = vpop.f32.mrf.mxu0
  %v163 = vadd.f32 0.0, %v162
  %v164 = vpop.f32.mrf.mxu0
  %165 = vdwg.mxu0
  %v166 = vmul.f32 %v148, %v16
  %v167 = vmul.f32 %v153, %v17
  %v168 = vmul.f32 %v158, %v18
  %v169 = vmul.f32 %v163, %v19
  %v170 = vmul.f32 %v148, %v20
  %v171 = vmul.f32 %v153, %v21
  %v172 = vmul.f32 %v158, %v22
  %v173 = vmul.f32 %v163, %v23
  %v174 = vmul.f32 %v148, %v24
  %v175 = vmul.f32 %v153, %v25
  %v176 = vmul.f32 %v158, %v26
  %v177 = vmul.f32 %v163, %v27
  %v178 = vmul.f32 %v148, %v28
  %v179 = vmul.f32 %v153, %v29
  %v180 = vmul.f32 %v158, %v30
  %v181 = vmul.f32 %v163, %v31
  %v182 = vmul.f32 %v148, %v32
  %v183 = vmul.f32 %v153, %v33
  %v184 = vmul.f32 %v158, %v34
  %v185 = vmul.f32 %v163, %v35
  %v186 = vmul.f32 %v148, %v36
  %v187 = vmul.f32 %v153, %v37
  %v188 = vmul.f32 %v158, %v38
  %v189 = vmul.f32 %v163, %v39
  %v190 = vmul.f32 %v148, %v40
  %v191 = vmul.f32 %v153, %v41
  %v192 = vmul.f32 %v158, %v42
  %v193 = vmul.f32 %v163, %v43
  %v194 = vmul.f32 %v148, %v44
  %v195 = vmul.f32 %v153, %v45
  %v196 = vmul.f32 %v158, %v46
  %v197 = vmul.f32 %v163, %v47
  %v198 = vmul.f32 %v148, %v48
  %v199 = vmul.f32 %v153, %v49
  %v200 = vmul.f32 %v158, %v50
  %v201 = vmul.f32 %v163, %v51
  %vm202 = vcmask 15360
  %v203 = vsel %vm202, %v166, 0.0
  %v204 = vsel %vm202, %v167, 0.0
  %v205 = vadd.f32 %v203, %v204
  %v206 = vsel %vm202, %v168, 0.0
  %v207 = vadd.f32 %v205, %v206
  %v208 = vsel %vm202, %v169, 0.0
  %v209 = vadd.f32 %v207, %v208
  %v210 = vrot.slane %v209, 4
  %v211 = vadd.f32 %v209, %v210
  %v212 = vrot.slane %v211, 2
  %v213 = vadd.f32 %v211, %v212
  %v214 = vrot.slane %v213, 1
  %v215 = vadd.f32 %v213, %v214
  %v216 = vsel %vm202, %v170, 0.0
  %v217 = vsel %vm202, %v171, 0.0
  %v218 = vadd.f32 %v216, %v217
  %v219 = vsel %vm202, %v172, 0.0
  %v220 = vadd.f32 %v218, %v219
  %v221 = vsel %vm202, %v173, 0.0
  %v222 = vadd.f32 %v220, %v221
  %v223 = vrot.slane %v222, 4
  %v224 = vadd.f32 %v222, %v223
  %v225 = vrot.slane %v224, 2
  %v226 = vadd.f32 %v224, %v225
  %v227 = vrot.slane %v226, 1
  %v228 = vadd.f32 %v226, %v227
  %v229 = vsel %vm202, %v174, 0.0
  %v230 = vsel %vm202, %v175, 0.0
  %v231 = vadd.f32 %v229, %v230
  %v232 = vsel %vm202, %v176, 0.0
  %v233 = vadd.f32 %v231, %v232
  %v234 = vsel %vm202, %v177, 0.0
  %v235 = vadd.f32 %v233, %v234
  %v236 = vrot.slane %v235, 4
  %v237 = vadd.f32 %v235, %v236
  %v238 = vrot.slane %v237, 2
  %v239 = vadd.f32 %v237, %v238
  %v240 = vrot.slane %v239, 1
  %v241 = vadd.f32 %v239, %v240
  %v242 = vsel %vm202, %v178, 0.0
  %v243 = vsel %vm202, %v179, 0.0
  %v244 = vadd.f32 %v242, %v243
  %v245 = vsel %vm202, %v180, 0.0
  %v246 = vadd.f32 %v244, %v245
  %v247 = vsel %vm202, %v181, 0.0
  %v248 = vadd.f32 %v246, %v247
  %v249 = vrot.slane %v248, 4
  %v250 = vadd.f32 %v248, %v249
  %v251 = vrot.slane %v250, 2
  %v252 = vadd.f32 %v250, %v251
  %v253 = vrot.slane %v252, 1
  %v254 = vadd.f32 %v252, %v253
  %v255 = vsel %vm202, %v182, 0.0
  %v256 = vsel %vm202, %v183, 0.0
  %v257 = vadd.f32 %v255, %v256
  %v258 = vsel %vm202, %v184, 0.0
  %v259 = vadd.f32 %v257, %v258
  %v260 = vsel %vm202, %v185, 0.0
  %v261 = vadd.f32 %v259, %v260
  %v262 = vrot.slane %v261, 4
  %v263 = vadd.f32 %v261, %v262
  %v264 = vrot.slane %v263, 2
  %v265 = vadd.f32 %v263, %v264
  %v266 = vrot.slane %v265, 1
  %v267 = vadd.f32 %v265, %v266
  %v268 = vsel %vm202, %v186, 0.0
  %v269 = vsel %vm202, %v187, 0.0
  %v270 = vadd.f32 %v268, %v269
  %v271 = vsel %vm202, %v188, 0.0
  %v272 = vadd.f32 %v270, %v271
  %v273 = vsel %vm202, %v189, 0.0
  %v274 = vadd.f32 %v272, %v273
  %v275 = vrot.slane %v274, 4
  %v276 = vadd.f32 %v274, %v275
  %v277 = vrot.slane %v276, 2
  %v278 = vadd.f32 %v276, %v277
  %v279 = vrot.slane %v278, 1
  %v280 = vadd.f32 %v278, %v279
  %v281 = vsel %vm202, %v190, 0.0
  %v282 = vsel %vm202, %v191, 0.0
  %v283 = vadd.f32 %v281, %v282
  %v284 = vsel %vm202, %v192, 0.0
  %v285 = vadd.f32 %v283, %v284
  %v286 = vsel %vm202, %v193, 0.0
  %v287 = vadd.f32 %v285, %v286
  %v288 = vrot.slane %v287, 4
  %v289 = vadd.f32 %v287, %v288
  %v290 = vrot.slane %v289, 2
  %v291 = vadd.f32 %v289, %v290
  %v292 = vrot.slane %v291, 1
  %v293 = vadd.f32 %v291, %v292
  %v294 = vsel %vm202, %v194, 0.0
  %v295 = vsel %vm202, %v195, 0.0
  %v296 = vadd.f32 %v294, %v295
  %v297 = vsel %vm202, %v196, 0.0
  %v298 = vadd.f32 %v296, %v297
  %v299 = vsel %vm202, %v197, 0.0
  %v300 = vadd.f32 %v298, %v299
  %v301 = vrot.slane %v300, 4
  %v302 = vadd.f32 %v300, %v301
  %v303 = vrot.slane %v302, 2
  %v304 = vadd.f32 %v302, %v303
  %v305 = vrot.slane %v304, 1
  %v306 = vadd.f32 %v304, %v305
  %v307 = vsel %vm202, %v198, 0.0
  %v308 = vsel %vm202, %v199, 0.0
  %v309 = vadd.f32 %v307, %v308
  %v310 = vsel %vm202, %v200, 0.0
  %v311 = vadd.f32 %v309, %v310
  %v312 = vsel %vm202, %v201, 0.0
  %v313 = vadd.f32 %v311, %v312
  %v314 = vrot.slane %v313, 4
  %v315 = vadd.f32 %v313, %v314
  %v316 = vrot.slane %v315, 2
  %v317 = vadd.f32 %v315, %v316
  %v318 = vrot.slane %v317, 1
  %v319 = vadd.f32 %v317, %v318
  %320 = vmatprep.subr.mxu0 0.0
  %321 = vmatpush1.msra.mxu0 0.0
  %322 = vmatprep.subr.mxu0 0.0
  %323 = vmatpush1.msra.mxu0 0.0
  %324 = vmatprep.subr.mxu0 0.0
  %325 = vmatpush1.msra.mxu0 0.0
  %326 = vmatprep.subr.mxu0 0.0
  %327 = vmatpush1.msra.mxu0 0.0
  %328 = vmatprep.subr.mxu0 0.0
  %329 = vmatpush1.msra.mxu0 0.0
  %330 = vmatprep.subr.mxu0 0.0
  %331 = vmatpush1.msra.mxu0 0.0
  %332 = vmatprep.subr.mxu0 0.0
  %333 = vmatpush1.msra.mxu0 0.0
  %334 = vmatprep.subr.mxu0 0.0
  %335 = vmatpush1.msra.mxu0 0.0
  %336 = vmatprep.subr.mxu0 0.0
  %337 = vmatpush1.msra.mxu0 0.0
  %338 = vmatprep.subr.mxu0 0.0
  %339 = vmatpush1.msra.mxu0 0.0
  %340 = vmatprep.subr.mxu0 0.0
  %341 = vmatpush1.msra.mxu0 0.0
  %342 = vmatprep.subr.mxu0 0.0
  %343 = vmatpush1.msra.mxu0 0.0
  %344 = vmatprep.subr.mxu0 0.0
  %345 = vmatpush1.msra.mxu0 %v23
  %346 = vmatprep.subr.mxu0 0.0
  %347 = vmatpush1.msra.mxu0 %v22
  %348 = vmatprep.subr.mxu0 0.0
  %349 = vmatpush1.msra.mxu0 %v21
  %350 = vmatprep.subr.mxu0 0.0
  %351 = vmatpush1.msra.mxu0 %v20
  %352 = vmatprep.subr.mxu0 0.0
  %353 = vmatpush2.msra.mxu0 0.0
  %354 = vmatprep.subr.mxu0 0.0
  %355 = vmatpush2.msra.mxu0 0.0
  %356 = vmatprep.subr.mxu0 0.0
  %357 = vmatpush2.msra.mxu0 0.0
  %358 = vmatprep.subr.mxu0 0.0
  %359 = vmatpush2.msra.mxu0 0.0
  %360 = vmatprep.subr.mxu0 0.0
  %361 = vmatpush2.msra.mxu0 0.0
  %362 = vmatprep.subr.mxu0 0.0
  %363 = vmatpush2.msra.mxu0 0.0
  %364 = vmatprep.subr.mxu0 0.0
  %365 = vmatpush2.msra.mxu0 0.0
  %366 = vmatprep.subr.mxu0 0.0
  %367 = vmatpush2.msra.mxu0 0.0
  %368 = vmatprep.subr.mxu0 0.0
  %369 = vmatpush2.msra.mxu0 0.0
  %370 = vmatprep.subr.mxu0 0.0
  %371 = vmatpush2.msra.mxu0 0.0
  %372 = vmatprep.subr.mxu0 0.0
  %373 = vmatpush2.msra.mxu0 0.0
  %374 = vmatprep.subr.mxu0 0.0
  %375 = vmatpush2.msra.mxu0 0.0
  %376 = vmatprep.subr.mxu0 0.0
  %377 = vmatpush2.msra.mxu0 0.0
  %378 = vmatprep.subr.mxu0 0.0
  %379 = vmatpush2.msra.mxu0 0.0
  %380 = vmatprep.subr.mxu0 0.0
  %381 = vmatpush2.msra.mxu0 0.0
  %382 = vmatprep.subr.mxu0 0.0
  %383 = vmatpush2.msra.mxu0 0.0
  %384 = vmatprep.mubr.f32.mxu0 0.0
  %385 = vmatmul.mubr.f32.gmra.mxu0 %v70
  %v386 = vpop.f32.mrf.mxu0
  %v387 = vadd.f32 0.0, %v386
  %v388 = vpop.f32.mrf.mxu0
  %389 = vmatprep.mubr.f32.mxu0 0.0
  %390 = vmatmul.mubr.f32.gmra.mxu0 %v73
  %v391 = vpop.f32.mrf.mxu0
  %v392 = vadd.f32 0.0, %v391
  %v393 = vpop.f32.mrf.mxu0
  %394 = vmatprep.mubr.f32.mxu0 0.0
  %395 = vmatmul.mubr.f32.gmra.mxu0 %v76
  %v396 = vpop.f32.mrf.mxu0
  %v397 = vadd.f32 0.0, %v396
  %v398 = vpop.f32.mrf.mxu0
  %399 = vmatprep.mubr.f32.mxu0 0.0
  %400 = vmatmul.mubr.f32.gmra.mxu0 %v79
  %v401 = vpop.f32.mrf.mxu0
  %v402 = vadd.f32 0.0, %v401
  %v403 = vpop.f32.mrf.mxu0
  %404 = vdwg.mxu0
  %v405 = vmul.f32 %v387, %v16
  %v406 = vmul.f32 %v392, %v17
  %v407 = vmul.f32 %v397, %v18
  %v408 = vmul.f32 %v402, %v19
  %v409 = vmul.f32 %v387, %v20
  %v410 = vmul.f32 %v392, %v21
  %v411 = vmul.f32 %v397, %v22
  %v412 = vmul.f32 %v402, %v23
  %v413 = vmul.f32 %v387, %v24
  %v414 = vmul.f32 %v392, %v25
  %v415 = vmul.f32 %v397, %v26
  %v416 = vmul.f32 %v402, %v27
  %v417 = vmul.f32 %v387, %v28
  %v418 = vmul.f32 %v392, %v29
  %v419 = vmul.f32 %v397, %v30
  %v420 = vmul.f32 %v402, %v31
  %v421 = vmul.f32 %v387, %v32
  %v422 = vmul.f32 %v392, %v33
  %v423 = vmul.f32 %v397, %v34
  %v424 = vmul.f32 %v402, %v35
  %v425 = vmul.f32 %v387, %v36
  %v426 = vmul.f32 %v392, %v37
  %v427 = vmul.f32 %v397, %v38
  %v428 = vmul.f32 %v402, %v39
  %v429 = vmul.f32 %v387, %v40
  %v430 = vmul.f32 %v392, %v41
  %v431 = vmul.f32 %v397, %v42
  %v432 = vmul.f32 %v402, %v43
  %v433 = vmul.f32 %v387, %v44
  %v434 = vmul.f32 %v392, %v45
  %v435 = vmul.f32 %v397, %v46
  %v436 = vmul.f32 %v402, %v47
  %v437 = vmul.f32 %v387, %v48
  %v438 = vmul.f32 %v392, %v49
  %v439 = vmul.f32 %v397, %v50
  %v440 = vmul.f32 %v402, %v51
  %v441 = vsel %vm202, %v405, 0.0
  %v442 = vsel %vm202, %v406, 0.0
  %v443 = vadd.f32 %v441, %v442
  %v444 = vsel %vm202, %v407, 0.0
  %v445 = vadd.f32 %v443, %v444
  %v446 = vsel %vm202, %v408, 0.0
  %v447 = vadd.f32 %v445, %v446
  %v448 = vrot.slane %v447, 4
  %v449 = vadd.f32 %v447, %v448
  %v450 = vrot.slane %v449, 2
  %v451 = vadd.f32 %v449, %v450
  %v452 = vrot.slane %v451, 1
  %v453 = vadd.f32 %v451, %v452
  %v454 = vsel %vm202, %v409, 0.0
  %v455 = vsel %vm202, %v410, 0.0
  %v456 = vadd.f32 %v454, %v455
  %v457 = vsel %vm202, %v411, 0.0
  %v458 = vadd.f32 %v456, %v457
  %v459 = vsel %vm202, %v412, 0.0
  %v460 = vadd.f32 %v458, %v459
  %v461 = vrot.slane %v460, 4
  %v462 = vadd.f32 %v460, %v461
  %v463 = vrot.slane %v462, 2
  %v464 = vadd.f32 %v462, %v463
  %v465 = vrot.slane %v464, 1
  %v466 = vadd.f32 %v464, %v465
  %v467 = vsel %vm202, %v413, 0.0
  %v468 = vsel %vm202, %v414, 0.0
  %v469 = vadd.f32 %v467, %v468
  %v470 = vsel %vm202, %v415, 0.0
  %v471 = vadd.f32 %v469, %v470
  %v472 = vsel %vm202, %v416, 0.0
  %v473 = vadd.f32 %v471, %v472
  %v474 = vrot.slane %v473, 4
  %v475 = vadd.f32 %v473, %v474
  %v476 = vrot.slane %v475, 2
  %v477 = vadd.f32 %v475, %v476
  %v478 = vrot.slane %v477, 1
  %v479 = vadd.f32 %v477, %v478
  %v480 = vsel %vm202, %v417, 0.0
  %v481 = vsel %vm202, %v418, 0.0
  %v482 = vadd.f32 %v480, %v481
  %v483 = vsel %vm202, %v419, 0.0
  %v484 = vadd.f32 %v482, %v483
  %v485 = vsel %vm202, %v420, 0.0
  %v486 = vadd.f32 %v484, %v485
  %v487 = vrot.slane %v486, 4
  %v488 = vadd.f32 %v486, %v487
  %v489 = vrot.slane %v488, 2
  %v490 = vadd.f32 %v488, %v489
  %v491 = vrot.slane %v490, 1
  %v492 = vadd.f32 %v490, %v491
  %v493 = vsel %vm202, %v421, 0.0
  %v494 = vsel %vm202, %v422, 0.0
  %v495 = vadd.f32 %v493, %v494
  %v496 = vsel %vm202, %v423, 0.0
  %v497 = vadd.f32 %v495, %v496
  %v498 = vsel %vm202, %v424, 0.0
  %v499 = vadd.f32 %v497, %v498
  %v500 = vrot.slane %v499, 4
  %v501 = vadd.f32 %v499, %v500
  %v502 = vrot.slane %v501, 2
  %v503 = vadd.f32 %v501, %v502
  %v504 = vrot.slane %v503, 1
  %v505 = vadd.f32 %v503, %v504
  %v506 = vsel %vm202, %v425, 0.0
  %v507 = vsel %vm202, %v426, 0.0
  %v508 = vadd.f32 %v506, %v507
  %v509 = vsel %vm202, %v427, 0.0
  %v510 = vadd.f32 %v508, %v509
  %v511 = vsel %vm202, %v428, 0.0
  %v512 = vadd.f32 %v510, %v511
  %v513 = vrot.slane %v512, 4
  %v514 = vadd.f32 %v512, %v513
  %v515 = vrot.slane %v514, 2
  %v516 = vadd.f32 %v514, %v515
  %v517 = vrot.slane %v516, 1
  %v518 = vadd.f32 %v516, %v517
  %v519 = vsel %vm202, %v429, 0.0
  %v520 = vsel %vm202, %v430, 0.0
  %v521 = vadd.f32 %v519, %v520
  %v522 = vsel %vm202, %v431, 0.0
  %v523 = vadd.f32 %v521, %v522
  %v524 = vsel %vm202, %v432, 0.0
  %v525 = vadd.f32 %v523, %v524
  %v526 = vrot.slane %v525, 4
  %v527 = vadd.f32 %v525, %v526
  %v528 = vrot.slane %v527, 2
  %v529 = vadd.f32 %v527, %v528
  %v530 = vrot.slane %v529, 1
  %v531 = vadd.f32 %v529, %v530
  %v532 = vsel %vm202, %v433, 0.0
  %v533 = vsel %vm202, %v434, 0.0
  %v534 = vadd.f32 %v532, %v533
  %v535 = vsel %vm202, %v435, 0.0
  %v536 = vadd.f32 %v534, %v535
  %v537 = vsel %vm202, %v436, 0.0
  %v538 = vadd.f32 %v536, %v537
  %v539 = vrot.slane %v538, 4
  %v540 = vadd.f32 %v538, %v539
  %v541 = vrot.slane %v540, 2
  %v542 = vadd.f32 %v540, %v541
  %v543 = vrot.slane %v542, 1
  %v544 = vadd.f32 %v542, %v543
  %v545 = vsel %vm202, %v437, 0.0
  %v546 = vsel %vm202, %v438, 0.0
  %v547 = vadd.f32 %v545, %v546
  %v548 = vsel %vm202, %v439, 0.0
  %v549 = vadd.f32 %v547, %v548
  %v550 = vsel %vm202, %v440, 0.0
  %v551 = vadd.f32 %v549, %v550
  %v552 = vrot.slane %v551, 4
  %v553 = vadd.f32 %v551, %v552
  %v554 = vrot.slane %v553, 2
  %v555 = vadd.f32 %v553, %v554
  %v556 = vrot.slane %v555, 1
  %v557 = vadd.f32 %v555, %v556
  %558 = vmatprep.subr.mxu0 0.0
  %559 = vmatpush1.msra.mxu0 0.0
  %560 = vmatprep.subr.mxu0 0.0
  %561 = vmatpush1.msra.mxu0 0.0
  %562 = vmatprep.subr.mxu0 0.0
  %563 = vmatpush1.msra.mxu0 0.0
  %564 = vmatprep.subr.mxu0 0.0
  %565 = vmatpush1.msra.mxu0 0.0
  %566 = vmatprep.subr.mxu0 0.0
  %567 = vmatpush1.msra.mxu0 0.0
  %568 = vmatprep.subr.mxu0 0.0
  %569 = vmatpush1.msra.mxu0 0.0
  %570 = vmatprep.subr.mxu0 0.0
  %571 = vmatpush1.msra.mxu0 0.0
  %572 = vmatprep.subr.mxu0 0.0
  %573 = vmatpush1.msra.mxu0 0.0
  %574 = vmatprep.subr.mxu0 0.0
  %575 = vmatpush1.msra.mxu0 0.0
  %576 = vmatprep.subr.mxu0 0.0
  %577 = vmatpush1.msra.mxu0 0.0
  %578 = vmatprep.subr.mxu0 0.0
  %579 = vmatpush1.msra.mxu0 0.0
  %580 = vmatprep.subr.mxu0 0.0
  %581 = vmatpush1.msra.mxu0 0.0
  %582 = vmatprep.subr.mxu0 0.0
  %583 = vmatpush1.msra.mxu0 %v27
  %584 = vmatprep.subr.mxu0 0.0
  %585 = vmatpush1.msra.mxu0 %v26
  %586 = vmatprep.subr.mxu0 0.0
  %587 = vmatpush1.msra.mxu0 %v25
  %588 = vmatprep.subr.mxu0 0.0
  %589 = vmatpush1.msra.mxu0 %v24
  %590 = vmatprep.subr.mxu0 0.0
  %591 = vmatpush2.msra.mxu0 0.0
  %592 = vmatprep.subr.mxu0 0.0
  %593 = vmatpush2.msra.mxu0 0.0
  %594 = vmatprep.subr.mxu0 0.0
  %595 = vmatpush2.msra.mxu0 0.0
  %596 = vmatprep.subr.mxu0 0.0
  %597 = vmatpush2.msra.mxu0 0.0
  %598 = vmatprep.subr.mxu0 0.0
  %599 = vmatpush2.msra.mxu0 0.0
  %600 = vmatprep.subr.mxu0 0.0
  %601 = vmatpush2.msra.mxu0 0.0
  %602 = vmatprep.subr.mxu0 0.0
  %603 = vmatpush2.msra.mxu0 0.0
  %604 = vmatprep.subr.mxu0 0.0
  %605 = vmatpush2.msra.mxu0 0.0
  %606 = vmatprep.subr.mxu0 0.0
  %607 = vmatpush2.msra.mxu0 0.0
  %608 = vmatprep.subr.mxu0 0.0
  %609 = vmatpush2.msra.mxu0 0.0
  %610 = vmatprep.subr.mxu0 0.0
  %611 = vmatpush2.msra.mxu0 0.0
  %612 = vmatprep.subr.mxu0 0.0
  %613 = vmatpush2.msra.mxu0 0.0
  %614 = vmatprep.subr.mxu0 0.0
  %615 = vmatpush2.msra.mxu0 0.0
  %616 = vmatprep.subr.mxu0 0.0
  %617 = vmatpush2.msra.mxu0 0.0
  %618 = vmatprep.subr.mxu0 0.0
  %619 = vmatpush2.msra.mxu0 0.0
  %620 = vmatprep.subr.mxu0 0.0
  %621 = vmatpush2.msra.mxu0 0.0
  %622 = vmatprep.mubr.f32.mxu0 0.0
  %623 = vmatmul.mubr.f32.gmra.mxu0 %v70
  %v624 = vpop.f32.mrf.mxu0
  %v625 = vadd.f32 0.0, %v624
  %v626 = vpop.f32.mrf.mxu0
  %627 = vmatprep.mubr.f32.mxu0 0.0
  %628 = vmatmul.mubr.f32.gmra.mxu0 %v73
  %v629 = vpop.f32.mrf.mxu0
  %v630 = vadd.f32 0.0, %v629
  %v631 = vpop.f32.mrf.mxu0
  %632 = vmatprep.mubr.f32.mxu0 0.0
  %633 = vmatmul.mubr.f32.gmra.mxu0 %v76
  %v634 = vpop.f32.mrf.mxu0
  %v635 = vadd.f32 0.0, %v634
  %v636 = vpop.f32.mrf.mxu0
  %637 = vmatprep.mubr.f32.mxu0 0.0
  %638 = vmatmul.mubr.f32.gmra.mxu0 %v79
  %v639 = vpop.f32.mrf.mxu0
  %v640 = vadd.f32 0.0, %v639
  %v641 = vpop.f32.mrf.mxu0
  %642 = vdwg.mxu0
  %v643 = vmul.f32 %v625, %v16
  %v644 = vmul.f32 %v630, %v17
  %v645 = vmul.f32 %v635, %v18
  %v646 = vmul.f32 %v640, %v19
  %v647 = vmul.f32 %v625, %v20
  %v648 = vmul.f32 %v630, %v21
  %v649 = vmul.f32 %v635, %v22
  %v650 = vmul.f32 %v640, %v23
  %v651 = vmul.f32 %v625, %v24
  %v652 = vmul.f32 %v630, %v25
  %v653 = vmul.f32 %v635, %v26
  %v654 = vmul.f32 %v640, %v27
  %v655 = vmul.f32 %v625, %v28
  %v656 = vmul.f32 %v630, %v29
  %v657 = vmul.f32 %v635, %v30
  %v658 = vmul.f32 %v640, %v31
  %v659 = vmul.f32 %v625, %v32
  %v660 = vmul.f32 %v630, %v33
  %v661 = vmul.f32 %v635, %v34
  %v662 = vmul.f32 %v640, %v35
  %v663 = vmul.f32 %v625, %v36
  %v664 = vmul.f32 %v630, %v37
  %v665 = vmul.f32 %v635, %v38
  %v666 = vmul.f32 %v640, %v39
  %v667 = vmul.f32 %v625, %v40
  %v668 = vmul.f32 %v630, %v41
  %v669 = vmul.f32 %v635, %v42
  %v670 = vmul.f32 %v640, %v43
  %v671 = vmul.f32 %v625, %v44
  %v672 = vmul.f32 %v630, %v45
  %v673 = vmul.f32 %v635, %v46
  %v674 = vmul.f32 %v640, %v47
  %v675 = vmul.f32 %v625, %v48
  %v676 = vmul.f32 %v630, %v49
  %v677 = vmul.f32 %v635, %v50
  %v678 = vmul.f32 %v640, %v51
  %v679 = vsel %vm202, %v643, 0.0
  %v680 = vsel %vm202, %v644, 0.0
  %v681 = vadd.f32 %v679, %v680
  %v682 = vsel %vm202, %v645, 0.0
  %v683 = vadd.f32 %v681, %v682
  %v684 = vsel %vm202, %v646, 0.0
  %v685 = vadd.f32 %v683, %v684
  %v686 = vrot.slane %v685, 4
  %v687 = vadd.f32 %v685, %v686
  %v688 = vrot.slane %v687, 2
  %v689 = vadd.f32 %v687, %v688
  %v690 = vrot.slane %v689, 1
  %v691 = vadd.f32 %v689, %v690
  %v692 = vsel %vm202, %v647, 0.0
  %v693 = vsel %vm202, %v648, 0.0
  %v694 = vadd.f32 %v692, %v693
  %v695 = vsel %vm202, %v649, 0.0
  %v696 = vadd.f32 %v694, %v695
  %v697 = vsel %vm202, %v650, 0.0
  %v698 = vadd.f32 %v696, %v697
  %v699 = vrot.slane %v698, 4
  %v700 = vadd.f32 %v698, %v699
  %v701 = vrot.slane %v700, 2
  %v702 = vadd.f32 %v700, %v701
  %v703 = vrot.slane %v702, 1
  %v704 = vadd.f32 %v702, %v703
  %v705 = vsel %vm202, %v651, 0.0
  %v706 = vsel %vm202, %v652, 0.0
  %v707 = vadd.f32 %v705, %v706
  %v708 = vsel %vm202, %v653, 0.0
  %v709 = vadd.f32 %v707, %v708
  %v710 = vsel %vm202, %v654, 0.0
  %v711 = vadd.f32 %v709, %v710
  %v712 = vrot.slane %v711, 4
  %v713 = vadd.f32 %v711, %v712
  %v714 = vrot.slane %v713, 2
  %v715 = vadd.f32 %v713, %v714
  %v716 = vrot.slane %v715, 1
  %v717 = vadd.f32 %v715, %v716
  %v718 = vsel %vm202, %v655, 0.0
  %v719 = vsel %vm202, %v656, 0.0
  %v720 = vadd.f32 %v718, %v719
  %v721 = vsel %vm202, %v657, 0.0
  %v722 = vadd.f32 %v720, %v721
  %v723 = vsel %vm202, %v658, 0.0
  %v724 = vadd.f32 %v722, %v723
  %v725 = vrot.slane %v724, 4
  %v726 = vadd.f32 %v724, %v725
  %v727 = vrot.slane %v726, 2
  %v728 = vadd.f32 %v726, %v727
  %v729 = vrot.slane %v728, 1
  %v730 = vadd.f32 %v728, %v729
  %v731 = vsel %vm202, %v659, 0.0
  %v732 = vsel %vm202, %v660, 0.0
  %v733 = vadd.f32 %v731, %v732
  %v734 = vsel %vm202, %v661, 0.0
  %v735 = vadd.f32 %v733, %v734
  %v736 = vsel %vm202, %v662, 0.0
  %v737 = vadd.f32 %v735, %v736
  %v738 = vrot.slane %v737, 4
  %v739 = vadd.f32 %v737, %v738
  %v740 = vrot.slane %v739, 2
  %v741 = vadd.f32 %v739, %v740
  %v742 = vrot.slane %v741, 1
  %v743 = vadd.f32 %v741, %v742
  %v744 = vsel %vm202, %v663, 0.0
  %v745 = vsel %vm202, %v664, 0.0
  %v746 = vadd.f32 %v744, %v745
  %v747 = vsel %vm202, %v665, 0.0
  %v748 = vadd.f32 %v746, %v747
  %v749 = vsel %vm202, %v666, 0.0
  %v750 = vadd.f32 %v748, %v749
  %v751 = vrot.slane %v750, 4
  %v752 = vadd.f32 %v750, %v751
  %v753 = vrot.slane %v752, 2
  %v754 = vadd.f32 %v752, %v753
  %v755 = vrot.slane %v754, 1
  %v756 = vadd.f32 %v754, %v755
  %v757 = vsel %vm202, %v667, 0.0
  %v758 = vsel %vm202, %v668, 0.0
  %v759 = vadd.f32 %v757, %v758
  %v760 = vsel %vm202, %v669, 0.0
  %v761 = vadd.f32 %v759, %v760
  %v762 = vsel %vm202, %v670, 0.0
  %v763 = vadd.f32 %v761, %v762
  %v764 = vrot.slane %v763, 4
  %v765 = vadd.f32 %v763, %v764
  %v766 = vrot.slane %v765, 2
  %v767 = vadd.f32 %v765, %v766
  %v768 = vrot.slane %v767, 1
  %v769 = vadd.f32 %v767, %v768
  %v770 = vsel %vm202, %v671, 0.0
  %v771 = vsel %vm202, %v672, 0.0
  %v772 = vadd.f32 %v770, %v771
  %v773 = vsel %vm202, %v673, 0.0
  %v774 = vadd.f32 %v772, %v773
  %v775 = vsel %vm202, %v674, 0.0
  %v776 = vadd.f32 %v774, %v775
  %v777 = vrot.slane %v776, 4
  %v778 = vadd.f32 %v776, %v777
  %v779 = vrot.slane %v778, 2
  %v780 = vadd.f32 %v778, %v779
  %v781 = vrot.slane %v780, 1
  %v782 = vadd.f32 %v780, %v781
  %v783 = vsel %vm202, %v675, 0.0
  %v784 = vsel %vm202, %v676, 0.0
  %v785 = vadd.f32 %v783, %v784
  %v786 = vsel %vm202, %v677, 0.0
  %v787 = vadd.f32 %v785, %v786
  %v788 = vsel %vm202, %v678, 0.0
  %v789 = vadd.f32 %v787, %v788
  %v790 = vrot.slane %v789, 4
  %v791 = vadd.f32 %v789, %v790
  %v792 = vrot.slane %v791, 2
  %v793 = vadd.f32 %v791, %v792
  %v794 = vrot.slane %v793, 1
  %v795 = vadd.f32 %v793, %v794
  %796 = vmatprep.subr.mxu0 0.0
  %797 = vmatpush1.msra.mxu0 0.0
  %798 = vmatprep.subr.mxu0 0.0
  %799 = vmatpush1.msra.mxu0 0.0
  %800 = vmatprep.subr.mxu0 0.0
  %801 = vmatpush1.msra.mxu0 0.0
  %802 = vmatprep.subr.mxu0 0.0
  %803 = vmatpush1.msra.mxu0 0.0
  %804 = vmatprep.subr.mxu0 0.0
  %805 = vmatpush1.msra.mxu0 0.0
  %806 = vmatprep.subr.mxu0 0.0
  %807 = vmatpush1.msra.mxu0 0.0
  %808 = vmatprep.subr.mxu0 0.0
  %809 = vmatpush1.msra.mxu0 0.0
  %810 = vmatprep.subr.mxu0 0.0
  %811 = vmatpush1.msra.mxu0 0.0
  %812 = vmatprep.subr.mxu0 0.0
  %813 = vmatpush1.msra.mxu0 0.0
  %814 = vmatprep.subr.mxu0 0.0
  %815 = vmatpush1.msra.mxu0 0.0
  %816 = vmatprep.subr.mxu0 0.0
  %817 = vmatpush1.msra.mxu0 0.0
  %818 = vmatprep.subr.mxu0 0.0
  %819 = vmatpush1.msra.mxu0 0.0
  %820 = vmatprep.subr.mxu0 0.0
  %821 = vmatpush1.msra.mxu0 %v31
  %822 = vmatprep.subr.mxu0 0.0
  %823 = vmatpush1.msra.mxu0 %v30
  %824 = vmatprep.subr.mxu0 0.0
  %825 = vmatpush1.msra.mxu0 %v29
  %826 = vmatprep.subr.mxu0 0.0
  %827 = vmatpush1.msra.mxu0 %v28
  %828 = vmatprep.subr.mxu0 0.0
  %829 = vmatpush2.msra.mxu0 0.0
  %830 = vmatprep.subr.mxu0 0.0
  %831 = vmatpush2.msra.mxu0 0.0
  %832 = vmatprep.subr.mxu0 0.0
  %833 = vmatpush2.msra.mxu0 0.0
  %834 = vmatprep.subr.mxu0 0.0
  %835 = vmatpush2.msra.mxu0 0.0
  %836 = vmatprep.subr.mxu0 0.0
  %837 = vmatpush2.msra.mxu0 0.0
  %838 = vmatprep.subr.mxu0 0.0
  %839 = vmatpush2.msra.mxu0 0.0
  %840 = vmatprep.subr.mxu0 0.0
  %841 = vmatpush2.msra.mxu0 0.0
  %842 = vmatprep.subr.mxu0 0.0
  %843 = vmatpush2.msra.mxu0 0.0
  %844 = vmatprep.subr.mxu0 0.0
  %845 = vmatpush2.msra.mxu0 0.0
  %846 = vmatprep.subr.mxu0 0.0
  %847 = vmatpush2.msra.mxu0 0.0
  %848 = vmatprep.subr.mxu0 0.0
  %849 = vmatpush2.msra.mxu0 0.0
  %850 = vmatprep.subr.mxu0 0.0
  %851 = vmatpush2.msra.mxu0 0.0
  %852 = vmatprep.subr.mxu0 0.0
  %853 = vmatpush2.msra.mxu0 0.0
  %854 = vmatprep.subr.mxu0 0.0
  %855 = vmatpush2.msra.mxu0 0.0
  %856 = vmatprep.subr.mxu0 0.0
  %857 = vmatpush2.msra.mxu0 0.0
  %858 = vmatprep.subr.mxu0 0.0
  %859 = vmatpush2.msra.mxu0 0.0
  %860 = vmatprep.mubr.f32.mxu0 0.0
  %861 = vmatmul.mubr.f32.gmra.mxu0 %v70
  %v862 = vpop.f32.mrf.mxu0
  %v863 = vadd.f32 0.0, %v862
  %v864 = vpop.f32.mrf.mxu0
  %865 = vmatprep.mubr.f32.mxu0 0.0
  %866 = vmatmul.mubr.f32.gmra.mxu0 %v73
  %v867 = vpop.f32.mrf.mxu0
  %v868 = vadd.f32 0.0, %v867
  %v869 = vpop.f32.mrf.mxu0
  %870 = vmatprep.mubr.f32.mxu0 0.0
  %871 = vmatmul.mubr.f32.gmra.mxu0 %v76
  %v872 = vpop.f32.mrf.mxu0
  %v873 = vadd.f32 0.0, %v872
  %v874 = vpop.f32.mrf.mxu0
  %875 = vmatprep.mubr.f32.mxu0 0.0
  %876 = vmatmul.mubr.f32.gmra.mxu0 %v79
  %v877 = vpop.f32.mrf.mxu0
  %v878 = vadd.f32 0.0, %v877
  %v879 = vpop.f32.mrf.mxu0
  %880 = vdwg.mxu0
  %v881 = vmul.f32 %v863, %v16
  %v882 = vmul.f32 %v868, %v17
  %v883 = vmul.f32 %v873, %v18
  %v884 = vmul.f32 %v878, %v19
  %v885 = vmul.f32 %v863, %v20
  %v886 = vmul.f32 %v868, %v21
  %v887 = vmul.f32 %v873, %v22
  %v888 = vmul.f32 %v878, %v23
  %v889 = vmul.f32 %v863, %v24
  %v890 = vmul.f32 %v868, %v25
  %v891 = vmul.f32 %v873, %v26
  %v892 = vmul.f32 %v878, %v27
  %v893 = vmul.f32 %v863, %v28
  %v894 = vmul.f32 %v868, %v29
  %v895 = vmul.f32 %v873, %v30
  %v896 = vmul.f32 %v878, %v31
  %v897 = vmul.f32 %v863, %v32
  %v898 = vmul.f32 %v868, %v33
  %v899 = vmul.f32 %v873, %v34
  %v900 = vmul.f32 %v878, %v35
  %v901 = vmul.f32 %v863, %v36
  %v902 = vmul.f32 %v868, %v37
  %v903 = vmul.f32 %v873, %v38
  %v904 = vmul.f32 %v878, %v39
  %v905 = vmul.f32 %v863, %v40
  %v906 = vmul.f32 %v868, %v41
  %v907 = vmul.f32 %v873, %v42
  %v908 = vmul.f32 %v878, %v43
  %v909 = vmul.f32 %v863, %v44
  %v910 = vmul.f32 %v868, %v45
  %v911 = vmul.f32 %v873, %v46
  %v912 = vmul.f32 %v878, %v47
  %v913 = vmul.f32 %v863, %v48
  %v914 = vmul.f32 %v868, %v49
  %v915 = vmul.f32 %v873, %v50
  %v916 = vmul.f32 %v878, %v51
  %v917 = vsel %vm202, %v881, 0.0
  %v918 = vsel %vm202, %v882, 0.0
  %v919 = vadd.f32 %v917, %v918
  %v920 = vsel %vm202, %v883, 0.0
  %v921 = vadd.f32 %v919, %v920
  %v922 = vsel %vm202, %v884, 0.0
  %v923 = vadd.f32 %v921, %v922
  %v924 = vrot.slane %v923, 4
  %v925 = vadd.f32 %v923, %v924
  %v926 = vrot.slane %v925, 2
  %v927 = vadd.f32 %v925, %v926
  %v928 = vrot.slane %v927, 1
  %v929 = vadd.f32 %v927, %v928
  %v930 = vsel %vm202, %v885, 0.0
  %v931 = vsel %vm202, %v886, 0.0
  %v932 = vadd.f32 %v930, %v931
  %v933 = vsel %vm202, %v887, 0.0
  %v934 = vadd.f32 %v932, %v933
  %v935 = vsel %vm202, %v888, 0.0
  %v936 = vadd.f32 %v934, %v935
  %v937 = vrot.slane %v936, 4
  %v938 = vadd.f32 %v936, %v937
  %v939 = vrot.slane %v938, 2
  %v940 = vadd.f32 %v938, %v939
  %v941 = vrot.slane %v940, 1
  %v942 = vadd.f32 %v940, %v941
  %v943 = vsel %vm202, %v889, 0.0
  %v944 = vsel %vm202, %v890, 0.0
  %v945 = vadd.f32 %v943, %v944
  %v946 = vsel %vm202, %v891, 0.0
  %v947 = vadd.f32 %v945, %v946
  %v948 = vsel %vm202, %v892, 0.0
  %v949 = vadd.f32 %v947, %v948
  %v950 = vrot.slane %v949, 4
  %v951 = vadd.f32 %v949, %v950
  %v952 = vrot.slane %v951, 2
  %v953 = vadd.f32 %v951, %v952
  %v954 = vrot.slane %v953, 1
  %v955 = vadd.f32 %v953, %v954
  %v956 = vsel %vm202, %v893, 0.0
  %v957 = vsel %vm202, %v894, 0.0
  %v958 = vadd.f32 %v956, %v957
  %v959 = vsel %vm202, %v895, 0.0
  %v960 = vadd.f32 %v958, %v959
  %v961 = vsel %vm202, %v896, 0.0
  %v962 = vadd.f32 %v960, %v961
  %v963 = vrot.slane %v962, 4
  %v964 = vadd.f32 %v962, %v963
  %v965 = vrot.slane %v964, 2
  %v966 = vadd.f32 %v964, %v965
  %v967 = vrot.slane %v966, 1
  %v968 = vadd.f32 %v966, %v967
  %v969 = vsel %vm202, %v897, 0.0
  %v970 = vsel %vm202, %v898, 0.0
  %v971 = vadd.f32 %v969, %v970
  %v972 = vsel %vm202, %v899, 0.0
  %v973 = vadd.f32 %v971, %v972
  %v974 = vsel %vm202, %v900, 0.0
  %v975 = vadd.f32 %v973, %v974
  %v976 = vrot.slane %v975, 4
  %v977 = vadd.f32 %v975, %v976
  %v978 = vrot.slane %v977, 2
  %v979 = vadd.f32 %v977, %v978
  %v980 = vrot.slane %v979, 1
  %v981 = vadd.f32 %v979, %v980
  %v982 = vsel %vm202, %v901, 0.0
  %v983 = vsel %vm202, %v902, 0.0
  %v984 = vadd.f32 %v982, %v983
  %v985 = vsel %vm202, %v903, 0.0
  %v986 = vadd.f32 %v984, %v985
  %v987 = vsel %vm202, %v904, 0.0
  %v988 = vadd.f32 %v986, %v987
  %v989 = vrot.slane %v988, 4
  %v990 = vadd.f32 %v988, %v989
  %v991 = vrot.slane %v990, 2
  %v992 = vadd.f32 %v990, %v991
  %v993 = vrot.slane %v992, 1
  %v994 = vadd.f32 %v992, %v993
  %v995 = vsel %vm202, %v905, 0.0
  %v996 = vsel %vm202, %v906, 0.0
  %v997 = vadd.f32 %v995, %v996
  %v998 = vsel %vm202, %v907, 0.0
  %v999 = vadd.f32 %v997, %v998
  %v1000 = vsel %vm202, %v908, 0.0
  %v1001 = vadd.f32 %v999, %v1000
  %v1002 = vrot.slane %v1001, 4
  %v1003 = vadd.f32 %v1001, %v1002
  %v1004 = vrot.slane %v1003, 2
  %v1005 = vadd.f32 %v1003, %v1004
  %v1006 = vrot.slane %v1005, 1
  %v1007 = vadd.f32 %v1005, %v1006
  %v1008 = vsel %vm202, %v909, 0.0
  %v1009 = vsel %vm202, %v910, 0.0
  %v1010 = vadd.f32 %v1008, %v1009
  %v1011 = vsel %vm202, %v911, 0.0
  %v1012 = vadd.f32 %v1010, %v1011
  %v1013 = vsel %vm202, %v912, 0.0
  %v1014 = vadd.f32 %v1012, %v1013
  %v1015 = vrot.slane %v1014, 4
  %v1016 = vadd.f32 %v1014, %v1015
  %v1017 = vrot.slane %v1016, 2
  %v1018 = vadd.f32 %v1016, %v1017
  %v1019 = vrot.slane %v1018, 1
  %v1020 = vadd.f32 %v1018, %v1019
  %v1021 = vsel %vm202, %v913, 0.0
  %v1022 = vsel %vm202, %v914, 0.0
  %v1023 = vadd.f32 %v1021, %v1022
  %v1024 = vsel %vm202, %v915, 0.0
  %v1025 = vadd.f32 %v1023, %v1024
  %v1026 = vsel %vm202, %v916, 0.0
  %v1027 = vadd.f32 %v1025, %v1026
  %v1028 = vrot.slane %v1027, 4
  %v1029 = vadd.f32 %v1027, %v1028
  %v1030 = vrot.slane %v1029, 2
  %v1031 = vadd.f32 %v1029, %v1030
  %v1032 = vrot.slane %v1031, 1
  %v1033 = vadd.f32 %v1031, %v1032
  %1034 = vmatprep.subr.mxu0 0.0
  %1035 = vmatpush1.msra.mxu0 0.0
  %1036 = vmatprep.subr.mxu0 0.0
  %1037 = vmatpush1.msra.mxu0 0.0
  %1038 = vmatprep.subr.mxu0 0.0
  %1039 = vmatpush1.msra.mxu0 0.0
  %1040 = vmatprep.subr.mxu0 0.0
  %1041 = vmatpush1.msra.mxu0 0.0
  %1042 = vmatprep.subr.mxu0 0.0
  %1043 = vmatpush1.msra.mxu0 0.0
  %1044 = vmatprep.subr.mxu0 0.0
  %1045 = vmatpush1.msra.mxu0 0.0
  %1046 = vmatprep.subr.mxu0 0.0
  %1047 = vmatpush1.msra.mxu0 0.0
  %1048 = vmatprep.subr.mxu0 0.0
  %1049 = vmatpush1.msra.mxu0 0.0
  %1050 = vmatprep.subr.mxu0 0.0
  %1051 = vmatpush1.msra.mxu0 0.0
  %1052 = vmatprep.subr.mxu0 0.0
  %1053 = vmatpush1.msra.mxu0 0.0
  %1054 = vmatprep.subr.mxu0 0.0
  %1055 = vmatpush1.msra.mxu0 0.0
  %1056 = vmatprep.subr.mxu0 0.0
  %1057 = vmatpush1.msra.mxu0 0.0
  %1058 = vmatprep.subr.mxu0 0.0
  %1059 = vmatpush1.msra.mxu0 %v35
  %1060 = vmatprep.subr.mxu0 0.0
  %1061 = vmatpush1.msra.mxu0 %v34
  %1062 = vmatprep.subr.mxu0 0.0
  %1063 = vmatpush1.msra.mxu0 %v33
  %1064 = vmatprep.subr.mxu0 0.0
  %1065 = vmatpush1.msra.mxu0 %v32
  %1066 = vmatprep.subr.mxu0 0.0
  %1067 = vmatpush2.msra.mxu0 0.0
  %1068 = vmatprep.subr.mxu0 0.0
  %1069 = vmatpush2.msra.mxu0 0.0
  %1070 = vmatprep.subr.mxu0 0.0
  %1071 = vmatpush2.msra.mxu0 0.0
  %1072 = vmatprep.subr.mxu0 0.0
  %1073 = vmatpush2.msra.mxu0 0.0
  %1074 = vmatprep.subr.mxu0 0.0
  %1075 = vmatpush2.msra.mxu0 0.0
  %1076 = vmatprep.subr.mxu0 0.0
  %1077 = vmatpush2.msra.mxu0 0.0
  %1078 = vmatprep.subr.mxu0 0.0
  %1079 = vmatpush2.msra.mxu0 0.0
  %1080 = vmatprep.subr.mxu0 0.0
  %1081 = vmatpush2.msra.mxu0 0.0
  %1082 = vmatprep.subr.mxu0 0.0
  %1083 = vmatpush2.msra.mxu0 0.0
  %1084 = vmatprep.subr.mxu0 0.0
  %1085 = vmatpush2.msra.mxu0 0.0
  %1086 = vmatprep.subr.mxu0 0.0
  %1087 = vmatpush2.msra.mxu0 0.0
  %1088 = vmatprep.subr.mxu0 0.0
  %1089 = vmatpush2.msra.mxu0 0.0
  %1090 = vmatprep.subr.mxu0 0.0
  %1091 = vmatpush2.msra.mxu0 0.0
  %1092 = vmatprep.subr.mxu0 0.0
  %1093 = vmatpush2.msra.mxu0 0.0
  %1094 = vmatprep.subr.mxu0 0.0
  %1095 = vmatpush2.msra.mxu0 0.0
  %1096 = vmatprep.subr.mxu0 0.0
  %1097 = vmatpush2.msra.mxu0 0.0
  %1098 = vmatprep.mubr.f32.mxu0 0.0
  %1099 = vmatmul.mubr.f32.gmra.mxu0 %v70
  %v1100 = vpop.f32.mrf.mxu0
  %v1101 = vadd.f32 0.0, %v1100
  %v1102 = vpop.f32.mrf.mxu0
  %1103 = vmatprep.mubr.f32.mxu0 0.0
  %1104 = vmatmul.mubr.f32.gmra.mxu0 %v73
  %v1105 = vpop.f32.mrf.mxu0
  %v1106 = vadd.f32 0.0, %v1105
  %v1107 = vpop.f32.mrf.mxu0
  %1108 = vmatprep.mubr.f32.mxu0 0.0
  %1109 = vmatmul.mubr.f32.gmra.mxu0 %v76
  %v1110 = vpop.f32.mrf.mxu0
  %v1111 = vadd.f32 0.0, %v1110
  %v1112 = vpop.f32.mrf.mxu0
  %1113 = vmatprep.mubr.f32.mxu0 0.0
  %1114 = vmatmul.mubr.f32.gmra.mxu0 %v79
  %v1115 = vpop.f32.mrf.mxu0
  %v1116 = vadd.f32 0.0, %v1115
  %v1117 = vpop.f32.mrf.mxu0
  %1118 = vdwg.mxu0
  %v1119 = vmul.f32 %v1101, %v16
  %v1120 = vmul.f32 %v1106, %v17
  %v1121 = vmul.f32 %v1111, %v18
  %v1122 = vmul.f32 %v1116, %v19
  %v1123 = vmul.f32 %v1101, %v20
  %v1124 = vmul.f32 %v1106, %v21
  %v1125 = vmul.f32 %v1111, %v22
  %v1126 = vmul.f32 %v1116, %v23
  %v1127 = vmul.f32 %v1101, %v24
  %v1128 = vmul.f32 %v1106, %v25
  %v1129 = vmul.f32 %v1111, %v26
  %v1130 = vmul.f32 %v1116, %v27
  %v1131 = vmul.f32 %v1101, %v28
  %v1132 = vmul.f32 %v1106, %v29
  %v1133 = vmul.f32 %v1111, %v30
  %v1134 = vmul.f32 %v1116, %v31
  %v1135 = vmul.f32 %v1101, %v32
  %v1136 = vmul.f32 %v1106, %v33
  %v1137 = vmul.f32 %v1111, %v34
  %v1138 = vmul.f32 %v1116, %v35
  %v1139 = vmul.f32 %v1101, %v36
  %v1140 = vmul.f32 %v1106, %v37
  %v1141 = vmul.f32 %v1111, %v38
  %v1142 = vmul.f32 %v1116, %v39
  %v1143 = vmul.f32 %v1101, %v40
  %v1144 = vmul.f32 %v1106, %v41
  %v1145 = vmul.f32 %v1111, %v42
  %v1146 = vmul.f32 %v1116, %v43
  %v1147 = vmul.f32 %v1101, %v44
  %v1148 = vmul.f32 %v1106, %v45
  %v1149 = vmul.f32 %v1111, %v46
  %v1150 = vmul.f32 %v1116, %v47
  %v1151 = vmul.f32 %v1101, %v48
  %v1152 = vmul.f32 %v1106, %v49
  %v1153 = vmul.f32 %v1111, %v50
  %v1154 = vmul.f32 %v1116, %v51
  %v1155 = vsel %vm202, %v1119, 0.0
  %v1156 = vsel %vm202, %v1120, 0.0
  %v1157 = vadd.f32 %v1155, %v1156
  %v1158 = vsel %vm202, %v1121, 0.0
  %v1159 = vadd.f32 %v1157, %v1158
  %v1160 = vsel %vm202, %v1122, 0.0
  %v1161 = vadd.f32 %v1159, %v1160
  %v1162 = vrot.slane %v1161, 4
  %v1163 = vadd.f32 %v1161, %v1162
  %v1164 = vrot.slane %v1163, 2
  %v1165 = vadd.f32 %v1163, %v1164
  %v1166 = vrot.slane %v1165, 1
  %v1167 = vadd.f32 %v1165, %v1166
  %v1168 = vsel %vm202, %v1123, 0.0
  %v1169 = vsel %vm202, %v1124, 0.0
  %v1170 = vadd.f32 %v1168, %v1169
  %v1171 = vsel %vm202, %v1125, 0.0
  %v1172 = vadd.f32 %v1170, %v1171
  %v1173 = vsel %vm202, %v1126, 0.0
  %v1174 = vadd.f32 %v1172, %v1173
  %v1175 = vrot.slane %v1174, 4
  %v1176 = vadd.f32 %v1174, %v1175
  %v1177 = vrot.slane %v1176, 2
  %v1178 = vadd.f32 %v1176, %v1177
  %v1179 = vrot.slane %v1178, 1
  %v1180 = vadd.f32 %v1178, %v1179
  %v1181 = vsel %vm202, %v1127, 0.0
  %v1182 = vsel %vm202, %v1128, 0.0
  %v1183 = vadd.f32 %v1181, %v1182
  %v1184 = vsel %vm202, %v1129, 0.0
  %v1185 = vadd.f32 %v1183, %v1184
  %v1186 = vsel %vm202, %v1130, 0.0
  %v1187 = vadd.f32 %v1185, %v1186
  %v1188 = vrot.slane %v1187, 4
  %v1189 = vadd.f32 %v1187, %v1188
  %v1190 = vrot.slane %v1189, 2
  %v1191 = vadd.f32 %v1189, %v1190
  %v1192 = vrot.slane %v1191, 1
  %v1193 = vadd.f32 %v1191, %v1192
  %v1194 = vsel %vm202, %v1131, 0.0
  %v1195 = vsel %vm202, %v1132, 0.0
  %v1196 = vadd.f32 %v1194, %v1195
  %v1197 = vsel %vm202, %v1133, 0.0
  %v1198 = vadd.f32 %v1196, %v1197
  %v1199 = vsel %vm202, %v1134, 0.0
  %v1200 = vadd.f32 %v1198, %v1199
  %v1201 = vrot.slane %v1200, 4
  %v1202 = vadd.f32 %v1200, %v1201
  %v1203 = vrot.slane %v1202, 2
  %v1204 = vadd.f32 %v1202, %v1203
  %v1205 = vrot.slane %v1204, 1
  %v1206 = vadd.f32 %v1204, %v1205
  %v1207 = vsel %vm202, %v1135, 0.0
  %v1208 = vsel %vm202, %v1136, 0.0
  %v1209 = vadd.f32 %v1207, %v1208
  %v1210 = vsel %vm202, %v1137, 0.0
  %v1211 = vadd.f32 %v1209, %v1210
  %v1212 = vsel %vm202, %v1138, 0.0
  %v1213 = vadd.f32 %v1211, %v1212
  %v1214 = vrot.slane %v1213, 4
  %v1215 = vadd.f32 %v1213, %v1214
  %v1216 = vrot.slane %v1215, 2
  %v1217 = vadd.f32 %v1215, %v1216
  %v1218 = vrot.slane %v1217, 1
  %v1219 = vadd.f32 %v1217, %v1218
  %v1220 = vsel %vm202, %v1139, 0.0
  %v1221 = vsel %vm202, %v1140, 0.0
  %v1222 = vadd.f32 %v1220, %v1221
  %v1223 = vsel %vm202, %v1141, 0.0
  %v1224 = vadd.f32 %v1222, %v1223
  %v1225 = vsel %vm202, %v1142, 0.0
  %v1226 = vadd.f32 %v1224, %v1225
  %v1227 = vrot.slane %v1226, 4
  %v1228 = vadd.f32 %v1226, %v1227
  %v1229 = vrot.slane %v1228, 2
  %v1230 = vadd.f32 %v1228, %v1229
  %v1231 = vrot.slane %v1230, 1
  %v1232 = vadd.f32 %v1230, %v1231
  %v1233 = vsel %vm202, %v1143, 0.0
  %v1234 = vsel %vm202, %v1144, 0.0
  %v1235 = vadd.f32 %v1233, %v1234
  %v1236 = vsel %vm202, %v1145, 0.0
  %v1237 = vadd.f32 %v1235, %v1236
  %v1238 = vsel %vm202, %v1146, 0.0
  %v1239 = vadd.f32 %v1237, %v1238
  %v1240 = vrot.slane %v1239, 4
  %v1241 = vadd.f32 %v1239, %v1240
  %v1242 = vrot.slane %v1241, 2
  %v1243 = vadd.f32 %v1241, %v1242
  %v1244 = vrot.slane %v1243, 1
  %v1245 = vadd.f32 %v1243, %v1244
  %v1246 = vsel %vm202, %v1147, 0.0
  %v1247 = vsel %vm202, %v1148, 0.0
  %v1248 = vadd.f32 %v1246, %v1247
  %v1249 = vsel %vm202, %v1149, 0.0
  %v1250 = vadd.f32 %v1248, %v1249
  %v1251 = vsel %vm202, %v1150, 0.0
  %v1252 = vadd.f32 %v1250, %v1251
  %v1253 = vrot.slane %v1252, 4
  %v1254 = vadd.f32 %v1252, %v1253
  %v1255 = vrot.slane %v1254, 2
  %v1256 = vadd.f32 %v1254, %v1255
  %v1257 = vrot.slane %v1256, 1
  %v1258 = vadd.f32 %v1256, %v1257
  %v1259 = vsel %vm202, %v1151, 0.0
  %v1260 = vsel %vm202, %v1152, 0.0
  %v1261 = vadd.f32 %v1259, %v1260
  %v1262 = vsel %vm202, %v1153, 0.0
  %v1263 = vadd.f32 %v1261, %v1262
  %v1264 = vsel %vm202, %v1154, 0.0
  %v1265 = vadd.f32 %v1263, %v1264
  %v1266 = vrot.slane %v1265, 4
  %v1267 = vadd.f32 %v1265, %v1266
  %v1268 = vrot.slane %v1267, 2
  %v1269 = vadd.f32 %v1267, %v1268
  %v1270 = vrot.slane %v1269, 1
  %v1271 = vadd.f32 %v1269, %v1270
  %1272 = vmatprep.subr.mxu0 0.0
  %1273 = vmatpush1.msra.mxu0 0.0
  %1274 = vmatprep.subr.mxu0 0.0
  %1275 = vmatpush1.msra.mxu0 0.0
  %1276 = vmatprep.subr.mxu0 0.0
  %1277 = vmatpush1.msra.mxu0 0.0
  %1278 = vmatprep.subr.mxu0 0.0
  %1279 = vmatpush1.msra.mxu0 0.0
  %1280 = vmatprep.subr.mxu0 0.0
  %1281 = vmatpush1.msra.mxu0 0.0
  %1282 = vmatprep.subr.mxu0 0.0
  %1283 = vmatpush1.msra.mxu0 0.0
  %1284 = vmatprep.subr.mxu0 0.0
  %1285 = vmatpush1.msra.mxu0 0.0
  %1286 = vmatprep.subr.mxu0 0.0
  %1287 = vmatpush1.msra.mxu0 0.0
  %1288 = vmatprep.subr.mxu0 0.0
  %1289 = vmatpush1.msra.mxu0 0.0
  %1290 = vmatprep.subr.mxu0 0.0
  %1291 = vmatpush1.msra.mxu0 0.0
  %1292 = vmatprep.subr.mxu0 0.0
  %1293 = vmatpush1.msra.mxu0 0.0
  %1294 = vmatprep.subr.mxu0 0.0
  %1295 = vmatpush1.msra.mxu0 0.0
  %1296 = vmatprep.subr.mxu0 0.0
  %1297 = vmatpush1.msra.mxu0 %v39
  %1298 = vmatprep.subr.mxu0 0.0
  %1299 = vmatpush1.msra.mxu0 %v38
  %1300 = vmatprep.subr.mxu0 0.0
  %1301 = vmatpush1.msra.mxu0 %v37
  %1302 = vmatprep.subr.mxu0 0.0
  %1303 = vmatpush1.msra.mxu0 %v36
  %1304 = vmatprep.subr.mxu0 0.0
  %1305 = vmatpush2.msra.mxu0 0.0
  %1306 = vmatprep.subr.mxu0 0.0
  %1307 = vmatpush2.msra.mxu0 0.0
  %1308 = vmatprep.subr.mxu0 0.0
  %1309 = vmatpush2.msra.mxu0 0.0
  %1310 = vmatprep.subr.mxu0 0.0
  %1311 = vmatpush2.msra.mxu0 0.0
  %1312 = vmatprep.subr.mxu0 0.0
  %1313 = vmatpush2.msra.mxu0 0.0
  %1314 = vmatprep.subr.mxu0 0.0
  %1315 = vmatpush2.msra.mxu0 0.0
  %1316 = vmatprep.subr.mxu0 0.0
  %1317 = vmatpush2.msra.mxu0 0.0
  %1318 = vmatprep.subr.mxu0 0.0
  %1319 = vmatpush2.msra.mxu0 0.0
  %1320 = vmatprep.subr.mxu0 0.0
  %1321 = vmatpush2.msra.mxu0 0.0
  %1322 = vmatprep.subr.mxu0 0.0
  %1323 = vmatpush2.msra.mxu0 0.0
  %1324 = vmatprep.subr.mxu0 0.0
  %1325 = vmatpush2.msra.mxu0 0.0
  %1326 = vmatprep.subr.mxu0 0.0
  %1327 = vmatpush2.msra.mxu0 0.0
  %1328 = vmatprep.subr.mxu0 0.0
  %1329 = vmatpush2.msra.mxu0 0.0
  %1330 = vmatprep.subr.mxu0 0.0
  %1331 = vmatpush2.msra.mxu0 0.0
  %1332 = vmatprep.subr.mxu0 0.0
  %1333 = vmatpush2.msra.mxu0 0.0
  %1334 = vmatprep.subr.mxu0 0.0
  %1335 = vmatpush2.msra.mxu0 0.0
  %1336 = vmatprep.mubr.f32.mxu0 0.0
  %1337 = vmatmul.mubr.f32.gmra.mxu0 %v70
  %v1338 = vpop.f32.mrf.mxu0
  %v1339 = vadd.f32 0.0, %v1338
  %v1340 = vpop.f32.mrf.mxu0
  %1341 = vmatprep.mubr.f32.mxu0 0.0
  %1342 = vmatmul.mubr.f32.gmra.mxu0 %v73
  %v1343 = vpop.f32.mrf.mxu0
  %v1344 = vadd.f32 0.0, %v1343
  %v1345 = vpop.f32.mrf.mxu0
  %1346 = vmatprep.mubr.f32.mxu0 0.0
  %1347 = vmatmul.mubr.f32.gmra.mxu0 %v76
  %v1348 = vpop.f32.mrf.mxu0
  %v1349 = vadd.f32 0.0, %v1348
  %v1350 = vpop.f32.mrf.mxu0
  %1351 = vmatprep.mubr.f32.mxu0 0.0
  %1352 = vmatmul.mubr.f32.gmra.mxu0 %v79
  %v1353 = vpop.f32.mrf.mxu0
  %v1354 = vadd.f32 0.0, %v1353
  %v1355 = vpop.f32.mrf.mxu0
  %1356 = vdwg.mxu0
  %v1357 = vmul.f32 %v1339, %v16
  %v1358 = vmul.f32 %v1344, %v17
  %v1359 = vmul.f32 %v1349, %v18
  %v1360 = vmul.f32 %v1354, %v19
  %v1361 = vmul.f32 %v1339, %v20
  %v1362 = vmul.f32 %v1344, %v21
  %v1363 = vmul.f32 %v1349, %v22
  %v1364 = vmul.f32 %v1354, %v23
  %v1365 = vmul.f32 %v1339, %v24
  %v1366 = vmul.f32 %v1344, %v25
  %v1367 = vmul.f32 %v1349, %v26
  %v1368 = vmul.f32 %v1354, %v27
  %v1369 = vmul.f32 %v1339, %v28
  %v1370 = vmul.f32 %v1344, %v29
  %v1371 = vmul.f32 %v1349, %v30
  %v1372 = vmul.f32 %v1354, %v31
  %v1373 = vmul.f32 %v1339, %v32
  %v1374 = vmul.f32 %v1344, %v33
  %v1375 = vmul.f32 %v1349, %v34
  %v1376 = vmul.f32 %v1354, %v35
  %v1377 = vmul.f32 %v1339, %v36
  %v1378 = vmul.f32 %v1344, %v37
  %v1379 = vmul.f32 %v1349, %v38
  %v1380 = vmul.f32 %v1354, %v39
  %v1381 = vmul.f32 %v1339, %v40
  %v1382 = vmul.f32 %v1344, %v41
  %v1383 = vmul.f32 %v1349, %v42
  %v1384 = vmul.f32 %v1354, %v43
  %v1385 = vmul.f32 %v1339, %v44
  %v1386 = vmul.f32 %v1344, %v45
  %v1387 = vmul.f32 %v1349, %v46
  %v1388 = vmul.f32 %v1354, %v47
  %v1389 = vmul.f32 %v1339, %v48
  %v1390 = vmul.f32 %v1344, %v49
  %v1391 = vmul.f32 %v1349, %v50
  %v1392 = vmul.f32 %v1354, %v51
  %v1393 = vsel %vm202, %v1357, 0.0
  %v1394 = vsel %vm202, %v1358, 0.0
  %v1395 = vadd.f32 %v1393, %v1394
  %v1396 = vsel %vm202, %v1359, 0.0
  %v1397 = vadd.f32 %v1395, %v1396
  %v1398 = vsel %vm202, %v1360, 0.0
  %v1399 = vadd.f32 %v1397, %v1398
  %v1400 = vrot.slane %v1399, 4
  %v1401 = vadd.f32 %v1399, %v1400
  %v1402 = vrot.slane %v1401, 2
  %v1403 = vadd.f32 %v1401, %v1402
  %v1404 = vrot.slane %v1403, 1
  %v1405 = vadd.f32 %v1403, %v1404
  %v1406 = vsel %vm202, %v1361, 0.0
  %v1407 = vsel %vm202, %v1362, 0.0
  %v1408 = vadd.f32 %v1406, %v1407
  %v1409 = vsel %vm202, %v1363, 0.0
  %v1410 = vadd.f32 %v1408, %v1409
  %v1411 = vsel %vm202, %v1364, 0.0
  %v1412 = vadd.f32 %v1410, %v1411
  %v1413 = vrot.slane %v1412, 4
  %v1414 = vadd.f32 %v1412, %v1413
  %v1415 = vrot.slane %v1414, 2
  %v1416 = vadd.f32 %v1414, %v1415
  %v1417 = vrot.slane %v1416, 1
  %v1418 = vadd.f32 %v1416, %v1417
  %v1419 = vsel %vm202, %v1365, 0.0
  %v1420 = vsel %vm202, %v1366, 0.0
  %v1421 = vadd.f32 %v1419, %v1420
  %v1422 = vsel %vm202, %v1367, 0.0
  %v1423 = vadd.f32 %v1421, %v1422
  %v1424 = vsel %vm202, %v1368, 0.0
  %v1425 = vadd.f32 %v1423, %v1424
  %v1426 = vrot.slane %v1425, 4
  %v1427 = vadd.f32 %v1425, %v1426
  %v1428 = vrot.slane %v1427, 2
  %v1429 = vadd.f32 %v1427, %v1428
  %v1430 = vrot.slane %v1429, 1
  %v1431 = vadd.f32 %v1429, %v1430
  %v1432 = vsel %vm202, %v1369, 0.0
  %v1433 = vsel %vm202, %v1370, 0.0
  %v1434 = vadd.f32 %v1432, %v1433
  %v1435 = vsel %vm202, %v1371, 0.0
  %v1436 = vadd.f32 %v1434, %v1435
  %v1437 = vsel %vm202, %v1372, 0.0
  %v1438 = vadd.f32 %v1436, %v1437
  %v1439 = vrot.slane %v1438, 4
  %v1440 = vadd.f32 %v1438, %v1439
  %v1441 = vrot.slane %v1440, 2
  %v1442 = vadd.f32 %v1440, %v1441
  %v1443 = vrot.slane %v1442, 1
  %v1444 = vadd.f32 %v1442, %v1443
  %v1445 = vsel %vm202, %v1373, 0.0
  %v1446 = vsel %vm202, %v1374, 0.0
  %v1447 = vadd.f32 %v1445, %v1446
  %v1448 = vsel %vm202, %v1375, 0.0
  %v1449 = vadd.f32 %v1447, %v1448
  %v1450 = vsel %vm202, %v1376, 0.0
  %v1451 = vadd.f32 %v1449, %v1450
  %v1452 = vrot.slane %v1451, 4
  %v1453 = vadd.f32 %v1451, %v1452
  %v1454 = vrot.slane %v1453, 2
  %v1455 = vadd.f32 %v1453, %v1454
  %v1456 = vrot.slane %v1455, 1
  %v1457 = vadd.f32 %v1455, %v1456
  %v1458 = vsel %vm202, %v1377, 0.0
  %v1459 = vsel %vm202, %v1378, 0.0
  %v1460 = vadd.f32 %v1458, %v1459
  %v1461 = vsel %vm202, %v1379, 0.0
  %v1462 = vadd.f32 %v1460, %v1461
  %v1463 = vsel %vm202, %v1380, 0.0
  %v1464 = vadd.f32 %v1462, %v1463
  %v1465 = vrot.slane %v1464, 4
  %v1466 = vadd.f32 %v1464, %v1465
  %v1467 = vrot.slane %v1466, 2
  %v1468 = vadd.f32 %v1466, %v1467
  %v1469 = vrot.slane %v1468, 1
  %v1470 = vadd.f32 %v1468, %v1469
  %v1471 = vsel %vm202, %v1381, 0.0
  %v1472 = vsel %vm202, %v1382, 0.0
  %v1473 = vadd.f32 %v1471, %v1472
  %v1474 = vsel %vm202, %v1383, 0.0
  %v1475 = vadd.f32 %v1473, %v1474
  %v1476 = vsel %vm202, %v1384, 0.0
  %v1477 = vadd.f32 %v1475, %v1476
  %v1478 = vrot.slane %v1477, 4
  %v1479 = vadd.f32 %v1477, %v1478
  %v1480 = vrot.slane %v1479, 2
  %v1481 = vadd.f32 %v1479, %v1480
  %v1482 = vrot.slane %v1481, 1
  %v1483 = vadd.f32 %v1481, %v1482
  %v1484 = vsel %vm202, %v1385, 0.0
  %v1485 = vsel %vm202, %v1386, 0.0
  %v1486 = vadd.f32 %v1484, %v1485
  %v1487 = vsel %vm202, %v1387, 0.0
  %v1488 = vadd.f32 %v1486, %v1487
  %v1489 = vsel %vm202, %v1388, 0.0
  %v1490 = vadd.f32 %v1488, %v1489
  %v1491 = vrot.slane %v1490, 4
  %v1492 = vadd.f32 %v1490, %v1491
  %v1493 = vrot.slane %v1492, 2
  %v1494 = vadd.f32 %v1492, %v1493
  %v1495 = vrot.slane %v1494, 1
  %v1496 = vadd.f32 %v1494, %v1495
  %v1497 = vsel %vm202, %v1389, 0.0
  %v1498 = vsel %vm202, %v1390, 0.0
  %v1499 = vadd.f32 %v1497, %v1498
  %v1500 = vsel %vm202, %v1391, 0.0
  %v1501 = vadd.f32 %v1499, %v1500
  %v1502 = vsel %vm202, %v1392, 0.0
  %v1503 = vadd.f32 %v1501, %v1502
  %v1504 = vrot.slane %v1503, 4
  %v1505 = vadd.f32 %v1503, %v1504
  %v1506 = vrot.slane %v1505, 2
  %v1507 = vadd.f32 %v1505, %v1506
  %v1508 = vrot.slane %v1507, 1
  %v1509 = vadd.f32 %v1507, %v1508
  %1510 = vmatprep.subr.mxu0 0.0
  %1511 = vmatpush1.msra.mxu0 0.0
  %1512 = vmatprep.subr.mxu0 0.0
  %1513 = vmatpush1.msra.mxu0 0.0
  %1514 = vmatprep.subr.mxu0 0.0
  %1515 = vmatpush1.msra.mxu0 0.0
  %1516 = vmatprep.subr.mxu0 0.0
  %1517 = vmatpush1.msra.mxu0 0.0
  %1518 = vmatprep.subr.mxu0 0.0
  %1519 = vmatpush1.msra.mxu0 0.0
  %1520 = vmatprep.subr.mxu0 0.0
  %1521 = vmatpush1.msra.mxu0 0.0
  %1522 = vmatprep.subr.mxu0 0.0
  %1523 = vmatpush1.msra.mxu0 0.0
  %1524 = vmatprep.subr.mxu0 0.0
  %1525 = vmatpush1.msra.mxu0 0.0
  %1526 = vmatprep.subr.mxu0 0.0
  %1527 = vmatpush1.msra.mxu0 0.0
  %1528 = vmatprep.subr.mxu0 0.0
  %1529 = vmatpush1.msra.mxu0 0.0
  %1530 = vmatprep.subr.mxu0 0.0
  %1531 = vmatpush1.msra.mxu0 0.0
  %1532 = vmatprep.subr.mxu0 0.0
  %1533 = vmatpush1.msra.mxu0 0.0
  %1534 = vmatprep.subr.mxu0 0.0
  %1535 = vmatpush1.msra.mxu0 %v43
  %1536 = vmatprep.subr.mxu0 0.0
  %1537 = vmatpush1.msra.mxu0 %v42
  %1538 = vmatprep.subr.mxu0 0.0
  %1539 = vmatpush1.msra.mxu0 %v41
  %1540 = vmatprep.subr.mxu0 0.0
  %1541 = vmatpush1.msra.mxu0 %v40
  %1542 = vmatprep.subr.mxu0 0.0
  %1543 = vmatpush2.msra.mxu0 0.0
  %1544 = vmatprep.subr.mxu0 0.0
  %1545 = vmatpush2.msra.mxu0 0.0
  %1546 = vmatprep.subr.mxu0 0.0
  %1547 = vmatpush2.msra.mxu0 0.0
  %1548 = vmatprep.subr.mxu0 0.0
  %1549 = vmatpush2.msra.mxu0 0.0
  %1550 = vmatprep.subr.mxu0 0.0
  %1551 = vmatpush2.msra.mxu0 0.0
  %1552 = vmatprep.subr.mxu0 0.0
  %1553 = vmatpush2.msra.mxu0 0.0
  %1554 = vmatprep.subr.mxu0 0.0
  %1555 = vmatpush2.msra.mxu0 0.0
  %1556 = vmatprep.subr.mxu0 0.0
  %1557 = vmatpush2.msra.mxu0 0.0
  %1558 = vmatprep.subr.mxu0 0.0
  %1559 = vmatpush2.msra.mxu0 0.0
  %1560 = vmatprep.subr.mxu0 0.0
  %1561 = vmatpush2.msra.mxu0 0.0
  %1562 = vmatprep.subr.mxu0 0.0
  %1563 = vmatpush2.msra.mxu0 0.0
  %1564 = vmatprep.subr.mxu0 0.0
  %1565 = vmatpush2.msra.mxu0 0.0
  %1566 = vmatprep.subr.mxu0 0.0
  %1567 = vmatpush2.msra.mxu0 0.0
  %1568 = vmatprep.subr.mxu0 0.0
  %1569 = vmatpush2.msra.mxu0 0.0
  %1570 = vmatprep.subr.mxu0 0.0
  %1571 = vmatpush2.msra.mxu0 0.0
  %1572 = vmatprep.subr.mxu0 0.0
  %1573 = vmatpush2.msra.mxu0 0.0
  %1574 = vmatprep.mubr.f32.mxu0 0.0
  %1575 = vmatmul.mubr.f32.gmra.mxu0 %v70
  %v1576 = vpop.f32.mrf.mxu0
  %v1577 = vadd.f32 0.0, %v1576
  %v1578 = vpop.f32.mrf.mxu0
  %1579 = vmatprep.mubr.f32.mxu0 0.0
  %1580 = vmatmul.mubr.f32.gmra.mxu0 %v73
  %v1581 = vpop.f32.mrf.mxu0
  %v1582 = vadd.f32 0.0, %v1581
  %v1583 = vpop.f32.mrf.mxu0
  %1584 = vmatprep.mubr.f32.mxu0 0.0
  %1585 = vmatmul.mubr.f32.gmra.mxu0 %v76
  %v1586 = vpop.f32.mrf.mxu0
  %v1587 = vadd.f32 0.0, %v1586
  %v1588 = vpop.f32.mrf.mxu0
  %1589 = vmatprep.mubr.f32.mxu0 0.0
  %1590 = vmatmul.mubr.f32.gmra.mxu0 %v79
  %v1591 = vpop.f32.mrf.mxu0
  %v1592 = vadd.f32 0.0, %v1591
  %v1593 = vpop.f32.mrf.mxu0
  %1594 = vdwg.mxu0
  %v1595 = vmul.f32 %v1577, %v16
  %v1596 = vmul.f32 %v1582, %v17
  %v1597 = vmul.f32 %v1587, %v18
  %v1598 = vmul.f32 %v1592, %v19
  %v1599 = vmul.f32 %v1577, %v20
  %v1600 = vmul.f32 %v1582, %v21
  %v1601 = vmul.f32 %v1587, %v22
  %v1602 = vmul.f32 %v1592, %v23
  %v1603 = vmul.f32 %v1577, %v24
  %v1604 = vmul.f32 %v1582, %v25
  %v1605 = vmul.f32 %v1587, %v26
  %v1606 = vmul.f32 %v1592, %v27
  %v1607 = vmul.f32 %v1577, %v28
  %v1608 = vmul.f32 %v1582, %v29
  %v1609 = vmul.f32 %v1587, %v30
  %v1610 = vmul.f32 %v1592, %v31
  %v1611 = vmul.f32 %v1577, %v32
  %v1612 = vmul.f32 %v1582, %v33
  %v1613 = vmul.f32 %v1587, %v34
  %v1614 = vmul.f32 %v1592, %v35
  %v1615 = vmul.f32 %v1577, %v36
  %v1616 = vmul.f32 %v1582, %v37
  %v1617 = vmul.f32 %v1587, %v38
  %v1618 = vmul.f32 %v1592, %v39
  %v1619 = vmul.f32 %v1577, %v40
  %v1620 = vmul.f32 %v1582, %v41
  %v1621 = vmul.f32 %v1587, %v42
  %v1622 = vmul.f32 %v1592, %v43
  %v1623 = vmul.f32 %v1577, %v44
  %v1624 = vmul.f32 %v1582, %v45
  %v1625 = vmul.f32 %v1587, %v46
  %v1626 = vmul.f32 %v1592, %v47
  %v1627 = vmul.f32 %v1577, %v48
  %v1628 = vmul.f32 %v1582, %v49
  %v1629 = vmul.f32 %v1587, %v50
  %v1630 = vmul.f32 %v1592, %v51
  %v1631 = vsel %vm202, %v1595, 0.0
  %v1632 = vsel %vm202, %v1596, 0.0
  %v1633 = vadd.f32 %v1631, %v1632
  %v1634 = vsel %vm202, %v1597, 0.0
  %v1635 = vadd.f32 %v1633, %v1634
  %v1636 = vsel %vm202, %v1598, 0.0
  %v1637 = vadd.f32 %v1635, %v1636
  %v1638 = vrot.slane %v1637, 4
  %v1639 = vadd.f32 %v1637, %v1638
  %v1640 = vrot.slane %v1639, 2
  %v1641 = vadd.f32 %v1639, %v1640
  %v1642 = vrot.slane %v1641, 1
  %v1643 = vadd.f32 %v1641, %v1642
  %v1644 = vsel %vm202, %v1599, 0.0
  %v1645 = vsel %vm202, %v1600, 0.0
  %v1646 = vadd.f32 %v1644, %v1645
  %v1647 = vsel %vm202, %v1601, 0.0
  %v1648 = vadd.f32 %v1646, %v1647
  %v1649 = vsel %vm202, %v1602, 0.0
  %v1650 = vadd.f32 %v1648, %v1649
  %v1651 = vrot.slane %v1650, 4
  %v1652 = vadd.f32 %v1650, %v1651
  %v1653 = vrot.slane %v1652, 2
  %v1654 = vadd.f32 %v1652, %v1653
  %v1655 = vrot.slane %v1654, 1
  %v1656 = vadd.f32 %v1654, %v1655
  %v1657 = vsel %vm202, %v1603, 0.0
  %v1658 = vsel %vm202, %v1604, 0.0
  %v1659 = vadd.f32 %v1657, %v1658
  %v1660 = vsel %vm202, %v1605, 0.0
  %v1661 = vadd.f32 %v1659, %v1660
  %v1662 = vsel %vm202, %v1606, 0.0
  %v1663 = vadd.f32 %v1661, %v1662
  %v1664 = vrot.slane %v1663, 4
  %v1665 = vadd.f32 %v1663, %v1664
  %v1666 = vrot.slane %v1665, 2
  %v1667 = vadd.f32 %v1665, %v1666
  %v1668 = vrot.slane %v1667, 1
  %v1669 = vadd.f32 %v1667, %v1668
  %v1670 = vsel %vm202, %v1607, 0.0
  %v1671 = vsel %vm202, %v1608, 0.0
  %v1672 = vadd.f32 %v1670, %v1671
  %v1673 = vsel %vm202, %v1609, 0.0
  %v1674 = vadd.f32 %v1672, %v1673
  %v1675 = vsel %vm202, %v1610, 0.0
  %v1676 = vadd.f32 %v1674, %v1675
  %v1677 = vrot.slane %v1676, 4
  %v1678 = vadd.f32 %v1676, %v1677
  %v1679 = vrot.slane %v1678, 2
  %v1680 = vadd.f32 %v1678, %v1679
  %v1681 = vrot.slane %v1680, 1
  %v1682 = vadd.f32 %v1680, %v1681
  %v1683 = vsel %vm202, %v1611, 0.0
  %v1684 = vsel %vm202, %v1612, 0.0
  %v1685 = vadd.f32 %v1683, %v1684
  %v1686 = vsel %vm202, %v1613, 0.0
  %v1687 = vadd.f32 %v1685, %v1686
  %v1688 = vsel %vm202, %v1614, 0.0
  %v1689 = vadd.f32 %v1687, %v1688
  %v1690 = vrot.slane %v1689, 4
  %v1691 = vadd.f32 %v1689, %v1690
  %v1692 = vrot.slane %v1691, 2
  %v1693 = vadd.f32 %v1691, %v1692
  %v1694 = vrot.slane %v1693, 1
  %v1695 = vadd.f32 %v1693, %v1694
  %v1696 = vsel %vm202, %v1615, 0.0
  %v1697 = vsel %vm202, %v1616, 0.0
  %v1698 = vadd.f32 %v1696, %v1697
  %v1699 = vsel %vm202, %v1617, 0.0
  %v1700 = vadd.f32 %v1698, %v1699
  %v1701 = vsel %vm202, %v1618, 0.0
  %v1702 = vadd.f32 %v1700, %v1701
  %v1703 = vrot.slane %v1702, 4
  %v1704 = vadd.f32 %v1702, %v1703
  %v1705 = vrot.slane %v1704, 2
  %v1706 = vadd.f32 %v1704, %v1705
  %v1707 = vrot.slane %v1706, 1
  %v1708 = vadd.f32 %v1706, %v1707
  %v1709 = vsel %vm202, %v1619, 0.0
  %v1710 = vsel %vm202, %v1620, 0.0
  %v1711 = vadd.f32 %v1709, %v1710
  %v1712 = vsel %vm202, %v1621, 0.0
  %v1713 = vadd.f32 %v1711, %v1712
  %v1714 = vsel %vm202, %v1622, 0.0
  %v1715 = vadd.f32 %v1713, %v1714
  %v1716 = vrot.slane %v1715, 4
  %v1717 = vadd.f32 %v1715, %v1716
  %v1718 = vrot.slane %v1717, 2
  %v1719 = vadd.f32 %v1717, %v1718
  %v1720 = vrot.slane %v1719, 1
  %v1721 = vadd.f32 %v1719, %v1720
  %v1722 = vsel %vm202, %v1623, 0.0
  %v1723 = vsel %vm202, %v1624, 0.0
  %v1724 = vadd.f32 %v1722, %v1723
  %v1725 = vsel %vm202, %v1625, 0.0
  %v1726 = vadd.f32 %v1724, %v1725
  %v1727 = vsel %vm202, %v1626, 0.0
  %v1728 = vadd.f32 %v1726, %v1727
  %v1729 = vrot.slane %v1728, 4
  %v1730 = vadd.f32 %v1728, %v1729
  %v1731 = vrot.slane %v1730, 2
  %v1732 = vadd.f32 %v1730, %v1731
  %v1733 = vrot.slane %v1732, 1
  %v1734 = vadd.f32 %v1732, %v1733
  %v1735 = vsel %vm202, %v1627, 0.0
  %v1736 = vsel %vm202, %v1628, 0.0
  %v1737 = vadd.f32 %v1735, %v1736
  %v1738 = vsel %vm202, %v1629, 0.0
  %v1739 = vadd.f32 %v1737, %v1738
  %v1740 = vsel %vm202, %v1630, 0.0
  %v1741 = vadd.f32 %v1739, %v1740
  %v1742 = vrot.slane %v1741, 4
  %v1743 = vadd.f32 %v1741, %v1742
  %v1744 = vrot.slane %v1743, 2
  %v1745 = vadd.f32 %v1743, %v1744
  %v1746 = vrot.slane %v1745, 1
  %v1747 = vadd.f32 %v1745, %v1746
  %1748 = vmatprep.subr.mxu0 0.0
  %1749 = vmatpush1.msra.mxu0 0.0
  %1750 = vmatprep.subr.mxu0 0.0
  %1751 = vmatpush1.msra.mxu0 0.0
  %1752 = vmatprep.subr.mxu0 0.0
  %1753 = vmatpush1.msra.mxu0 0.0
  %1754 = vmatprep.subr.mxu0 0.0
  %1755 = vmatpush1.msra.mxu0 0.0
  %1756 = vmatprep.subr.mxu0 0.0
  %1757 = vmatpush1.msra.mxu0 0.0
  %1758 = vmatprep.subr.mxu0 0.0
  %1759 = vmatpush1.msra.mxu0 0.0
  %1760 = vmatprep.subr.mxu0 0.0
  %1761 = vmatpush1.msra.mxu0 0.0
  %1762 = vmatprep.subr.mxu0 0.0
  %1763 = vmatpush1.msra.mxu0 0.0
  %1764 = vmatprep.subr.mxu0 0.0
  %1765 = vmatpush1.msra.mxu0 0.0
  %1766 = vmatprep.subr.mxu0 0.0
  %1767 = vmatpush1.msra.mxu0 0.0
  %1768 = vmatprep.subr.mxu0 0.0
  %1769 = vmatpush1.msra.mxu0 0.0
  %1770 = vmatprep.subr.mxu0 0.0
  %1771 = vmatpush1.msra.mxu0 0.0
  %1772 = vmatprep.subr.mxu0 0.0
  %1773 = vmatpush1.msra.mxu0 %v47
  %1774 = vmatprep.subr.mxu0 0.0
  %1775 = vmatpush1.msra.mxu0 %v46
  %1776 = vmatprep.subr.mxu0 0.0
  %1777 = vmatpush1.msra.mxu0 %v45
  %1778 = vmatprep.subr.mxu0 0.0
  %1779 = vmatpush1.msra.mxu0 %v44
  %1780 = vmatprep.subr.mxu0 0.0
  %1781 = vmatpush2.msra.mxu0 0.0
  %1782 = vmatprep.subr.mxu0 0.0
  %1783 = vmatpush2.msra.mxu0 0.0
  %1784 = vmatprep.subr.mxu0 0.0
  %1785 = vmatpush2.msra.mxu0 0.0
  %1786 = vmatprep.subr.mxu0 0.0
  %1787 = vmatpush2.msra.mxu0 0.0
  %1788 = vmatprep.subr.mxu0 0.0
  %1789 = vmatpush2.msra.mxu0 0.0
  %1790 = vmatprep.subr.mxu0 0.0
  %1791 = vmatpush2.msra.mxu0 0.0
  %1792 = vmatprep.subr.mxu0 0.0
  %1793 = vmatpush2.msra.mxu0 0.0
  %1794 = vmatprep.subr.mxu0 0.0
  %1795 = vmatpush2.msra.mxu0 0.0
  %1796 = vmatprep.subr.mxu0 0.0
  %1797 = vmatpush2.msra.mxu0 0.0
  %1798 = vmatprep.subr.mxu0 0.0
  %1799 = vmatpush2.msra.mxu0 0.0
  %1800 = vmatprep.subr.mxu0 0.0
  %1801 = vmatpush2.msra.mxu0 0.0
  %1802 = vmatprep.subr.mxu0 0.0
  %1803 = vmatpush2.msra.mxu0 0.0
  %1804 = vmatprep.subr.mxu0 0.0
  %1805 = vmatpush2.msra.mxu0 0.0
  %1806 = vmatprep.subr.mxu0 0.0
  %1807 = vmatpush2.msra.mxu0 0.0
  %1808 = vmatprep.subr.mxu0 0.0
  %1809 = vmatpush2.msra.mxu0 0.0
  %1810 = vmatprep.subr.mxu0 0.0
  %1811 = vmatpush2.msra.mxu0 0.0
  %1812 = vmatprep.mubr.f32.mxu0 0.0
  %1813 = vmatmul.mubr.f32.gmra.mxu0 %v70
  %v1814 = vpop.f32.mrf.mxu0
  %v1815 = vadd.f32 0.0, %v1814
  %v1816 = vpop.f32.mrf.mxu0
  %1817 = vmatprep.mubr.f32.mxu0 0.0
  %1818 = vmatmul.mubr.f32.gmra.mxu0 %v73
  %v1819 = vpop.f32.mrf.mxu0
  %v1820 = vadd.f32 0.0, %v1819
  %v1821 = vpop.f32.mrf.mxu0
  %1822 = vmatprep.mubr.f32.mxu0 0.0
  %1823 = vmatmul.mubr.f32.gmra.mxu0 %v76
  %v1824 = vpop.f32.mrf.mxu0
  %v1825 = vadd.f32 0.0, %v1824
  %v1826 = vpop.f32.mrf.mxu0
  %1827 = vmatprep.mubr.f32.mxu0 0.0
  %1828 = vmatmul.mubr.f32.gmra.mxu0 %v79
  %v1829 = vpop.f32.mrf.mxu0
  %v1830 = vadd.f32 0.0, %v1829
  %v1831 = vpop.f32.mrf.mxu0
  %1832 = vdwg.mxu0
  %v1833 = vmul.f32 %v1815, %v16
  %v1834 = vmul.f32 %v1820, %v17
  %v1835 = vmul.f32 %v1825, %v18
  %v1836 = vmul.f32 %v1830, %v19
  %v1837 = vmul.f32 %v1815, %v20
  %v1838 = vmul.f32 %v1820, %v21
  %v1839 = vmul.f32 %v1825, %v22
  %v1840 = vmul.f32 %v1830, %v23
  %v1841 = vmul.f32 %v1815, %v24
  %v1842 = vmul.f32 %v1820, %v25
  %v1843 = vmul.f32 %v1825, %v26
  %v1844 = vmul.f32 %v1830, %v27
  %v1845 = vmul.f32 %v1815, %v28
  %v1846 = vmul.f32 %v1820, %v29
  %v1847 = vmul.f32 %v1825, %v30
  %v1848 = vmul.f32 %v1830, %v31
  %v1849 = vmul.f32 %v1815, %v32
  %v1850 = vmul.f32 %v1820, %v33
  %v1851 = vmul.f32 %v1825, %v34
  %v1852 = vmul.f32 %v1830, %v35
  %v1853 = vmul.f32 %v1815, %v36
  %v1854 = vmul.f32 %v1820, %v37
  %v1855 = vmul.f32 %v1825, %v38
  %v1856 = vmul.f32 %v1830, %v39
  %v1857 = vmul.f32 %v1815, %v40
  %v1858 = vmul.f32 %v1820, %v41
  %v1859 = vmul.f32 %v1825, %v42
  %v1860 = vmul.f32 %v1830, %v43
  %v1861 = vmul.f32 %v1815, %v44
  %v1862 = vmul.f32 %v1820, %v45
  %v1863 = vmul.f32 %v1825, %v46
  %v1864 = vmul.f32 %v1830, %v47
  %v1865 = vmul.f32 %v1815, %v48
  %v1866 = vmul.f32 %v1820, %v49
  %v1867 = vmul.f32 %v1825, %v50
  %v1868 = vmul.f32 %v1830, %v51
  %v1869 = vsel %vm202, %v1833, 0.0
  %v1870 = vsel %vm202, %v1834, 0.0
  %v1871 = vadd.f32 %v1869, %v1870
  %v1872 = vsel %vm202, %v1835, 0.0
  %v1873 = vadd.f32 %v1871, %v1872
  %v1874 = vsel %vm202, %v1836, 0.0
  %v1875 = vadd.f32 %v1873, %v1874
  %v1876 = vrot.slane %v1875, 4
  %v1877 = vadd.f32 %v1875, %v1876
  %v1878 = vrot.slane %v1877, 2
  %v1879 = vadd.f32 %v1877, %v1878
  %v1880 = vrot.slane %v1879, 1
  %v1881 = vadd.f32 %v1879, %v1880
  %v1882 = vsel %vm202, %v1837, 0.0
  %v1883 = vsel %vm202, %v1838, 0.0
  %v1884 = vadd.f32 %v1882, %v1883
  %v1885 = vsel %vm202, %v1839, 0.0
  %v1886 = vadd.f32 %v1884, %v1885
  %v1887 = vsel %vm202, %v1840, 0.0
  %v1888 = vadd.f32 %v1886, %v1887
  %v1889 = vrot.slane %v1888, 4
  %v1890 = vadd.f32 %v1888, %v1889
  %v1891 = vrot.slane %v1890, 2
  %v1892 = vadd.f32 %v1890, %v1891
  %v1893 = vrot.slane %v1892, 1
  %v1894 = vadd.f32 %v1892, %v1893
  %v1895 = vsel %vm202, %v1841, 0.0
  %v1896 = vsel %vm202, %v1842, 0.0
  %v1897 = vadd.f32 %v1895, %v1896
  %v1898 = vsel %vm202, %v1843, 0.0
  %v1899 = vadd.f32 %v1897, %v1898
  %v1900 = vsel %vm202, %v1844, 0.0
  %v1901 = vadd.f32 %v1899, %v1900
  %v1902 = vrot.slane %v1901, 4
  %v1903 = vadd.f32 %v1901, %v1902
  %v1904 = vrot.slane %v1903, 2
  %v1905 = vadd.f32 %v1903, %v1904
  %v1906 = vrot.slane %v1905, 1
  %v1907 = vadd.f32 %v1905, %v1906
  %v1908 = vsel %vm202, %v1845, 0.0
  %v1909 = vsel %vm202, %v1846, 0.0
  %v1910 = vadd.f32 %v1908, %v1909
  %v1911 = vsel %vm202, %v1847, 0.0
  %v1912 = vadd.f32 %v1910, %v1911
  %v1913 = vsel %vm202, %v1848, 0.0
  %v1914 = vadd.f32 %v1912, %v1913
  %v1915 = vrot.slane %v1914, 4
  %v1916 = vadd.f32 %v1914, %v1915
  %v1917 = vrot.slane %v1916, 2
  %v1918 = vadd.f32 %v1916, %v1917
  %v1919 = vrot.slane %v1918, 1
  %v1920 = vadd.f32 %v1918, %v1919
  %v1921 = vsel %vm202, %v1849, 0.0
  %v1922 = vsel %vm202, %v1850, 0.0
  %v1923 = vadd.f32 %v1921, %v1922
  %v1924 = vsel %vm202, %v1851, 0.0
  %v1925 = vadd.f32 %v1923, %v1924
  %v1926 = vsel %vm202, %v1852, 0.0
  %v1927 = vadd.f32 %v1925, %v1926
  %v1928 = vrot.slane %v1927, 4
  %v1929 = vadd.f32 %v1927, %v1928
  %v1930 = vrot.slane %v1929, 2
  %v1931 = vadd.f32 %v1929, %v1930
  %v1932 = vrot.slane %v1931, 1
  %v1933 = vadd.f32 %v1931, %v1932
  %v1934 = vsel %vm202, %v1853, 0.0
  %v1935 = vsel %vm202, %v1854, 0.0
  %v1936 = vadd.f32 %v1934, %v1935
  %v1937 = vsel %vm202, %v1855, 0.0
  %v1938 = vadd.f32 %v1936, %v1937
  %v1939 = vsel %vm202, %v1856, 0.0
  %v1940 = vadd.f32 %v1938, %v1939
  %v1941 = vrot.slane %v1940, 4
  %v1942 = vadd.f32 %v1940, %v1941
  %v1943 = vrot.slane %v1942, 2
  %v1944 = vadd.f32 %v1942, %v1943
  %v1945 = vrot.slane %v1944, 1
  %v1946 = vadd.f32 %v1944, %v1945
  %v1947 = vsel %vm202, %v1857, 0.0
  %v1948 = vsel %vm202, %v1858, 0.0
  %v1949 = vadd.f32 %v1947, %v1948
  %v1950 = vsel %vm202, %v1859, 0.0
  %v1951 = vadd.f32 %v1949, %v1950
  %v1952 = vsel %vm202, %v1860, 0.0
  %v1953 = vadd.f32 %v1951, %v1952
  %v1954 = vrot.slane %v1953, 4
  %v1955 = vadd.f32 %v1953, %v1954
  %v1956 = vrot.slane %v1955, 2
  %v1957 = vadd.f32 %v1955, %v1956
  %v1958 = vrot.slane %v1957, 1
  %v1959 = vadd.f32 %v1957, %v1958
  %v1960 = vsel %vm202, %v1861, 0.0
  %v1961 = vsel %vm202, %v1862, 0.0
  %v1962 = vadd.f32 %v1960, %v1961
  %v1963 = vsel %vm202, %v1863, 0.0
  %v1964 = vadd.f32 %v1962, %v1963
  %v1965 = vsel %vm202, %v1864, 0.0
  %v1966 = vadd.f32 %v1964, %v1965
  %v1967 = vrot.slane %v1966, 4
  %v1968 = vadd.f32 %v1966, %v1967
  %v1969 = vrot.slane %v1968, 2
  %v1970 = vadd.f32 %v1968, %v1969
  %v1971 = vrot.slane %v1970, 1
  %v1972 = vadd.f32 %v1970, %v1971
  %v1973 = vsel %vm202, %v1865, 0.0
  %v1974 = vsel %vm202, %v1866, 0.0
  %v1975 = vadd.f32 %v1973, %v1974
  %v1976 = vsel %vm202, %v1867, 0.0
  %v1977 = vadd.f32 %v1975, %v1976
  %v1978 = vsel %vm202, %v1868, 0.0
  %v1979 = vadd.f32 %v1977, %v1978
  %v1980 = vrot.slane %v1979, 4
  %v1981 = vadd.f32 %v1979, %v1980
  %v1982 = vrot.slane %v1981, 2
  %v1983 = vadd.f32 %v1981, %v1982
  %v1984 = vrot.slane %v1983, 1
  %v1985 = vadd.f32 %v1983, %v1984
  %1986 = vmatprep.subr.mxu0 0.0
  %1987 = vmatpush1.msra.mxu0 0.0
  %1988 = vmatprep.subr.mxu0 0.0
  %1989 = vmatpush1.msra.mxu0 0.0
  %1990 = vmatprep.subr.mxu0 0.0
  %1991 = vmatpush1.msra.mxu0 0.0
  %1992 = vmatprep.subr.mxu0 0.0
  %1993 = vmatpush1.msra.mxu0 0.0
  %1994 = vmatprep.subr.mxu0 0.0
  %1995 = vmatpush1.msra.mxu0 0.0
  %1996 = vmatprep.subr.mxu0 0.0
  %1997 = vmatpush1.msra.mxu0 0.0
  %1998 = vmatprep.subr.mxu0 0.0
  %1999 = vmatpush1.msra.mxu0 0.0
  %2000 = vmatprep.subr.mxu0 0.0
  %2001 = vmatpush1.msra.mxu0 0.0
  %2002 = vmatprep.subr.mxu0 0.0
  %2003 = vmatpush1.msra.mxu0 0.0
  %2004 = vmatprep.subr.mxu0 0.0
  %2005 = vmatpush1.msra.mxu0 0.0
  %2006 = vmatprep.subr.mxu0 0.0
  %2007 = vmatpush1.msra.mxu0 0.0
  %2008 = vmatprep.subr.mxu0 0.0
  %2009 = vmatpush1.msra.mxu0 0.0
  %2010 = vmatprep.subr.mxu0 0.0
  %2011 = vmatpush1.msra.mxu0 %v51
  %2012 = vmatprep.subr.mxu0 0.0
  %2013 = vmatpush1.msra.mxu0 %v50
  %2014 = vmatprep.subr.mxu0 0.0
  %2015 = vmatpush1.msra.mxu0 %v49
  %2016 = vmatprep.subr.mxu0 0.0
  %2017 = vmatpush1.msra.mxu0 %v48
  %2018 = vmatprep.subr.mxu0 0.0
  %2019 = vmatpush2.msra.mxu0 0.0
  %2020 = vmatprep.subr.mxu0 0.0
  %2021 = vmatpush2.msra.mxu0 0.0
  %2022 = vmatprep.subr.mxu0 0.0
  %2023 = vmatpush2.msra.mxu0 0.0
  %2024 = vmatprep.subr.mxu0 0.0
  %2025 = vmatpush2.msra.mxu0 0.0
  %2026 = vmatprep.subr.mxu0 0.0
  %2027 = vmatpush2.msra.mxu0 0.0
  %2028 = vmatprep.subr.mxu0 0.0
  %2029 = vmatpush2.msra.mxu0 0.0
  %2030 = vmatprep.subr.mxu0 0.0
  %2031 = vmatpush2.msra.mxu0 0.0
  %2032 = vmatprep.subr.mxu0 0.0
  %2033 = vmatpush2.msra.mxu0 0.0
  %2034 = vmatprep.subr.mxu0 0.0
  %2035 = vmatpush2.msra.mxu0 0.0
  %2036 = vmatprep.subr.mxu0 0.0
  %2037 = vmatpush2.msra.mxu0 0.0
  %2038 = vmatprep.subr.mxu0 0.0
  %2039 = vmatpush2.msra.mxu0 0.0
  %2040 = vmatprep.subr.mxu0 0.0
  %2041 = vmatpush2.msra.mxu0 0.0
  %2042 = vmatprep.subr.mxu0 0.0
  %2043 = vmatpush2.msra.mxu0 0.0
  %2044 = vmatprep.subr.mxu0 0.0
  %2045 = vmatpush2.msra.mxu0 0.0
  %2046 = vmatprep.subr.mxu0 0.0
  %2047 = vmatpush2.msra.mxu0 0.0
  %2048 = vmatprep.subr.mxu0 0.0
  %2049 = vmatpush2.msra.mxu0 0.0
  %2050 = vmatprep.mubr.f32.mxu0 0.0
  %2051 = vmatmul.mubr.f32.gmra.mxu0 %v70
  %v2052 = vpop.f32.mrf.mxu0
  %v2053 = vadd.f32 0.0, %v2052
  %v2054 = vpop.f32.mrf.mxu0
  %2055 = vmatprep.mubr.f32.mxu0 0.0
  %2056 = vmatmul.mubr.f32.gmra.mxu0 %v73
  %v2057 = vpop.f32.mrf.mxu0
  %v2058 = vadd.f32 0.0, %v2057
  %v2059 = vpop.f32.mrf.mxu0
  %2060 = vmatprep.mubr.f32.mxu0 0.0
  %2061 = vmatmul.mubr.f32.gmra.mxu0 %v76
  %v2062 = vpop.f32.mrf.mxu0
  %v2063 = vadd.f32 0.0, %v2062
  %v2064 = vpop.f32.mrf.mxu0
  %2065 = vmatprep.mubr.f32.mxu0 0.0
  %2066 = vmatmul.mubr.f32.gmra.mxu0 %v79
  %v2067 = vpop.f32.mrf.mxu0
  %v2068 = vadd.f32 0.0, %v2067
  %v2069 = vpop.f32.mrf.mxu0
  %2070 = vdwg.mxu0
  %v2071 = vmul.f32 %v2053, %v16
  %v2072 = vmul.f32 %v2058, %v17
  %v2073 = vmul.f32 %v2063, %v18
  %v2074 = vmul.f32 %v2068, %v19
  %v2075 = vmul.f32 %v2053, %v20
  %v2076 = vmul.f32 %v2058, %v21
  %v2077 = vmul.f32 %v2063, %v22
  %v2078 = vmul.f32 %v2068, %v23
  %v2079 = vmul.f32 %v2053, %v24
  %v2080 = vmul.f32 %v2058, %v25
  %v2081 = vmul.f32 %v2063, %v26
  %v2082 = vmul.f32 %v2068, %v27
  %v2083 = vmul.f32 %v2053, %v28
  %v2084 = vmul.f32 %v2058, %v29
  %v2085 = vmul.f32 %v2063, %v30
  %v2086 = vmul.f32 %v2068, %v31
  %v2087 = vmul.f32 %v2053, %v32
  %v2088 = vmul.f32 %v2058, %v33
  %v2089 = vmul.f32 %v2063, %v34
  %v2090 = vmul.f32 %v2068, %v35
  %v2091 = vmul.f32 %v2053, %v36
  %v2092 = vmul.f32 %v2058, %v37
  %v2093 = vmul.f32 %v2063, %v38
  %v2094 = vmul.f32 %v2068, %v39
  %v2095 = vmul.f32 %v2053, %v40
  %v2096 = vmul.f32 %v2058, %v41
  %v2097 = vmul.f32 %v2063, %v42
  %v2098 = vmul.f32 %v2068, %v43
  %v2099 = vmul.f32 %v2053, %v44
  %v2100 = vmul.f32 %v2058, %v45
  %v2101 = vmul.f32 %v2063, %v46
  %v2102 = vmul.f32 %v2068, %v47
  %v2103 = vmul.f32 %v2053, %v48
  %v2104 = vmul.f32 %v2058, %v49
  %v2105 = vmul.f32 %v2063, %v50
  %v2106 = vmul.f32 %v2068, %v51
  %v2107 = vsel %vm202, %v2071, 0.0
  %v2108 = vsel %vm202, %v2072, 0.0
  %v2109 = vadd.f32 %v2107, %v2108
  %v2110 = vsel %vm202, %v2073, 0.0
  %v2111 = vadd.f32 %v2109, %v2110
  %v2112 = vsel %vm202, %v2074, 0.0
  %v2113 = vadd.f32 %v2111, %v2112
  %v2114 = vrot.slane %v2113, 4
  %v2115 = vadd.f32 %v2113, %v2114
  %v2116 = vrot.slane %v2115, 2
  %v2117 = vadd.f32 %v2115, %v2116
  %v2118 = vrot.slane %v2117, 1
  %v2119 = vadd.f32 %v2117, %v2118
  %v2120 = vsel %vm202, %v2075, 0.0
  %v2121 = vsel %vm202, %v2076, 0.0
  %v2122 = vadd.f32 %v2120, %v2121
  %v2123 = vsel %vm202, %v2077, 0.0
  %v2124 = vadd.f32 %v2122, %v2123
  %v2125 = vsel %vm202, %v2078, 0.0
  %v2126 = vadd.f32 %v2124, %v2125
  %v2127 = vrot.slane %v2126, 4
  %v2128 = vadd.f32 %v2126, %v2127
  %v2129 = vrot.slane %v2128, 2
  %v2130 = vadd.f32 %v2128, %v2129
  %v2131 = vrot.slane %v2130, 1
  %v2132 = vadd.f32 %v2130, %v2131
  %v2133 = vsel %vm202, %v2079, 0.0
  %v2134 = vsel %vm202, %v2080, 0.0
  %v2135 = vadd.f32 %v2133, %v2134
  %v2136 = vsel %vm202, %v2081, 0.0
  %v2137 = vadd.f32 %v2135, %v2136
  %v2138 = vsel %vm202, %v2082, 0.0
  %v2139 = vadd.f32 %v2137, %v2138
  %v2140 = vrot.slane %v2139, 4
  %v2141 = vadd.f32 %v2139, %v2140
  %v2142 = vrot.slane %v2141, 2
  %v2143 = vadd.f32 %v2141, %v2142
  %v2144 = vrot.slane %v2143, 1
  %v2145 = vadd.f32 %v2143, %v2144
  %v2146 = vsel %vm202, %v2083, 0.0
  %v2147 = vsel %vm202, %v2084, 0.0
  %v2148 = vadd.f32 %v2146, %v2147
  %v2149 = vsel %vm202, %v2085, 0.0
  %v2150 = vadd.f32 %v2148, %v2149
  %v2151 = vsel %vm202, %v2086, 0.0
  %v2152 = vadd.f32 %v2150, %v2151
  %v2153 = vrot.slane %v2152, 4
  %v2154 = vadd.f32 %v2152, %v2153
  %v2155 = vrot.slane %v2154, 2
  %v2156 = vadd.f32 %v2154, %v2155
  %v2157 = vrot.slane %v2156, 1
  %v2158 = vadd.f32 %v2156, %v2157
  %v2159 = vsel %vm202, %v2087, 0.0
  %v2160 = vsel %vm202, %v2088, 0.0
  %v2161 = vadd.f32 %v2159, %v2160
  %v2162 = vsel %vm202, %v2089, 0.0
  %v2163 = vadd.f32 %v2161, %v2162
  %v2164 = vsel %vm202, %v2090, 0.0
  %v2165 = vadd.f32 %v2163, %v2164
  %v2166 = vrot.slane %v2165, 4
  %v2167 = vadd.f32 %v2165, %v2166
  %v2168 = vrot.slane %v2167, 2
  %v2169 = vadd.f32 %v2167, %v2168
  %v2170 = vrot.slane %v2169, 1
  %v2171 = vadd.f32 %v2169, %v2170
  %v2172 = vsel %vm202, %v2091, 0.0
  %v2173 = vsel %vm202, %v2092, 0.0
  %v2174 = vadd.f32 %v2172, %v2173
  %v2175 = vsel %vm202, %v2093, 0.0
  %v2176 = vadd.f32 %v2174, %v2175
  %v2177 = vsel %vm202, %v2094, 0.0
  %v2178 = vadd.f32 %v2176, %v2177
  %v2179 = vrot.slane %v2178, 4
  %v2180 = vadd.f32 %v2178, %v2179
  %v2181 = vrot.slane %v2180, 2
  %v2182 = vadd.f32 %v2180, %v2181
  %v2183 = vrot.slane %v2182, 1
  %v2184 = vadd.f32 %v2182, %v2183
  %v2185 = vsel %vm202, %v2095, 0.0
  %v2186 = vsel %vm202, %v2096, 0.0
  %v2187 = vadd.f32 %v2185, %v2186
  %v2188 = vsel %vm202, %v2097, 0.0
  %v2189 = vadd.f32 %v2187, %v2188
  %v2190 = vsel %vm202, %v2098, 0.0
  %v2191 = vadd.f32 %v2189, %v2190
  %v2192 = vrot.slane %v2191, 4
  %v2193 = vadd.f32 %v2191, %v2192
  %v2194 = vrot.slane %v2193, 2
  %v2195 = vadd.f32 %v2193, %v2194
  %v2196 = vrot.slane %v2195, 1
  %v2197 = vadd.f32 %v2195, %v2196
  %v2198 = vsel %vm202, %v2099, 0.0
  %v2199 = vsel %vm202, %v2100, 0.0
  %v2200 = vadd.f32 %v2198, %v2199
  %v2201 = vsel %vm202, %v2101, 0.0
  %v2202 = vadd.f32 %v2200, %v2201
  %v2203 = vsel %vm202, %v2102, 0.0
  %v2204 = vadd.f32 %v2202, %v2203
  %v2205 = vrot.slane %v2204, 4
  %v2206 = vadd.f32 %v2204, %v2205
  %v2207 = vrot.slane %v2206, 2
  %v2208 = vadd.f32 %v2206, %v2207
  %v2209 = vrot.slane %v2208, 1
  %v2210 = vadd.f32 %v2208, %v2209
  %v2211 = vsel %vm202, %v2103, 0.0
  %v2212 = vsel %vm202, %v2104, 0.0
  %v2213 = vadd.f32 %v2211, %v2212
  %v2214 = vsel %vm202, %v2105, 0.0
  %v2215 = vadd.f32 %v2213, %v2214
  %v2216 = vsel %vm202, %v2106, 0.0
  %v2217 = vadd.f32 %v2215, %v2216
  %v2218 = vrot.slane %v2217, 4
  %v2219 = vadd.f32 %v2217, %v2218
  %v2220 = vrot.slane %v2219, 2
  %v2221 = vadd.f32 %v2219, %v2220
  %v2222 = vrot.slane %v2221, 1
  %v2223 = vadd.f32 %v2221, %v2222
  %v2224 = vsub.f32 0.0, %v215
  %v2225 = vsub.f32 0.0, %v228
  %v2226 = vsub.f32 0.0, %v241
  %v2227 = vsub.f32 0.0, %v254
  %v2228 = vsub.f32 0.0, %v267
  %v2229 = vsub.f32 0.0, %v280
  %v2230 = vsub.f32 0.0, %v293
  %v2231 = vsub.f32 0.0, %v306
  %v2232 = vsub.f32 0.0, %v319
  %v2233 = vsub.f32 0.0, %v453
  %v2234 = vsub.f32 0.0, %v466
  %v2235 = vsub.f32 0.0, %v479
  %v2236 = vsub.f32 0.0, %v492
  %v2237 = vsub.f32 0.0, %v505
  %v2238 = vsub.f32 0.0, %v518
  %v2239 = vsub.f32 0.0, %v531
  %v2240 = vsub.f32 0.0, %v544
  %v2241 = vsub.f32 0.0, %v557
  %v2242 = vsub.f32 0.0, %v691
  %v2243 = vsub.f32 0.0, %v704
  %v2244 = vsub.f32 0.0, %v717
  %v2245 = vsub.f32 0.0, %v730
  %v2246 = vsub.f32 0.0, %v743
  %v2247 = vsub.f32 0.0, %v756
  %v2248 = vsub.f32 0.0, %v769
  %v2249 = vsub.f32 0.0, %v782
  %v2250 = vsub.f32 0.0, %v795
  %v2251 = vsub.f32 0.0, %v929
  %v2252 = vsub.f32 0.0, %v942
  %v2253 = vsub.f32 0.0, %v955
  %v2254 = vsub.f32 0.0, %v968
  %v2255 = vsub.f32 0.0, %v981
  %v2256 = vsub.f32 0.0, %v994
  %v2257 = vsub.f32 0.0, %v1007
  %v2258 = vsub.f32 0.0, %v1020
  %v2259 = vsub.f32 0.0, %v1033
  %v2260 = vsub.f32 0.0, %v1167
  %v2261 = vsub.f32 0.0, %v1180
  %v2262 = vsub.f32 0.0, %v1193
  %v2263 = vsub.f32 0.0, %v1206
  %v2264 = vsub.f32 0.0, %v1219
  %v2265 = vsub.f32 0.0, %v1232
  %v2266 = vsub.f32 0.0, %v1245
  %v2267 = vsub.f32 0.0, %v1258
  %v2268 = vsub.f32 0.0, %v1271
  %v2269 = vsub.f32 0.0, %v1405
  %v2270 = vsub.f32 0.0, %v1418
  %v2271 = vsub.f32 0.0, %v1431
  %v2272 = vsub.f32 0.0, %v1444
  %v2273 = vsub.f32 0.0, %v1457
  %v2274 = vsub.f32 0.0, %v1470
  %v2275 = vsub.f32 0.0, %v1483
  %v2276 = vsub.f32 0.0, %v1496
  %v2277 = vsub.f32 0.0, %v1509
  %v2278 = vsub.f32 0.0, %v1643
  %v2279 = vsub.f32 0.0, %v1656
  %v2280 = vsub.f32 0.0, %v1669
  %v2281 = vsub.f32 0.0, %v1682
  %v2282 = vsub.f32 0.0, %v1695
  %v2283 = vsub.f32 0.0, %v1708
  %v2284 = vsub.f32 0.0, %v1721
  %v2285 = vsub.f32 0.0, %v1734
  %v2286 = vsub.f32 0.0, %v1747
  %v2287 = vsub.f32 0.0, %v1881
  %v2288 = vsub.f32 0.0, %v1894
  %v2289 = vsub.f32 0.0, %v1907
  %v2290 = vsub.f32 0.0, %v1920
  %v2291 = vsub.f32 0.0, %v1933
  %v2292 = vsub.f32 0.0, %v1946
  %v2293 = vsub.f32 0.0, %v1959
  %v2294 = vsub.f32 0.0, %v1972
  %v2295 = vsub.f32 0.0, %v1985
  %v2296 = vsub.f32 0.0, %v2119
  %v2297 = vsub.f32 0.0, %v2132
  %v2298 = vsub.f32 0.0, %v2145
  %v2299 = vsub.f32 0.0, %v2158
  %v2300 = vsub.f32 0.0, %v2171
  %v2301 = vsub.f32 0.0, %v2184
  %v2302 = vsub.f32 0.0, %v2197
  %v2303 = vsub.f32 0.0, %v2210
  %v2304 = vsub.f32 0.0, %v2223
  %v2305 = vmul.f32 %v2224, 1.442695
  %v2306 = vpow.pop %v2305
  %v2307 = vmul.f32 %v2225, 1.442695
  %v2308 = vpow.pop %v2307
  %v2309 = vmul.f32 %v2226, 1.442695
  %v2310 = vpow.pop %v2309
  %v2311 = vmul.f32 %v2227, 1.442695
  %v2312 = vpow.pop %v2311
  %v2313 = vmul.f32 %v2228, 1.442695
  %v2314 = vpow.pop %v2313
  %v2315 = vmul.f32 %v2229, 1.442695
  %v2316 = vpow.pop %v2315
  %v2317 = vmul.f32 %v2230, 1.442695
  %v2318 = vpow.pop %v2317
  %v2319 = vmul.f32 %v2231, 1.442695
  %v2320 = vpow.pop %v2319
  %v2321 = vmul.f32 %v2232, 1.442695
  %v2322 = vpow.pop %v2321
  %v2323 = vmul.f32 %v2233, 1.442695
  %v2324 = vpow.pop %v2323
  %v2325 = vmul.f32 %v2234, 1.442695
  %v2326 = vpow.pop %v2325
  %v2327 = vmul.f32 %v2235, 1.442695
  %v2328 = vpow.pop %v2327
  %v2329 = vmul.f32 %v2236, 1.442695
  %v2330 = vpow.pop %v2329
  %v2331 = vmul.f32 %v2237, 1.442695
  %v2332 = vpow.pop %v2331
  %v2333 = vmul.f32 %v2238, 1.442695
  %v2334 = vpow.pop %v2333
  %v2335 = vmul.f32 %v2239, 1.442695
  %v2336 = vpow.pop %v2335
  %v2337 = vmul.f32 %v2240, 1.442695
  %v2338 = vpow.pop %v2337
  %v2339 = vmul.f32 %v2241, 1.442695
  %v2340 = vpow.pop %v2339
  %v2341 = vmul.f32 %v2242, 1.442695
  %v2342 = vpow.pop %v2341
  %v2343 = vmul.f32 %v2243, 1.442695
  %v2344 = vpow.pop %v2343
  %v2345 = vmul.f32 %v2244, 1.442695
  %v2346 = vpow.pop %v2345
  %v2347 = vmul.f32 %v2245, 1.442695
  %v2348 = vpow.pop %v2347
  %v2349 = vmul.f32 %v2246, 1.442695
  %v2350 = vpow.pop %v2349
  %v2351 = vmul.f32 %v2247, 1.442695
  %v2352 = vpow.pop %v2351
  %v2353 = vmul.f32 %v2248, 1.442695
  %v2354 = vpow.pop %v2353
  %v2355 = vmul.f32 %v2249, 1.442695
  %v2356 = vpow.pop %v2355
  %v2357 = vmul.f32 %v2250, 1.442695
  %v2358 = vpow.pop %v2357
  %v2359 = vmul.f32 %v2251, 1.442695
  %v2360 = vpow.pop %v2359
  %v2361 = vmul.f32 %v2252, 1.442695
  %v2362 = vpow.pop %v2361
  %v2363 = vmul.f32 %v2253, 1.442695
  %v2364 = vpow.pop %v2363
  %v2365 = vmul.f32 %v2254, 1.442695
  %v2366 = vpow.pop %v2365
  %v2367 = vmul.f32 %v2255, 1.442695
  %v2368 = vpow.pop %v2367
  %v2369 = vmul.f32 %v2256, 1.442695
  %v2370 = vpow.pop %v2369
  %v2371 = vmul.f32 %v2257, 1.442695
  %v2372 = vpow.pop %v2371
  %v2373 = vmul.f32 %v2258, 1.442695
  %v2374 = vpow.pop %v2373
  %v2375 = vmul.f32 %v2259, 1.442695
  %v2376 = vpow.pop %v2375
  %v2377 = vmul.f32 %v2260, 1.442695
  %v2378 = vpow.pop %v2377
  %v2379 = vmul.f32 %v2261, 1.442695
  %v2380 = vpow.pop %v2379
  %v2381 = vmul.f32 %v2262, 1.442695
  %v2382 = vpow.pop %v2381
  %v2383 = vmul.f32 %v2263, 1.442695
  %v2384 = vpow.pop %v2383
  %v2385 = vmul.f32 %v2264, 1.442695
  %v2386 = vpow.pop %v2385
  %v2387 = vmul.f32 %v2265, 1.442695
  %v2388 = vpow.pop %v2387
  %v2389 = vmul.f32 %v2266, 1.442695
  %v2390 = vpow.pop %v2389
  %v2391 = vmul.f32 %v2267, 1.442695
  %v2392 = vpow.pop %v2391
  %v2393 = vmul.f32 %v2268, 1.442695
  %v2394 = vpow.pop %v2393
  %v2395 = vmul.f32 %v2269, 1.442695
  %v2396 = vpow.pop %v2395
  %v2397 = vmul.f32 %v2270, 1.442695
  %v2398 = vpow.pop %v2397
  %v2399 = vmul.f32 %v2271, 1.442695
  %v2400 = vpow.pop %v2399
  %v2401 = vmul.f32 %v2272, 1.442695
  %v2402 = vpow.pop %v2401
  %v2403 = vmul.f32 %v2273, 1.442695
  %v2404 = vpow.pop %v2403
  %v2405 = vmul.f32 %v2274, 1.442695
  %v2406 = vpow.pop %v2405
  %v2407 = vmul.f32 %v2275, 1.442695
  %v2408 = vpow.pop %v2407
  %v2409 = vmul.f32 %v2276, 1.442695
  %v2410 = vpow.pop %v2409
  %v2411 = vmul.f32 %v2277, 1.442695
  %v2412 = vpow.pop %v2411
  %v2413 = vmul.f32 %v2278, 1.442695
  %v2414 = vpow.pop %v2413
  %v2415 = vmul.f32 %v2279, 1.442695
  %v2416 = vpow.pop %v2415
  %v2417 = vmul.f32 %v2280, 1.442695
  %v2418 = vpow.pop %v2417
  %v2419 = vmul.f32 %v2281, 1.442695
  %v2420 = vpow.pop %v2419
  %v2421 = vmul.f32 %v2282, 1.442695
  %v2422 = vpow.pop %v2421
  %v2423 = vmul.f32 %v2283, 1.442695
  %v2424 = vpow.pop %v2423
  %v2425 = vmul.f32 %v2284, 1.442695
  %v2426 = vpow.pop %v2425
  %v2427 = vmul.f32 %v2285, 1.442695
  %v2428 = vpow.pop %v2427
  %v2429 = vmul.f32 %v2286, 1.442695
  %v2430 = vpow.pop %v2429
  %v2431 = vmul.f32 %v2287, 1.442695
  %v2432 = vpow.pop %v2431
  %v2433 = vmul.f32 %v2288, 1.442695
  %v2434 = vpow.pop %v2433
  %v2435 = vmul.f32 %v2289, 1.442695
  %v2436 = vpow.pop %v2435
  %v2437 = vmul.f32 %v2290, 1.442695
  %v2438 = vpow.pop %v2437
  %v2439 = vmul.f32 %v2291, 1.442695
  %v2440 = vpow.pop %v2439
  %v2441 = vmul.f32 %v2292, 1.442695
  %v2442 = vpow.pop %v2441
  %v2443 = vmul.f32 %v2293, 1.442695
  %v2444 = vpow.pop %v2443
  %v2445 = vmul.f32 %v2294, 1.442695
  %v2446 = vpow.pop %v2445
  %v2447 = vmul.f32 %v2295, 1.442695
  %v2448 = vpow.pop %v2447
  %v2449 = vmul.f32 %v2296, 1.442695
  %v2450 = vpow.pop %v2449
  %v2451 = vmul.f32 %v2297, 1.442695
  %v2452 = vpow.pop %v2451
  %v2453 = vmul.f32 %v2298, 1.442695
  %v2454 = vpow.pop %v2453
  %v2455 = vmul.f32 %v2299, 1.442695
  %v2456 = vpow.pop %v2455
  %v2457 = vmul.f32 %v2300, 1.442695
  %v2458 = vpow.pop %v2457
  %v2459 = vmul.f32 %v2301, 1.442695
  %v2460 = vpow.pop %v2459
  %v2461 = vmul.f32 %v2302, 1.442695
  %v2462 = vpow.pop %v2461
  %v2463 = vmul.f32 %v2303, 1.442695
  %v2464 = vpow.pop %v2463
  %v2465 = vmul.f32 %v2304, 1.442695
  %v2466 = vpow.pop %v2465
  %v2467 = vadd.f32 %v2306, 1.0
  %v2468 = vadd.f32 %v2308, 1.0
  %v2469 = vadd.f32 %v2310, 1.0
  %v2470 = vadd.f32 %v2312, 1.0
  %v2471 = vadd.f32 %v2314, 1.0
  %v2472 = vadd.f32 %v2316, 1.0
  %v2473 = vadd.f32 %v2318, 1.0
  %v2474 = vadd.f32 %v2320, 1.0
  %v2475 = vadd.f32 %v2322, 1.0
  %v2476 = vadd.f32 %v2324, 1.0
  %v2477 = vadd.f32 %v2326, 1.0
  %v2478 = vadd.f32 %v2328, 1.0
  %v2479 = vadd.f32 %v2330, 1.0
  %v2480 = vadd.f32 %v2332, 1.0
  %v2481 = vadd.f32 %v2334, 1.0
  %v2482 = vadd.f32 %v2336, 1.0
  %v2483 = vadd.f32 %v2338, 1.0
  %v2484 = vadd.f32 %v2340, 1.0
  %v2485 = vadd.f32 %v2342, 1.0
  %v2486 = vadd.f32 %v2344, 1.0
  %v2487 = vadd.f32 %v2346, 1.0
  %v2488 = vadd.f32 %v2348, 1.0
  %v2489 = vadd.f32 %v2350, 1.0
  %v2490 = vadd.f32 %v2352, 1.0
  %v2491 = vadd.f32 %v2354, 1.0
  %v2492 = vadd.f32 %v2356, 1.0
  %v2493 = vadd.f32 %v2358, 1.0
  %v2494 = vadd.f32 %v2360, 1.0
  %v2495 = vadd.f32 %v2362, 1.0
  %v2496 = vadd.f32 %v2364, 1.0
  %v2497 = vadd.f32 %v2366, 1.0
  %v2498 = vadd.f32 %v2368, 1.0
  %v2499 = vadd.f32 %v2370, 1.0
  %v2500 = vadd.f32 %v2372, 1.0
  %v2501 = vadd.f32 %v2374, 1.0
  %v2502 = vadd.f32 %v2376, 1.0
  %v2503 = vadd.f32 %v2378, 1.0
  %v2504 = vadd.f32 %v2380, 1.0
  %v2505 = vadd.f32 %v2382, 1.0
  %v2506 = vadd.f32 %v2384, 1.0
  %v2507 = vadd.f32 %v2386, 1.0
  %v2508 = vadd.f32 %v2388, 1.0
  %v2509 = vadd.f32 %v2390, 1.0
  %v2510 = vadd.f32 %v2392, 1.0
  %v2511 = vadd.f32 %v2394, 1.0
  %v2512 = vadd.f32 %v2396, 1.0
  %v2513 = vadd.f32 %v2398, 1.0
  %v2514 = vadd.f32 %v2400, 1.0
  %v2515 = vadd.f32 %v2402, 1.0
  %v2516 = vadd.f32 %v2404, 1.0
  %v2517 = vadd.f32 %v2406, 1.0
  %v2518 = vadd.f32 %v2408, 1.0
  %v2519 = vadd.f32 %v2410, 1.0
  %v2520 = vadd.f32 %v2412, 1.0
  %v2521 = vadd.f32 %v2414, 1.0
  %v2522 = vadd.f32 %v2416, 1.0
  %v2523 = vadd.f32 %v2418, 1.0
  %v2524 = vadd.f32 %v2420, 1.0
  %v2525 = vadd.f32 %v2422, 1.0
  %v2526 = vadd.f32 %v2424, 1.0
  %v2527 = vadd.f32 %v2426, 1.0
  %v2528 = vadd.f32 %v2428, 1.0
  %v2529 = vadd.f32 %v2430, 1.0
  %v2530 = vadd.f32 %v2432, 1.0
  %v2531 = vadd.f32 %v2434, 1.0
  %v2532 = vadd.f32 %v2436, 1.0
  %v2533 = vadd.f32 %v2438, 1.0
  %v2534 = vadd.f32 %v2440, 1.0
  %v2535 = vadd.f32 %v2442, 1.0
  %v2536 = vadd.f32 %v2444, 1.0
  %v2537 = vadd.f32 %v2446, 1.0
  %v2538 = vadd.f32 %v2448, 1.0
  %v2539 = vadd.f32 %v2450, 1.0
  %v2540 = vadd.f32 %v2452, 1.0
  %v2541 = vadd.f32 %v2454, 1.0
  %v2542 = vadd.f32 %v2456, 1.0
  %v2543 = vadd.f32 %v2458, 1.0
  %v2544 = vadd.f32 %v2460, 1.0
  %v2545 = vadd.f32 %v2462, 1.0
  %v2546 = vadd.f32 %v2464, 1.0
  %v2547 = vadd.f32 %v2466, 1.0
  %v2548 = vrcp.pop %v2467
  %v2549 = vmul.f32 1.0, %v2548
  %v2550 = vrcp.pop %v2468
  %v2551 = vmul.f32 1.0, %v2550
  %v2552 = vrcp.pop %v2469
  %v2553 = vmul.f32 1.0, %v2552
  %v2554 = vrcp.pop %v2470
  %v2555 = vmul.f32 1.0, %v2554
  %v2556 = vrcp.pop %v2471
  %v2557 = vmul.f32 1.0, %v2556
  %v2558 = vrcp.pop %v2472
  %v2559 = vmul.f32 1.0, %v2558
  %v2560 = vrcp.pop %v2473
  %v2561 = vmul.f32 1.0, %v2560
  %v2562 = vrcp.pop %v2474
  %v2563 = vmul.f32 1.0, %v2562
  %v2564 = vrcp.pop %v2475
  %v2565 = vmul.f32 1.0, %v2564
  %v2566 = vrcp.pop %v2476
  %v2567 = vmul.f32 1.0, %v2566
  %v2568 = vrcp.pop %v2477
  %v2569 = vmul.f32 1.0, %v2568
  %v2570 = vrcp.pop %v2478
  %v2571 = vmul.f32 1.0, %v2570
  %v2572 = vrcp.pop %v2479
  %v2573 = vmul.f32 1.0, %v2572
  %v2574 = vrcp.pop %v2480
  %v2575 = vmul.f32 1.0, %v2574
  %v2576 = vrcp.pop %v2481
  %v2577 = vmul.f32 1.0, %v2576
  %v2578 = vrcp.pop %v2482
  %v2579 = vmul.f32 1.0, %v2578
  %v2580 = vrcp.pop %v2483
  %v2581 = vmul.f32 1.0, %v2580
  %v2582 = vrcp.pop %v2484
  %v2583 = vmul.f32 1.0, %v2582
  %v2584 = vrcp.pop %v2485
  %v2585 = vmul.f32 1.0, %v2584
  %v2586 = vrcp.pop %v2486
  %v2587 = vmul.f32 1.0, %v2586
  %v2588 = vrcp.pop %v2487
  %v2589 = vmul.f32 1.0, %v2588
  %v2590 = vrcp.pop %v2488
  %v2591 = vmul.f32 1.0, %v2590
  %v2592 = vrcp.pop %v2489
  %v2593 = vmul.f32 1.0, %v2592
  %v2594 = vrcp.pop %v2490
  %v2595 = vmul.f32 1.0, %v2594
  %v2596 = vrcp.pop %v2491
  %v2597 = vmul.f32 1.0, %v2596
  %v2598 = vrcp.pop %v2492
  %v2599 = vmul.f32 1.0, %v2598
  %v2600 = vrcp.pop %v2493
  %v2601 = vmul.f32 1.0, %v2600
  %v2602 = vrcp.pop %v2494
  %v2603 = vmul.f32 1.0, %v2602
  %v2604 = vrcp.pop %v2495
  %v2605 = vmul.f32 1.0, %v2604
  %v2606 = vrcp.pop %v2496
  %v2607 = vmul.f32 1.0, %v2606
  %v2608 = vrcp.pop %v2497
  %v2609 = vmul.f32 1.0, %v2608
  %v2610 = vrcp.pop %v2498
  %v2611 = vmul.f32 1.0, %v2610
  %v2612 = vrcp.pop %v2499
  %v2613 = vmul.f32 1.0, %v2612
  %v2614 = vrcp.pop %v2500
  %v2615 = vmul.f32 1.0, %v2614
  %v2616 = vrcp.pop %v2501
  %v2617 = vmul.f32 1.0, %v2616
  %v2618 = vrcp.pop %v2502
  %v2619 = vmul.f32 1.0, %v2618
  %v2620 = vrcp.pop %v2503
  %v2621 = vmul.f32 1.0, %v2620
  %v2622 = vrcp.pop %v2504
  %v2623 = vmul.f32 1.0, %v2622
  %v2624 = vrcp.pop %v2505
  %v2625 = vmul.f32 1.0, %v2624
  %v2626 = vrcp.pop %v2506
  %v2627 = vmul.f32 1.0, %v2626
  %v2628 = vrcp.pop %v2507
  %v2629 = vmul.f32 1.0, %v2628
  %v2630 = vrcp.pop %v2508
  %v2631 = vmul.f32 1.0, %v2630
  %v2632 = vrcp.pop %v2509
  %v2633 = vmul.f32 1.0, %v2632
  %v2634 = vrcp.pop %v2510
  %v2635 = vmul.f32 1.0, %v2634
  %v2636 = vrcp.pop %v2511
  %v2637 = vmul.f32 1.0, %v2636
  %v2638 = vrcp.pop %v2512
  %v2639 = vmul.f32 1.0, %v2638
  %v2640 = vrcp.pop %v2513
  %v2641 = vmul.f32 1.0, %v2640
  %v2642 = vrcp.pop %v2514
  %v2643 = vmul.f32 1.0, %v2642
  %v2644 = vrcp.pop %v2515
  %v2645 = vmul.f32 1.0, %v2644
  %v2646 = vrcp.pop %v2516
  %v2647 = vmul.f32 1.0, %v2646
  %v2648 = vrcp.pop %v2517
  %v2649 = vmul.f32 1.0, %v2648
  %v2650 = vrcp.pop %v2518
  %v2651 = vmul.f32 1.0, %v2650
  %v2652 = vrcp.pop %v2519
  %v2653 = vmul.f32 1.0, %v2652
  %v2654 = vrcp.pop %v2520
  %v2655 = vmul.f32 1.0, %v2654
  %v2656 = vrcp.pop %v2521
  %v2657 = vmul.f32 1.0, %v2656
  %v2658 = vrcp.pop %v2522
  %v2659 = vmul.f32 1.0, %v2658
  %v2660 = vrcp.pop %v2523
  %v2661 = vmul.f32 1.0, %v2660
  %v2662 = vrcp.pop %v2524
  %v2663 = vmul.f32 1.0, %v2662
  %v2664 = vrcp.pop %v2525
  %v2665 = vmul.f32 1.0, %v2664
  %v2666 = vrcp.pop %v2526
  %v2667 = vmul.f32 1.0, %v2666
  %v2668 = vrcp.pop %v2527
  %v2669 = vmul.f32 1.0, %v2668
  %v2670 = vrcp.pop %v2528
  %v2671 = vmul.f32 1.0, %v2670
  %v2672 = vrcp.pop %v2529
  %v2673 = vmul.f32 1.0, %v2672
  %v2674 = vrcp.pop %v2530
  %v2675 = vmul.f32 1.0, %v2674
  %v2676 = vrcp.pop %v2531
  %v2677 = vmul.f32 1.0, %v2676
  %v2678 = vrcp.pop %v2532
  %v2679 = vmul.f32 1.0, %v2678
  %v2680 = vrcp.pop %v2533
  %v2681 = vmul.f32 1.0, %v2680
  %v2682 = vrcp.pop %v2534
  %v2683 = vmul.f32 1.0, %v2682
  %v2684 = vrcp.pop %v2535
  %v2685 = vmul.f32 1.0, %v2684
  %v2686 = vrcp.pop %v2536
  %v2687 = vmul.f32 1.0, %v2686
  %v2688 = vrcp.pop %v2537
  %v2689 = vmul.f32 1.0, %v2688
  %v2690 = vrcp.pop %v2538
  %v2691 = vmul.f32 1.0, %v2690
  %v2692 = vrcp.pop %v2539
  %v2693 = vmul.f32 1.0, %v2692
  %v2694 = vrcp.pop %v2540
  %v2695 = vmul.f32 1.0, %v2694
  %v2696 = vrcp.pop %v2541
  %v2697 = vmul.f32 1.0, %v2696
  %v2698 = vrcp.pop %v2542
  %v2699 = vmul.f32 1.0, %v2698
  %v2700 = vrcp.pop %v2543
  %v2701 = vmul.f32 1.0, %v2700
  %v2702 = vrcp.pop %v2544
  %v2703 = vmul.f32 1.0, %v2702
  %v2704 = vrcp.pop %v2545
  %v2705 = vmul.f32 1.0, %v2704
  %v2706 = vrcp.pop %v2546
  %v2707 = vmul.f32 1.0, %v2706
  %v2708 = vrcp.pop %v2547
  %v2709 = vmul.f32 1.0, %v2708
  %v2791 = vrot.slane %v2551, 7
  %vm2792 = vcmask 1041409
  %v2793 = vsel %vm2792, %v2791, %v2549
  %v2794 = vrot.slane %v2553, 6
  %vm2795 = vcmask 1042434
  %v2796 = vsel %vm2795, %v2794, %v2793
  %v2797 = vrot.slane %v2555, 5
  %vm2798 = vcmask 1043459
  %v2799 = vsel %vm2798, %v2797, %v2796
  %v2800 = vrot.slane %v2557, 4
  %vm2801 = vcmask 1044484
  %v2802 = vsel %vm2801, %v2800, %v2799
  %v2803 = vrot.slane %v2559, 3
  %vm2804 = vcmask 1045509
  %v2805 = vsel %vm2804, %v2803, %v2802
  %v2806 = vrot.slane %v2561, 2
  %vm2807 = vcmask 1046534
  %v2808 = vsel %vm2807, %v2806, %v2805
  %v2809 = vrot.slane %v2563, 1
  %vm2810 = vcmask 1047559
  %v2811 = vsel %vm2810, %v2809, %v2808
  %v2812 = vrot.slane %v2569, 7
  %v2813 = vsel %vm2792, %v2812, %v2567
  %v2814 = vrot.slane %v2571, 6
  %v2815 = vsel %vm2795, %v2814, %v2813
  %v2816 = vrot.slane %v2573, 5
  %v2817 = vsel %vm2798, %v2816, %v2815
  %v2818 = vrot.slane %v2575, 4
  %v2819 = vsel %vm2801, %v2818, %v2817
  %v2820 = vrot.slane %v2577, 3
  %v2821 = vsel %vm2804, %v2820, %v2819
  %v2822 = vrot.slane %v2579, 2
  %v2823 = vsel %vm2807, %v2822, %v2821
  %v2824 = vrot.slane %v2581, 1
  %v2825 = vsel %vm2810, %v2824, %v2823
  %v2826 = vrot.slane %v2587, 7
  %v2827 = vsel %vm2792, %v2826, %v2585
  %v2828 = vrot.slane %v2589, 6
  %v2829 = vsel %vm2795, %v2828, %v2827
  %v2830 = vrot.slane %v2591, 5
  %v2831 = vsel %vm2798, %v2830, %v2829
  %v2832 = vrot.slane %v2593, 4
  %v2833 = vsel %vm2801, %v2832, %v2831
  %v2834 = vrot.slane %v2595, 3
  %v2835 = vsel %vm2804, %v2834, %v2833
  %v2836 = vrot.slane %v2597, 2
  %v2837 = vsel %vm2807, %v2836, %v2835
  %v2838 = vrot.slane %v2599, 1
  %v2839 = vsel %vm2810, %v2838, %v2837
  %v2840 = vrot.slane %v2605, 7
  %v2841 = vsel %vm2792, %v2840, %v2603
  %v2842 = vrot.slane %v2607, 6
  %v2843 = vsel %vm2795, %v2842, %v2841
  %v2844 = vrot.slane %v2609, 5
  %v2845 = vsel %vm2798, %v2844, %v2843
  %v2846 = vrot.slane %v2611, 4
  %v2847 = vsel %vm2801, %v2846, %v2845
  %v2848 = vrot.slane %v2613, 3
  %v2849 = vsel %vm2804, %v2848, %v2847
  %v2850 = vrot.slane %v2615, 2
  %v2851 = vsel %vm2807, %v2850, %v2849
  %v2852 = vrot.slane %v2617, 1
  %v2853 = vsel %vm2810, %v2852, %v2851
  %v2854 = vrot.slane %v2623, 7
  %v2855 = vsel %vm2792, %v2854, %v2621
  %v2856 = vrot.slane %v2625, 6
  %v2857 = vsel %vm2795, %v2856, %v2855
  %v2858 = vrot.slane %v2627, 5
  %v2859 = vsel %vm2798, %v2858, %v2857
  %v2860 = vrot.slane %v2629, 4
  %v2861 = vsel %vm2801, %v2860, %v2859
  %v2862 = vrot.slane %v2631, 3
  %v2863 = vsel %vm2804, %v2862, %v2861
  %v2864 = vrot.slane %v2633, 2
  %v2865 = vsel %vm2807, %v2864, %v2863
  %v2866 = vrot.slane %v2635, 1
  %v2867 = vsel %vm2810, %v2866, %v2865
  %v2868 = vrot.slane %v2641, 7
  %v2869 = vsel %vm2792, %v2868, %v2639
  %v2870 = vrot.slane %v2643, 6
  %v2871 = vsel %vm2795, %v2870, %v2869
  %v2872 = vrot.slane %v2645, 5
  %v2873 = vsel %vm2798, %v2872, %v2871
  %v2874 = vrot.slane %v2647, 4
  %v2875 = vsel %vm2801, %v2874, %v2873
  %v2876 = vrot.slane %v2649, 3
  %v2877 = vsel %vm2804, %v2876, %v2875
  %v2878 = vrot.slane %v2651, 2
  %v2879 = vsel %vm2807, %v2878, %v2877
  %v2880 = vrot.slane %v2653, 1
  %v2881 = vsel %vm2810, %v2880, %v2879
  %v2882 = vrot.slane %v2659, 7
  %v2883 = vsel %vm2792, %v2882, %v2657
  %v2884 = vrot.slane %v2661, 6
  %v2885 = vsel %vm2795, %v2884, %v2883
  %v2886 = vrot.slane %v2663, 5
  %v2887 = vsel %vm2798, %v2886, %v2885
  %v2888 = vrot.slane %v2665, 4
  %v2889 = vsel %vm2801, %v2888, %v2887
  %v2890 = vrot.slane %v2667, 3
  %v2891 = vsel %vm2804, %v2890, %v2889
  %v2892 = vrot.slane %v2669, 2
  %v2893 = vsel %vm2807, %v2892, %v2891
  %v2894 = vrot.slane %v2671, 1
  %v2895 = vsel %vm2810, %v2894, %v2893
  %v2896 = vrot.slane %v2677, 7
  %v2897 = vsel %vm2792, %v2896, %v2675
  %v2898 = vrot.slane %v2679, 6
  %v2899 = vsel %vm2795, %v2898, %v2897
  %v2900 = vrot.slane %v2681, 5
  %v2901 = vsel %vm2798, %v2900, %v2899
  %v2902 = vrot.slane %v2683, 4
  %v2903 = vsel %vm2801, %v2902, %v2901
  %v2904 = vrot.slane %v2685, 3
  %v2905 = vsel %vm2804, %v2904, %v2903
  %v2906 = vrot.slane %v2687, 2
  %v2907 = vsel %vm2807, %v2906, %v2905
  %v2908 = vrot.slane %v2689, 1
  %v2909 = vsel %vm2810, %v2908, %v2907
  %v2910 = vrot.slane %v2695, 7
  %v2911 = vsel %vm2792, %v2910, %v2693
  %v2912 = vrot.slane %v2697, 6
  %v2913 = vsel %vm2795, %v2912, %v2911
  %v2914 = vrot.slane %v2699, 5
  %v2915 = vsel %vm2798, %v2914, %v2913
  %v2916 = vrot.slane %v2701, 4
  %v2917 = vsel %vm2801, %v2916, %v2915
  %v2918 = vrot.slane %v2703, 3
  %v2919 = vsel %vm2804, %v2918, %v2917
  %v2920 = vrot.slane %v2705, 2
  %v2921 = vsel %vm2807, %v2920, %v2919
  %v2922 = vrot.slane %v2707, 1
  %v2923 = vsel %vm2810, %v2922, %v2921
  %v2942 = vsel %vm202, %v2811, 0.0
  %vm2943 = vcmask 8192
  %v2944 = vsel %vm2943, %v2565, 0.0
  %v2945 = vadd.f32 %v2942, %v2944
  %v2946 = vrot.slane %v2945, 4
  %v2947 = vadd.f32 %v2945, %v2946
  %v2948 = vrot.slane %v2947, 2
  %v2949 = vadd.f32 %v2947, %v2948
  %v2950 = vrot.slane %v2949, 1
  %v2951 = vadd.f32 %v2949, %v2950
  %v2952 = vsel %vm202, %v2825, 0.0
  %v2953 = vsel %vm2943, %v2583, 0.0
  %v2954 = vadd.f32 %v2952, %v2953
  %v2955 = vrot.slane %v2954, 4
  %v2956 = vadd.f32 %v2954, %v2955
  %v2957 = vrot.slane %v2956, 2
  %v2958 = vadd.f32 %v2956, %v2957
  %v2959 = vrot.slane %v2958, 1
  %v2960 = vadd.f32 %v2958, %v2959
  %v2961 = vsel %vm202, %v2839, 0.0
  %v2962 = vsel %vm2943, %v2601, 0.0
  %v2963 = vadd.f32 %v2961, %v2962
  %v2964 = vrot.slane %v2963, 4
  %v2965 = vadd.f32 %v2963, %v2964
  %v2966 = vrot.slane %v2965, 2
  %v2967 = vadd.f32 %v2965, %v2966
  %v2968 = vrot.slane %v2967, 1
  %v2969 = vadd.f32 %v2967, %v2968
  %v2970 = vsel %vm202, %v2853, 0.0
  %v2971 = vsel %vm2943, %v2619, 0.0
  %v2972 = vadd.f32 %v2970, %v2971
  %v2973 = vrot.slane %v2972, 4
  %v2974 = vadd.f32 %v2972, %v2973
  %v2975 = vrot.slane %v2974, 2
  %v2976 = vadd.f32 %v2974, %v2975
  %v2977 = vrot.slane %v2976, 1
  %v2978 = vadd.f32 %v2976, %v2977
  %v2979 = vsel %vm202, %v2867, 0.0
  %v2980 = vsel %vm2943, %v2637, 0.0
  %v2981 = vadd.f32 %v2979, %v2980
  %v2982 = vrot.slane %v2981, 4
  %v2983 = vadd.f32 %v2981, %v2982
  %v2984 = vrot.slane %v2983, 2
  %v2985 = vadd.f32 %v2983, %v2984
  %v2986 = vrot.slane %v2985, 1
  %v2987 = vadd.f32 %v2985, %v2986
  %v2988 = vsel %vm202, %v2881, 0.0
  %v2989 = vsel %vm2943, %v2655, 0.0
  %v2990 = vadd.f32 %v2988, %v2989
  %v2991 = vrot.slane %v2990, 4
  %v2992 = vadd.f32 %v2990, %v2991
  %v2993 = vrot.slane %v2992, 2
  %v2994 = vadd.f32 %v2992, %v2993
  %v2995 = vrot.slane %v2994, 1
  %v2996 = vadd.f32 %v2994, %v2995
  %v2997 = vsel %vm202, %v2895, 0.0
  %v2998 = vsel %vm2943, %v2673, 0.0
  %v2999 = vadd.f32 %v2997, %v2998
  %v3000 = vrot.slane %v2999, 4
  %v3001 = vadd.f32 %v2999, %v3000
  %v3002 = vrot.slane %v3001, 2
  %v3003 = vadd.f32 %v3001, %v3002
  %v3004 = vrot.slane %v3003, 1
  %v3005 = vadd.f32 %v3003, %v3004
  %v3006 = vsel %vm202, %v2909, 0.0
  %v3007 = vsel %vm2943, %v2691, 0.0
  %v3008 = vadd.f32 %v3006, %v3007
  %v3009 = vrot.slane %v3008, 4
  %v3010 = vadd.f32 %v3008, %v3009
  %v3011 = vrot.slane %v3010, 2
  %v3012 = vadd.f32 %v3010, %v3011
  %v3013 = vrot.slane %v3012, 1
  %v3014 = vadd.f32 %v3012, %v3013
  %v3015 = vsel %vm202, %v2923, 0.0
  %v3016 = vsel %vm2943, %v2709, 0.0
  %v3017 = vadd.f32 %v3015, %v3016
  %v3018 = vrot.slane %v3017, 4
  %v3019 = vadd.f32 %v3017, %v3018
  %v3020 = vrot.slane %v3019, 2
  %v3021 = vadd.f32 %v3019, %v3020
  %v3022 = vrot.slane %v3021, 1
  %v3023 = vadd.f32 %v3021, %v3022
  %v3024 = vrcp.pop %v2951
  %v3025 = vmul.f32 %v2549, %v3024
  %v3026 = vrcp.pop %v2960
  %v3027 = vmul.f32 %v2551, %v3026
  %v3028 = vrcp.pop %v2969
  %v3029 = vmul.f32 %v2553, %v3028
  %v3030 = vrcp.pop %v2978
  %v3031 = vmul.f32 %v2555, %v3030
  %v3032 = vrcp.pop %v2987
  %v3033 = vmul.f32 %v2557, %v3032
  %v3034 = vrcp.pop %v2996
  %v3035 = vmul.f32 %v2559, %v3034
  %v3036 = vrcp.pop %v3005
  %v3037 = vmul.f32 %v2561, %v3036
  %v3038 = vrcp.pop %v3014
  %v3039 = vmul.f32 %v2563, %v3038
  %v3040 = vrcp.pop %v3023
  %v3041 = vmul.f32 %v2565, %v3040
  %v3042 = vmul.f32 %v2567, %v3024
  %v3043 = vmul.f32 %v2569, %v3026
  %v3044 = vmul.f32 %v2571, %v3028
  %v3045 = vmul.f32 %v2573, %v3030
  %v3046 = vmul.f32 %v2575, %v3032
  %v3047 = vmul.f32 %v2577, %v3034
  %v3048 = vmul.f32 %v2579, %v3036
  %v3049 = vmul.f32 %v2581, %v3038
  %v3050 = vmul.f32 %v2583, %v3040
  %v3051 = vmul.f32 %v2585, %v3024
  %v3052 = vmul.f32 %v2587, %v3026
  %v3053 = vmul.f32 %v2589, %v3028
  %v3054 = vmul.f32 %v2591, %v3030
  %v3055 = vmul.f32 %v2593, %v3032
  %v3056 = vmul.f32 %v2595, %v3034
  %v3057 = vmul.f32 %v2597, %v3036
  %v3058 = vmul.f32 %v2599, %v3038
  %v3059 = vmul.f32 %v2601, %v3040
  %v3060 = vmul.f32 %v2603, %v3024
  %v3061 = vmul.f32 %v2605, %v3026
  %v3062 = vmul.f32 %v2607, %v3028
  %v3063 = vmul.f32 %v2609, %v3030
  %v3064 = vmul.f32 %v2611, %v3032
  %v3065 = vmul.f32 %v2613, %v3034
  %v3066 = vmul.f32 %v2615, %v3036
  %v3067 = vmul.f32 %v2617, %v3038
  %v3068 = vmul.f32 %v2619, %v3040
  %v3069 = vmul.f32 %v2621, %v3024
  %v3070 = vmul.f32 %v2623, %v3026
  %v3071 = vmul.f32 %v2625, %v3028
  %v3072 = vmul.f32 %v2627, %v3030
  %v3073 = vmul.f32 %v2629, %v3032
  %v3074 = vmul.f32 %v2631, %v3034
  %v3075 = vmul.f32 %v2633, %v3036
  %v3076 = vmul.f32 %v2635, %v3038
  %v3077 = vmul.f32 %v2637, %v3040
  %v3078 = vmul.f32 %v2639, %v3024
  %v3079 = vmul.f32 %v2641, %v3026
  %v3080 = vmul.f32 %v2643, %v3028
  %v3081 = vmul.f32 %v2645, %v3030
  %v3082 = vmul.f32 %v2647, %v3032
  %v3083 = vmul.f32 %v2649, %v3034
  %v3084 = vmul.f32 %v2651, %v3036
  %v3085 = vmul.f32 %v2653, %v3038
  %v3086 = vmul.f32 %v2655, %v3040
  %v3087 = vmul.f32 %v2657, %v3024
  %v3088 = vmul.f32 %v2659, %v3026
  %v3089 = vmul.f32 %v2661, %v3028
  %v3090 = vmul.f32 %v2663, %v3030
  %v3091 = vmul.f32 %v2665, %v3032
  %v3092 = vmul.f32 %v2667, %v3034
  %v3093 = vmul.f32 %v2669, %v3036
  %v3094 = vmul.f32 %v2671, %v3038
  %v3095 = vmul.f32 %v2673, %v3040
  %v3096 = vmul.f32 %v2675, %v3024
  %v3097 = vmul.f32 %v2677, %v3026
  %v3098 = vmul.f32 %v2679, %v3028
  %v3099 = vmul.f32 %v2681, %v3030
  %v3100 = vmul.f32 %v2683, %v3032
  %v3101 = vmul.f32 %v2685, %v3034
  %v3102 = vmul.f32 %v2687, %v3036
  %v3103 = vmul.f32 %v2689, %v3038
  %v3104 = vmul.f32 %v2691, %v3040
  %v3105 = vmul.f32 %v2693, %v3024
  %v3106 = vmul.f32 %v2695, %v3026
  %v3107 = vmul.f32 %v2697, %v3028
  %v3108 = vmul.f32 %v2699, %v3030
  %v3109 = vmul.f32 %v2701, %v3032
  %v3110 = vmul.f32 %v2703, %v3034
  %v3111 = vmul.f32 %v2705, %v3036
  %v3112 = vmul.f32 %v2707, %v3038
  %v3113 = vmul.f32 %v2709, %v3040
  %vm3114 = vcmp.eq.s32.totalorder %v66, 0
  %vm3115 = vcmp.eq.s32.totalorder %v67, 0
  %vm3116 = vcmp.eq.s32.totalorder %v66, 1
  %vm3117 = vcmp.eq.s32.totalorder %v67, 1
  %vm3118 = vcmp.eq.s32.totalorder %v66, 2
  %vm3119 = vcmp.eq.s32.totalorder %v67, 2
  %vm3120 = vcmp.eq.s32.totalorder %v66, 3
  %vm3121 = vcmp.eq.s32.totalorder %v67, 3
  %vm3122 = vcmp.eq.s32.totalorder %v66, 4
  %vm3123 = vcmp.eq.s32.totalorder %v67, 4
  %vm3124 = vcmp.eq.s32.totalorder %v66, 5
  %vm3125 = vcmp.eq.s32.totalorder %v67, 5
  %vm3126 = vcmp.eq.s32.totalorder %v66, 6
  %vm3127 = vcmp.eq.s32.totalorder %v67, 6
  %vm3128 = vcmp.eq.s32.totalorder %v66, 7
  %vm3129 = vcmp.eq.s32.totalorder %v67, 7
  %vm3130 = vcmp.eq.s32.totalorder %v66, 8
  %vm3131 = vcmp.eq.s32.totalorder %v67, 8
  %v3132 = vsel %vm3114, 1.0, 0.0
  %v3133 = vsel %vm3115, 1.0, 0.0
  %v3134 = vsel %vm3116, 1.0, 0.0
  %v3135 = vsel %vm3117, 1.0, 0.0
  %v3136 = vsel %vm3118, 1.0, 0.0
  %v3137 = vsel %vm3119, 1.0, 0.0
  %v3138 = vsel %vm3120, 1.0, 0.0
  %v3139 = vsel %vm3121, 1.0, 0.0
  %v3140 = vsel %vm3122, 1.0, 0.0
  %v3141 = vsel %vm3123, 1.0, 0.0
  %v3142 = vsel %vm3124, 1.0, 0.0
  %v3143 = vsel %vm3125, 1.0, 0.0
  %v3144 = vsel %vm3126, 1.0, 0.0
  %v3145 = vsel %vm3127, 1.0, 0.0
  %v3146 = vsel %vm3128, 1.0, 0.0
  %v3147 = vsel %vm3129, 1.0, 0.0
  %v3148 = vsel %vm3130, 1.0, 0.0
  %v3149 = vsel %vm3131, 1.0, 0.0
  %v3150 = vmul.f32 %v3025, 0.9
  %v3151 = vmul.f32 %v3027, 0.9
  %v3152 = vmul.f32 %v3029, 0.9
  %v3153 = vmul.f32 %v3031, 0.9
  %v3154 = vmul.f32 %v3033, 0.9
  %v3155 = vmul.f32 %v3035, 0.9
  %v3156 = vmul.f32 %v3037, 0.9
  %v3157 = vmul.f32 %v3039, 0.9
  %v3158 = vmul.f32 %v3041, 0.9
  %v3159 = vmul.f32 %v3042, 0.9
  %v3160 = vmul.f32 %v3043, 0.9
  %v3161 = vmul.f32 %v3044, 0.9
  %v3162 = vmul.f32 %v3045, 0.9
  %v3163 = vmul.f32 %v3046, 0.9
  %v3164 = vmul.f32 %v3047, 0.9
  %v3165 = vmul.f32 %v3048, 0.9
  %v3166 = vmul.f32 %v3049, 0.9
  %v3167 = vmul.f32 %v3050, 0.9
  %v3168 = vmul.f32 %v3051, 0.9
  %v3169 = vmul.f32 %v3052, 0.9
  %v3170 = vmul.f32 %v3053, 0.9
  %v3171 = vmul.f32 %v3054, 0.9
  %v3172 = vmul.f32 %v3055, 0.9
  %v3173 = vmul.f32 %v3056, 0.9
  %v3174 = vmul.f32 %v3057, 0.9
  %v3175 = vmul.f32 %v3058, 0.9
  %v3176 = vmul.f32 %v3059, 0.9
  %v3177 = vmul.f32 %v3060, 0.9
  %v3178 = vmul.f32 %v3061, 0.9
  %v3179 = vmul.f32 %v3062, 0.9
  %v3180 = vmul.f32 %v3063, 0.9
  %v3181 = vmul.f32 %v3064, 0.9
  %v3182 = vmul.f32 %v3065, 0.9
  %v3183 = vmul.f32 %v3066, 0.9
  %v3184 = vmul.f32 %v3067, 0.9
  %v3185 = vmul.f32 %v3068, 0.9
  %v3186 = vmul.f32 %v3069, 0.9
  %v3187 = vmul.f32 %v3070, 0.9
  %v3188 = vmul.f32 %v3071, 0.9
  %v3189 = vmul.f32 %v3072, 0.9
  %v3190 = vmul.f32 %v3073, 0.9
  %v3191 = vmul.f32 %v3074, 0.9
  %v3192 = vmul.f32 %v3075, 0.9
  %v3193 = vmul.f32 %v3076, 0.9
  %v3194 = vmul.f32 %v3077, 0.9
  %v3195 = vmul.f32 %v3078, 0.9
  %v3196 = vmul.f32 %v3079, 0.9
  %v3197 = vmul.f32 %v3080, 0.9
  %v3198 = vmul.f32 %v3081, 0.9
  %v3199 = vmul.f32 %v3082, 0.9
  %v3200 = vmul.f32 %v3083, 0.9
  %v3201 = vmul.f32 %v3084, 0.9
  %v3202 = vmul.f32 %v3085, 0.9
  %v3203 = vmul.f32 %v3086, 0.9
  %v3204 = vmul.f32 %v3087, 0.9
  %v3205 = vmul.f32 %v3088, 0.9
  %v3206 = vmul.f32 %v3089, 0.9
  %v3207 = vmul.f32 %v3090, 0.9
  %v3208 = vmul.f32 %v3091, 0.9
  %v3209 = vmul.f32 %v3092, 0.9
  %v3210 = vmul.f32 %v3093, 0.9
  %v3211 = vmul.f32 %v3094, 0.9
  %v3212 = vmul.f32 %v3095, 0.9
  %v3213 = vmul.f32 %v3096, 0.9
  %v3214 = vmul.f32 %v3097, 0.9
  %v3215 = vmul.f32 %v3098, 0.9
  %v3216 = vmul.f32 %v3099, 0.9
  %v3217 = vmul.f32 %v3100, 0.9
  %v3218 = vmul.f32 %v3101, 0.9
  %v3219 = vmul.f32 %v3102, 0.9
  %v3220 = vmul.f32 %v3103, 0.9
  %v3221 = vmul.f32 %v3104, 0.9
  %v3222 = vmul.f32 %v3105, 0.9
  %v3223 = vmul.f32 %v3106, 0.9
  %v3224 = vmul.f32 %v3107, 0.9
  %v3225 = vmul.f32 %v3108, 0.9
  %v3226 = vmul.f32 %v3109, 0.9
  %v3227 = vmul.f32 %v3110, 0.9
  %v3228 = vmul.f32 %v3111, 0.9
  %v3229 = vmul.f32 %v3112, 0.9
  %v3230 = vmul.f32 %v3113, 0.9
  %v3312 = vrot.slane %v3151, 7
  %v3313 = vsel %vm2792, %v3312, %v3150
  %v3314 = vrot.slane %v3152, 6
  %v3315 = vsel %vm2795, %v3314, %v3313
  %v3316 = vrot.slane %v3153, 5
  %v3317 = vsel %vm2798, %v3316, %v3315
  %v3318 = vrot.slane %v3154, 4
  %v3319 = vsel %vm2801, %v3318, %v3317
  %v3320 = vrot.slane %v3155, 3
  %v3321 = vsel %vm2804, %v3320, %v3319
  %v3322 = vrot.slane %v3156, 2
  %v3323 = vsel %vm2807, %v3322, %v3321
  %v3324 = vrot.slane %v3157, 1
  %v3325 = vsel %vm2810, %v3324, %v3323
  %v3326 = vrot.slane %v3160, 7
  %v3327 = vsel %vm2792, %v3326, %v3159
  %v3328 = vrot.slane %v3161, 6
  %v3329 = vsel %vm2795, %v3328, %v3327
  %v3330 = vrot.slane %v3162, 5
  %v3331 = vsel %vm2798, %v3330, %v3329
  %v3332 = vrot.slane %v3163, 4
  %v3333 = vsel %vm2801, %v3332, %v3331
  %v3334 = vrot.slane %v3164, 3
  %v3335 = vsel %vm2804, %v3334, %v3333
  %v3336 = vrot.slane %v3165, 2
  %v3337 = vsel %vm2807, %v3336, %v3335
  %v3338 = vrot.slane %v3166, 1
  %v3339 = vsel %vm2810, %v3338, %v3337
  %v3340 = vrot.slane %v3169, 7
  %v3341 = vsel %vm2792, %v3340, %v3168
  %v3342 = vrot.slane %v3170, 6
  %v3343 = vsel %vm2795, %v3342, %v3341
  %v3344 = vrot.slane %v3171, 5
  %v3345 = vsel %vm2798, %v3344, %v3343
  %v3346 = vrot.slane %v3172, 4
  %v3347 = vsel %vm2801, %v3346, %v3345
  %v3348 = vrot.slane %v3173, 3
  %v3349 = vsel %vm2804, %v3348, %v3347
  %v3350 = vrot.slane %v3174, 2
  %v3351 = vsel %vm2807, %v3350, %v3349
  %v3352 = vrot.slane %v3175, 1
  %v3353 = vsel %vm2810, %v3352, %v3351
  %v3354 = vrot.slane %v3178, 7
  %v3355 = vsel %vm2792, %v3354, %v3177
  %v3356 = vrot.slane %v3179, 6
  %v3357 = vsel %vm2795, %v3356, %v3355
  %v3358 = vrot.slane %v3180, 5
  %v3359 = vsel %vm2798, %v3358, %v3357
  %v3360 = vrot.slane %v3181, 4
  %v3361 = vsel %vm2801, %v3360, %v3359
  %v3362 = vrot.slane %v3182, 3
  %v3363 = vsel %vm2804, %v3362, %v3361
  %v3364 = vrot.slane %v3183, 2
  %v3365 = vsel %vm2807, %v3364, %v3363
  %v3366 = vrot.slane %v3184, 1
  %v3367 = vsel %vm2810, %v3366, %v3365
  %v3368 = vrot.slane %v3187, 7
  %v3369 = vsel %vm2792, %v3368, %v3186
  %v3370 = vrot.slane %v3188, 6
  %v3371 = vsel %vm2795, %v3370, %v3369
  %v3372 = vrot.slane %v3189, 5
  %v3373 = vsel %vm2798, %v3372, %v3371
  %v3374 = vrot.slane %v3190, 4
  %v3375 = vsel %vm2801, %v3374, %v3373
  %v3376 = vrot.slane %v3191, 3
  %v3377 = vsel %vm2804, %v3376, %v3375
  %v3378 = vrot.slane %v3192, 2
  %v3379 = vsel %vm2807, %v3378, %v3377
  %v3380 = vrot.slane %v3193, 1
  %v3381 = vsel %vm2810, %v3380, %v3379
  %v3382 = vrot.slane %v3196, 7
  %v3383 = vsel %vm2792, %v3382, %v3195
  %v3384 = vrot.slane %v3197, 6
  %v3385 = vsel %vm2795, %v3384, %v3383
  %v3386 = vrot.slane %v3198, 5
  %v3387 = vsel %vm2798, %v3386, %v3385
  %v3388 = vrot.slane %v3199, 4
  %v3389 = vsel %vm2801, %v3388, %v3387
  %v3390 = vrot.slane %v3200, 3
  %v3391 = vsel %vm2804, %v3390, %v3389
  %v3392 = vrot.slane %v3201, 2
  %v3393 = vsel %vm2807, %v3392, %v3391
  %v3394 = vrot.slane %v3202, 1
  %v3395 = vsel %vm2810, %v3394, %v3393
  %v3396 = vrot.slane %v3205, 7
  %v3397 = vsel %vm2792, %v3396, %v3204
  %v3398 = vrot.slane %v3206, 6
  %v3399 = vsel %vm2795, %v3398, %v3397
  %v3400 = vrot.slane %v3207, 5
  %v3401 = vsel %vm2798, %v3400, %v3399
  %v3402 = vrot.slane %v3208, 4
  %v3403 = vsel %vm2801, %v3402, %v3401
  %v3404 = vrot.slane %v3209, 3
  %v3405 = vsel %vm2804, %v3404, %v3403
  %v3406 = vrot.slane %v3210, 2
  %v3407 = vsel %vm2807, %v3406, %v3405
  %v3408 = vrot.slane %v3211, 1
  %v3409 = vsel %vm2810, %v3408, %v3407
  %v3410 = vrot.slane %v3214, 7
  %v3411 = vsel %vm2792, %v3410, %v3213
  %v3412 = vrot.slane %v3215, 6
  %v3413 = vsel %vm2795, %v3412, %v3411
  %v3414 = vrot.slane %v3216, 5
  %v3415 = vsel %vm2798, %v3414, %v3413
  %v3416 = vrot.slane %v3217, 4
  %v3417 = vsel %vm2801, %v3416, %v3415
  %v3418 = vrot.slane %v3218, 3
  %v3419 = vsel %vm2804, %v3418, %v3417
  %v3420 = vrot.slane %v3219, 2
  %v3421 = vsel %vm2807, %v3420, %v3419
  %v3422 = vrot.slane %v3220, 1
  %v3423 = vsel %vm2810, %v3422, %v3421
  %v3424 = vrot.slane %v3223, 7
  %v3425 = vsel %vm2792, %v3424, %v3222
  %v3426 = vrot.slane %v3224, 6
  %v3427 = vsel %vm2795, %v3426, %v3425
  %v3428 = vrot.slane %v3225, 5
  %v3429 = vsel %vm2798, %v3428, %v3427
  %v3430 = vrot.slane %v3226, 4
  %v3431 = vsel %vm2801, %v3430, %v3429
  %v3432 = vrot.slane %v3227, 3
  %v3433 = vsel %vm2804, %v3432, %v3431
  %v3434 = vrot.slane %v3228, 2
  %v3435 = vsel %vm2807, %v3434, %v3433
  %v3436 = vrot.slane %v3229, 1
  %v3437 = vsel %vm2810, %v3436, %v3435
  %v3456 = vsub.f32 %v3132, %v3325
  %v3457 = vsub.f32 %v3133, %v3158
  %v3458 = vsub.f32 %v3134, %v3339
  %v3459 = vsub.f32 %v3135, %v3167
  %v3460 = vsub.f32 %v3136, %v3353
  %v3461 = vsub.f32 %v3137, %v3176
  %v3462 = vsub.f32 %v3138, %v3367
  %v3463 = vsub.f32 %v3139, %v3185
  %v3464 = vsub.f32 %v3140, %v3381
  %v3465 = vsub.f32 %v3141, %v3194
  %v3466 = vsub.f32 %v3142, %v3395
  %v3467 = vsub.f32 %v3143, %v3203
  %v3468 = vsub.f32 %v3144, %v3409
  %v3469 = vsub.f32 %v3145, %v3212
  %v3470 = vsub.f32 %v3146, %v3423
  %v3471 = vsub.f32 %v3147, %v3221
  %v3472 = vsub.f32 %v3148, %v3437
  %v3473 = vsub.f32 %v3149, %v3230
  %v3474 = vrcp.pop %v3456
  %v3475 = vmul.f32 1.0, %v3474
  %v3476 = vlaneseq
  %v3477 = vshrl.u32 %v3476, 7
  %v3478 = vsub.s32 0, %v3477
  %v3479 = vrot.slane %v3475, %v3478
  %v3480 = vmul.f32 %v3456, %v3479
  %v3481 = vmul.f32 %v3457, %v3479
  %v3482 = vsel 1, 0.0, %v3456
  %v3483 = vsel 0, 0.0, %v3458
  %v3484 = vsel 0, 0.0, %v3460
  %v3485 = vsel 0, 0.0, %v3462
  %v3486 = vsel 0, 0.0, %v3464
  %v3487 = vsel 0, 0.0, %v3466
  %v3488 = vsel 0, 0.0, %v3468
  %v3489 = vsel 0, 0.0, %v3470
  %v3490 = vsel 0, 0.0, %v3472
  %v3491 = vlaneseq
  %v3492 = vshrl.u32 %v3491, 7
  %v3493 = vsub.s32 0, %v3492
  %v3494 = vrot.slane %v3482, %v3493
  %v3495 = vlaneseq
  %v3496 = vshrl.u32 %v3495, 7
  %v3497 = vsub.s32 0, %v3496
  %v3498 = vrot.slane %v3483, %v3497
  %v3499 = vlaneseq
  %v3500 = vshrl.u32 %v3499, 7
  %v3501 = vsub.s32 0, %v3500
  %v3502 = vrot.slane %v3484, %v3501
  %v3503 = vlaneseq
  %v3504 = vshrl.u32 %v3503, 7
  %v3505 = vsub.s32 0, %v3504
  %v3506 = vrot.slane %v3485, %v3505
  %v3507 = vlaneseq
  %v3508 = vshrl.u32 %v3507, 7
  %v3509 = vsub.s32 0, %v3508
  %v3510 = vrot.slane %v3486, %v3509
  %v3511 = vlaneseq
  %v3512 = vshrl.u32 %v3511, 7
  %v3513 = vsub.s32 0, %v3512
  %v3514 = vrot.slane %v3487, %v3513
  %v3515 = vlaneseq
  %v3516 = vshrl.u32 %v3515, 7
  %v3517 = vsub.s32 0, %v3516
  %v3518 = vrot.slane %v3488, %v3517
  %v3519 = vlaneseq
  %v3520 = vshrl.u32 %v3519, 7
  %v3521 = vsub.s32 0, %v3520
  %v3522 = vrot.slane %v3489, %v3521
  %v3523 = vlaneseq
  %v3524 = vshrl.u32 %v3523, 7
  %v3525 = vsub.s32 0, %v3524
  %v3526 = vrot.slane %v3490, %v3525
  %v3527 = vmul.f32 %v3494, %v3480
  %v3528 = vmul.f32 %v3494, %v3481
  %v3529 = vmul.f32 %v3498, %v3480
  %v3530 = vmul.f32 %v3498, %v3481
  %v3531 = vmul.f32 %v3502, %v3480
  %v3532 = vmul.f32 %v3502, %v3481
  %v3533 = vmul.f32 %v3506, %v3480
  %v3534 = vmul.f32 %v3506, %v3481
  %v3535 = vmul.f32 %v3510, %v3480
  %v3536 = vmul.f32 %v3510, %v3481
  %v3537 = vmul.f32 %v3514, %v3480
  %v3538 = vmul.f32 %v3514, %v3481
  %v3539 = vmul.f32 %v3518, %v3480
  %v3540 = vmul.f32 %v3518, %v3481
  %v3541 = vmul.f32 %v3522, %v3480
  %v3542 = vmul.f32 %v3522, %v3481
  %v3543 = vmul.f32 %v3526, %v3480
  %v3544 = vmul.f32 %v3526, %v3481
  %v3545 = vsub.f32 %v3456, %v3527
  %v3546 = vsub.f32 %v3457, %v3528
  %v3547 = vsub.f32 %v3458, %v3529
  %v3548 = vsub.f32 %v3459, %v3530
  %v3549 = vsub.f32 %v3460, %v3531
  %v3550 = vsub.f32 %v3461, %v3532
  %v3551 = vsub.f32 %v3462, %v3533
  %v3552 = vsub.f32 %v3463, %v3534
  %v3553 = vsub.f32 %v3464, %v3535
  %v3554 = vsub.f32 %v3465, %v3536
  %v3555 = vsub.f32 %v3466, %v3537
  %v3556 = vsub.f32 %v3467, %v3538
  %v3557 = vsub.f32 %v3468, %v3539
  %v3558 = vsub.f32 %v3469, %v3540
  %v3559 = vsub.f32 %v3470, %v3541
  %v3560 = vsub.f32 %v3471, %v3542
  %v3561 = vsub.f32 %v3472, %v3543
  %v3562 = vsub.f32 %v3473, %v3544
  %v3563 = vsel 1, %v3480, %v3545
  %v3564 = vsel 1, %v3481, %v3546
  %v3565 = vsel 0, %v3480, %v3547
  %v3566 = vsel 0, %v3481, %v3548
  %v3567 = vsel 0, %v3480, %v3549
  %v3568 = vsel 0, %v3481, %v3550
  %v3569 = vsel 0, %v3480, %v3551
  %v3570 = vsel 0, %v3481, %v3552
  %v3571 = vsel 0, %v3480, %v3553
  %v3572 = vsel 0, %v3481, %v3554
  %v3573 = vsel 0, %v3480, %v3555
  %v3574 = vsel 0, %v3481, %v3556
  %v3575 = vsel 0, %v3480, %v3557
  %v3576 = vsel 0, %v3481, %v3558
  %v3577 = vsel 0, %v3480, %v3559
  %v3578 = vsel 0, %v3481, %v3560
  %v3579 = vsel 0, %v3480, %v3561
  %v3580 = vsel 0, %v3481, %v3562
  %v3581 = vmul.f32 %v3482, %v3475
  %v3582 = vmul.f32 %v3483, %v3475
  %v3583 = vmul.f32 %v3484, %v3475
  %v3584 = vmul.f32 %v3485, %v3475
  %v3585 = vmul.f32 %v3486, %v3475
  %v3586 = vmul.f32 %v3487, %v3475
  %v3587 = vmul.f32 %v3488, %v3475
  %v3588 = vmul.f32 %v3489, %v3475
  %v3589 = vmul.f32 %v3490, %v3475
  %v3590 = vsub.f32 1.0, %v3581
  %v3591 = vsub.f32 0.0, %v3582
  %v3592 = vsub.f32 0.0, %v3583
  %v3593 = vsub.f32 0.0, %v3584
  %v3594 = vsub.f32 0.0, %v3585
  %v3595 = vsub.f32 0.0, %v3586
  %v3596 = vsub.f32 0.0, %v3587
  %v3597 = vsub.f32 0.0, %v3588
  %v3598 = vsub.f32 0.0, %v3589
  %v3599 = vsel 1, %v3475, %v3590
  %v3600 = vsel 0, %v3475, %v3591
  %v3601 = vsel 0, %v3475, %v3592
  %v3602 = vsel 0, %v3475, %v3593
  %v3603 = vsel 0, %v3475, %v3594
  %v3604 = vsel 0, %v3475, %v3595
  %v3605 = vsel 0, %v3475, %v3596
  %v3606 = vsel 0, %v3475, %v3597
  %v3607 = vsel 0, %v3475, %v3598
  %v3608 = vrcp.pop %v3565
  %v3609 = vmul.f32 1.0, %v3608
  %v3610 = vlaneseq
  %v3611 = vshrl.u32 %v3610, 7
  %v3612 = vsub.s32 1, %v3611
  %v3613 = vrot.slane %v3609, %v3612
  %v3614 = vmul.f32 %v3565, %v3613
  %v3615 = vmul.f32 %v3566, %v3613
  %v3617 = vrot.slane %v3609, 1
  %v3619 = vmul.f32 %v3600, %v3617
  %v3620 = vsel 0, 0.0, %v3563
  %v3621 = vsel 1, 0.0, %v3565
  %v3622 = vsel 0, 0.0, %v3567
  %v3623 = vsel 0, 0.0, %v3569
  %v3624 = vsel 0, 0.0, %v3571
  %v3625 = vsel 0, 0.0, %v3573
  %v3626 = vsel 0, 0.0, %v3575
  %v3627 = vsel 0, 0.0, %v3577
  %v3628 = vsel 0, 0.0, %v3579
  %v3629 = vlaneseq
  %v3630 = vshrl.u32 %v3629, 7
  %v3631 = vsub.s32 1, %v3630
  %v3632 = vrot.slane %v3620, %v3631
  %v3633 = vlaneseq
  %v3634 = vshrl.u32 %v3633, 7
  %v3635 = vsub.s32 1, %v3634
  %v3636 = vrot.slane %v3621, %v3635
  %v3637 = vlaneseq
  %v3638 = vshrl.u32 %v3637, 7
  %v3639 = vsub.s32 1, %v3638
  %v3640 = vrot.slane %v3622, %v3639
  %v3641 = vlaneseq
  %v3642 = vshrl.u32 %v3641, 7
  %v3643 = vsub.s32 1, %v3642
  %v3644 = vrot.slane %v3623, %v3643
  %v3645 = vlaneseq
  %v3646 = vshrl.u32 %v3645, 7
  %v3647 = vsub.s32 1, %v3646
  %v3648 = vrot.slane %v3624, %v3647
  %v3649 = vlaneseq
  %v3650 = vshrl.u32 %v3649, 7
  %v3651 = vsub.s32 1, %v3650
  %v3652 = vrot.slane %v3625, %v3651
  %v3653 = vlaneseq
  %v3654 = vshrl.u32 %v3653, 7
  %v3655 = vsub.s32 1, %v3654
  %v3656 = vrot.slane %v3626, %v3655
  %v3657 = vlaneseq
  %v3658 = vshrl.u32 %v3657, 7
  %v3659 = vsub.s32 1, %v3658
  %v3660 = vrot.slane %v3627, %v3659
  %v3661 = vlaneseq
  %v3662 = vshrl.u32 %v3661, 7
  %v3663 = vsub.s32 1, %v3662
  %v3664 = vrot.slane %v3628, %v3663
  %v3665 = vmul.f32 %v3632, %v3614
  %v3666 = vmul.f32 %v3632, %v3615
  %v3667 = vmul.f32 %v3636, %v3614
  %v3668 = vmul.f32 %v3636, %v3615
  %v3669 = vmul.f32 %v3640, %v3614
  %v3670 = vmul.f32 %v3640, %v3615
  %v3671 = vmul.f32 %v3644, %v3614
  %v3672 = vmul.f32 %v3644, %v3615
  %v3673 = vmul.f32 %v3648, %v3614
  %v3674 = vmul.f32 %v3648, %v3615
  %v3675 = vmul.f32 %v3652, %v3614
  %v3676 = vmul.f32 %v3652, %v3615
  %v3677 = vmul.f32 %v3656, %v3614
  %v3678 = vmul.f32 %v3656, %v3615
  %v3679 = vmul.f32 %v3660, %v3614
  %v3680 = vmul.f32 %v3660, %v3615
  %v3681 = vmul.f32 %v3664, %v3614
  %v3682 = vmul.f32 %v3664, %v3615
  %v3683 = vsub.f32 %v3563, %v3665
  %v3684 = vsub.f32 %v3564, %v3666
  %v3685 = vsub.f32 %v3565, %v3667
  %v3686 = vsub.f32 %v3566, %v3668
  %v3687 = vsub.f32 %v3567, %v3669
  %v3688 = vsub.f32 %v3568, %v3670
  %v3689 = vsub.f32 %v3569, %v3671
  %v3690 = vsub.f32 %v3570, %v3672
  %v3691 = vsub.f32 %v3571, %v3673
  %v3692 = vsub.f32 %v3572, %v3674
  %v3693 = vsub.f32 %v3573, %v3675
  %v3694 = vsub.f32 %v3574, %v3676
  %v3695 = vsub.f32 %v3575, %v3677
  %v3696 = vsub.f32 %v3576, %v3678
  %v3697 = vsub.f32 %v3577, %v3679
  %v3698 = vsub.f32 %v3578, %v3680
  %v3699 = vsub.f32 %v3579, %v3681
  %v3700 = vsub.f32 %v3580, %v3682
  %v3701 = vsel 0, %v3614, %v3683
  %v3702 = vsel 0, %v3615, %v3684
  %v3703 = vsel 1, %v3614, %v3685
  %v3704 = vsel 1, %v3615, %v3686
  %v3705 = vsel 0, %v3614, %v3687
  %v3706 = vsel 0, %v3615, %v3688
  %v3707 = vsel 0, %v3614, %v3689
  %v3708 = vsel 0, %v3615, %v3690
  %v3709 = vsel 0, %v3614, %v3691
  %v3710 = vsel 0, %v3615, %v3692
  %v3711 = vsel 0, %v3614, %v3693
  %v3712 = vsel 0, %v3615, %v3694
  %v3713 = vsel 0, %v3614, %v3695
  %v3714 = vsel 0, %v3615, %v3696
  %v3715 = vsel 0, %v3614, %v3697
  %v3716 = vsel 0, %v3615, %v3698
  %v3717 = vsel 0, %v3614, %v3699
  %v3718 = vsel 0, %v3615, %v3700
  %v3720 = vrot.slane %v3619, 7
  %v3722 = vmul.f32 %v3620, %v3720
  %v3723 = vmul.f32 %v3621, %v3720
  %v3724 = vmul.f32 %v3622, %v3720
  %v3725 = vmul.f32 %v3623, %v3720
  %v3726 = vmul.f32 %v3624, %v3720
  %v3727 = vmul.f32 %v3625, %v3720
  %v3728 = vmul.f32 %v3626, %v3720
  %v3729 = vmul.f32 %v3627, %v3720
  %v3730 = vmul.f32 %v3628, %v3720
  %v3740 = vrot.slane %v3722, 1
  %v3741 = vrot.slane %v3723, 1
  %v3742 = vrot.slane %v3724, 1
  %v3743 = vrot.slane %v3725, 1
  %v3744 = vrot.slane %v3726, 1
  %v3745 = vrot.slane %v3727, 1
  %v3746 = vrot.slane %v3728, 1
  %v3747 = vrot.slane %v3729, 1
  %v3748 = vrot.slane %v3730, 1
  %v3758 = vsub.f32 %v3599, %v3740
  %v3759 = vsub.f32 %v3600, %v3741
  %v3760 = vsub.f32 %v3601, %v3742
  %v3761 = vsub.f32 %v3602, %v3743
  %v3762 = vsub.f32 %v3603, %v3744
  %v3763 = vsub.f32 %v3604, %v3745
  %v3764 = vsub.f32 %v3605, %v3746
  %v3765 = vsub.f32 %v3606, %v3747
  %v3766 = vsub.f32 %v3607, %v3748
  %v3767 = vsel 0, %v3619, %v3758
  %v3768 = vsel 1, %v3619, %v3759
  %v3769 = vsel 0, %v3619, %v3760
  %v3770 = vsel 0, %v3619, %v3761
  %v3771 = vsel 0, %v3619, %v3762
  %v3772 = vsel 0, %v3619, %v3763
  %v3773 = vsel 0, %v3619, %v3764
  %v3774 = vsel 0, %v3619, %v3765
  %v3775 = vsel 0, %v3619, %v3766
  %v3776 = vrcp.pop %v3705
  %v3777 = vmul.f32 1.0, %v3776
  %v3778 = vlaneseq
  %v3779 = vshrl.u32 %v3778, 7
  %v3780 = vsub.s32 2, %v3779
  %v3781 = vrot.slane %v3777, %v3780
  %v3782 = vmul.f32 %v3705, %v3781
  %v3783 = vmul.f32 %v3706, %v3781
  %v3785 = vrot.slane %v3777, 2
  %v3787 = vmul.f32 %v3769, %v3785
  %v3788 = vsel 0, 0.0, %v3701
  %v3789 = vsel 0, 0.0, %v3703
  %v3790 = vsel 1, 0.0, %v3705
  %v3791 = vsel 0, 0.0, %v3707
  %v3792 = vsel 0, 0.0, %v3709
  %v3793 = vsel 0, 0.0, %v3711
  %v3794 = vsel 0, 0.0, %v3713
  %v3795 = vsel 0, 0.0, %v3715
  %v3796 = vsel 0, 0.0, %v3717
  %v3797 = vlaneseq
  %v3798 = vshrl.u32 %v3797, 7
  %v3799 = vsub.s32 2, %v3798
  %v3800 = vrot.slane %v3788, %v3799
  %v3801 = vlaneseq
  %v3802 = vshrl.u32 %v3801, 7
  %v3803 = vsub.s32 2, %v3802
  %v3804 = vrot.slane %v3789, %v3803
  %v3805 = vlaneseq
  %v3806 = vshrl.u32 %v3805, 7
  %v3807 = vsub.s32 2, %v3806
  %v3808 = vrot.slane %v3790, %v3807
  %v3809 = vlaneseq
  %v3810 = vshrl.u32 %v3809, 7
  %v3811 = vsub.s32 2, %v3810
  %v3812 = vrot.slane %v3791, %v3811
  %v3813 = vlaneseq
  %v3814 = vshrl.u32 %v3813, 7
  %v3815 = vsub.s32 2, %v3814
  %v3816 = vrot.slane %v3792, %v3815
  %v3817 = vlaneseq
  %v3818 = vshrl.u32 %v3817, 7
  %v3819 = vsub.s32 2, %v3818
  %v3820 = vrot.slane %v3793, %v3819
  %v3821 = vlaneseq
  %v3822 = vshrl.u32 %v3821, 7
  %v3823 = vsub.s32 2, %v3822
  %v3824 = vrot.slane %v3794, %v3823
  %v3825 = vlaneseq
  %v3826 = vshrl.u32 %v3825, 7
  %v3827 = vsub.s32 2, %v3826
  %v3828 = vrot.slane %v3795, %v3827
  %v3829 = vlaneseq
  %v3830 = vshrl.u32 %v3829, 7
  %v3831 = vsub.s32 2, %v3830
  %v3832 = vrot.slane %v3796, %v3831
  %v3833 = vmul.f32 %v3800, %v3782
  %v3834 = vmul.f32 %v3800, %v3783
  %v3835 = vmul.f32 %v3804, %v3782
  %v3836 = vmul.f32 %v3804, %v3783
  %v3837 = vmul.f32 %v3808, %v3782
  %v3838 = vmul.f32 %v3808, %v3783
  %v3839 = vmul.f32 %v3812, %v3782
  %v3840 = vmul.f32 %v3812, %v3783
  %v3841 = vmul.f32 %v3816, %v3782
  %v3842 = vmul.f32 %v3816, %v3783
  %v3843 = vmul.f32 %v3820, %v3782
  %v3844 = vmul.f32 %v3820, %v3783
  %v3845 = vmul.f32 %v3824, %v3782
  %v3846 = vmul.f32 %v3824, %v3783
  %v3847 = vmul.f32 %v3828, %v3782
  %v3848 = vmul.f32 %v3828, %v3783
  %v3849 = vmul.f32 %v3832, %v3782
  %v3850 = vmul.f32 %v3832, %v3783
  %v3851 = vsub.f32 %v3701, %v3833
  %v3852 = vsub.f32 %v3702, %v3834
  %v3853 = vsub.f32 %v3703, %v3835
  %v3854 = vsub.f32 %v3704, %v3836
  %v3855 = vsub.f32 %v3705, %v3837
  %v3856 = vsub.f32 %v3706, %v3838
  %v3857 = vsub.f32 %v3707, %v3839
  %v3858 = vsub.f32 %v3708, %v3840
  %v3859 = vsub.f32 %v3709, %v3841
  %v3860 = vsub.f32 %v3710, %v3842
  %v3861 = vsub.f32 %v3711, %v3843
  %v3862 = vsub.f32 %v3712, %v3844
  %v3863 = vsub.f32 %v3713, %v3845
  %v3864 = vsub.f32 %v3714, %v3846
  %v3865 = vsub.f32 %v3715, %v3847
  %v3866 = vsub.f32 %v3716, %v3848
  %v3867 = vsub.f32 %v3717, %v3849
  %v3868 = vsub.f32 %v3718, %v3850
  %v3869 = vsel 0, %v3782, %v3851
  %v3870 = vsel 0, %v3783, %v3852
  %v3871 = vsel 0, %v3782, %v3853
  %v3872 = vsel 0, %v3783, %v3854
  %v3873 = vsel 1, %v3782, %v3855
  %v3874 = vsel 1, %v3783, %v3856
  %v3875 = vsel 0, %v3782, %v3857
  %v3876 = vsel 0, %v3783, %v3858
  %v3877 = vsel 0, %v3782, %v3859
  %v3878 = vsel 0, %v3783, %v3860
  %v3879 = vsel 0, %v3782, %v3861
  %v3880 = vsel 0, %v3783, %v3862
  %v3881 = vsel 0, %v3782, %v3863
  %v3882 = vsel 0, %v3783, %v3864
  %v3883 = vsel 0, %v3782, %v3865
  %v3884 = vsel 0, %v3783, %v3866
  %v3885 = vsel 0, %v3782, %v3867
  %v3886 = vsel 0, %v3783, %v3868
  %v3888 = vrot.slane %v3787, 6
  %v3890 = vmul.f32 %v3788, %v3888
  %v3891 = vmul.f32 %v3789, %v3888
  %v3892 = vmul.f32 %v3790, %v3888
  %v3893 = vmul.f32 %v3791, %v3888
  %v3894 = vmul.f32 %v3792, %v3888
  %v3895 = vmul.f32 %v3793, %v3888
  %v3896 = vmul.f32 %v3794, %v3888
  %v3897 = vmul.f32 %v3795, %v3888
  %v3898 = vmul.f32 %v3796, %v3888
  %v3908 = vrot.slane %v3890, 2
  %v3909 = vrot.slane %v3891, 2
  %v3910 = vrot.slane %v3892, 2
  %v3911 = vrot.slane %v3893, 2
  %v3912 = vrot.slane %v3894, 2
  %v3913 = vrot.slane %v3895, 2
  %v3914 = vrot.slane %v3896, 2
  %v3915 = vrot.slane %v3897, 2
  %v3916 = vrot.slane %v3898, 2
  %v3926 = vsub.f32 %v3767, %v3908
  %v3927 = vsub.f32 %v3768, %v3909
  %v3928 = vsub.f32 %v3769, %v3910
  %v3929 = vsub.f32 %v3770, %v3911
  %v3930 = vsub.f32 %v3771, %v3912
  %v3931 = vsub.f32 %v3772, %v3913
  %v3932 = vsub.f32 %v3773, %v3914
  %v3933 = vsub.f32 %v3774, %v3915
  %v3934 = vsub.f32 %v3775, %v3916
  %v3935 = vsel 0, %v3787, %v3926
  %v3936 = vsel 0, %v3787, %v3927
  %v3937 = vsel 1, %v3787, %v3928
  %v3938 = vsel 0, %v3787, %v3929
  %v3939 = vsel 0, %v3787, %v3930
  %v3940 = vsel 0, %v3787, %v3931
  %v3941 = vsel 0, %v3787, %v3932
  %v3942 = vsel 0, %v3787, %v3933
  %v3943 = vsel 0, %v3787, %v3934
  %v3944 = vrcp.pop %v3875
  %v3945 = vmul.f32 1.0, %v3944
  %v3946 = vlaneseq
  %v3947 = vshrl.u32 %v3946, 7
  %v3948 = vsub.s32 3, %v3947
  %v3949 = vrot.slane %v3945, %v3948
  %v3950 = vmul.f32 %v3875, %v3949
  %v3951 = vmul.f32 %v3876, %v3949
  %v3953 = vrot.slane %v3945, 3
  %v3955 = vmul.f32 %v3938, %v3953
  %v3956 = vsel 0, 0.0, %v3869
  %v3957 = vsel 0, 0.0, %v3871
  %v3958 = vsel 0, 0.0, %v3873
  %v3959 = vsel 1, 0.0, %v3875
  %v3960 = vsel 0, 0.0, %v3877
  %v3961 = vsel 0, 0.0, %v3879
  %v3962 = vsel 0, 0.0, %v3881
  %v3963 = vsel 0, 0.0, %v3883
  %v3964 = vsel 0, 0.0, %v3885
  %v3965 = vlaneseq
  %v3966 = vshrl.u32 %v3965, 7
  %v3967 = vsub.s32 3, %v3966
  %v3968 = vrot.slane %v3956, %v3967
  %v3969 = vlaneseq
  %v3970 = vshrl.u32 %v3969, 7
  %v3971 = vsub.s32 3, %v3970
  %v3972 = vrot.slane %v3957, %v3971
  %v3973 = vlaneseq
  %v3974 = vshrl.u32 %v3973, 7
  %v3975 = vsub.s32 3, %v3974
  %v3976 = vrot.slane %v3958, %v3975
  %v3977 = vlaneseq
  %v3978 = vshrl.u32 %v3977, 7
  %v3979 = vsub.s32 3, %v3978
  %v3980 = vrot.slane %v3959, %v3979
  %v3981 = vlaneseq
  %v3982 = vshrl.u32 %v3981, 7
  %v3983 = vsub.s32 3, %v3982
  %v3984 = vrot.slane %v3960, %v3983
  %v3985 = vlaneseq
  %v3986 = vshrl.u32 %v3985, 7
  %v3987 = vsub.s32 3, %v3986
  %v3988 = vrot.slane %v3961, %v3987
  %v3989 = vlaneseq
  %v3990 = vshrl.u32 %v3989, 7
  %v3991 = vsub.s32 3, %v3990
  %v3992 = vrot.slane %v3962, %v3991
  %v3993 = vlaneseq
  %v3994 = vshrl.u32 %v3993, 7
  %v3995 = vsub.s32 3, %v3994
  %v3996 = vrot.slane %v3963, %v3995
  %v3997 = vlaneseq
  %v3998 = vshrl.u32 %v3997, 7
  %v3999 = vsub.s32 3, %v3998
  %v4000 = vrot.slane %v3964, %v3999
  %v4001 = vmul.f32 %v3968, %v3950
  %v4002 = vmul.f32 %v3968, %v3951
  %v4003 = vmul.f32 %v3972, %v3950
  %v4004 = vmul.f32 %v3972, %v3951
  %v4005 = vmul.f32 %v3976, %v3950
  %v4006 = vmul.f32 %v3976, %v3951
  %v4007 = vmul.f32 %v3980, %v3950
  %v4008 = vmul.f32 %v3980, %v3951
  %v4009 = vmul.f32 %v3984, %v3950
  %v4010 = vmul.f32 %v3984, %v3951
  %v4011 = vmul.f32 %v3988, %v3950
  %v4012 = vmul.f32 %v3988, %v3951
  %v4013 = vmul.f32 %v3992, %v3950
  %v4014 = vmul.f32 %v3992, %v3951
  %v4015 = vmul.f32 %v3996, %v3950
  %v4016 = vmul.f32 %v3996, %v3951
  %v4017 = vmul.f32 %v4000, %v3950
  %v4018 = vmul.f32 %v4000, %v3951
  %v4019 = vsub.f32 %v3869, %v4001
  %v4020 = vsub.f32 %v3870, %v4002
  %v4021 = vsub.f32 %v3871, %v4003
  %v4022 = vsub.f32 %v3872, %v4004
  %v4023 = vsub.f32 %v3873, %v4005
  %v4024 = vsub.f32 %v3874, %v4006
  %v4025 = vsub.f32 %v3875, %v4007
  %v4026 = vsub.f32 %v3876, %v4008
  %v4027 = vsub.f32 %v3877, %v4009
  %v4028 = vsub.f32 %v3878, %v4010
  %v4029 = vsub.f32 %v3879, %v4011
  %v4030 = vsub.f32 %v3880, %v4012
  %v4031 = vsub.f32 %v3881, %v4013
  %v4032 = vsub.f32 %v3882, %v4014
  %v4033 = vsub.f32 %v3883, %v4015
  %v4034 = vsub.f32 %v3884, %v4016
  %v4035 = vsub.f32 %v3885, %v4017
  %v4036 = vsub.f32 %v3886, %v4018
  %v4037 = vsel 0, %v3950, %v4019
  %v4038 = vsel 0, %v3951, %v4020
  %v4039 = vsel 0, %v3950, %v4021
  %v4040 = vsel 0, %v3951, %v4022
  %v4041 = vsel 0, %v3950, %v4023
  %v4042 = vsel 0, %v3951, %v4024
  %v4043 = vsel 1, %v3950, %v4025
  %v4044 = vsel 1, %v3951, %v4026
  %v4045 = vsel 0, %v3950, %v4027
  %v4046 = vsel 0, %v3951, %v4028
  %v4047 = vsel 0, %v3950, %v4029
  %v4048 = vsel 0, %v3951, %v4030
  %v4049 = vsel 0, %v3950, %v4031
  %v4050 = vsel 0, %v3951, %v4032
  %v4051 = vsel 0, %v3950, %v4033
  %v4052 = vsel 0, %v3951, %v4034
  %v4053 = vsel 0, %v3950, %v4035
  %v4054 = vsel 0, %v3951, %v4036
  %v4056 = vrot.slane %v3955, 5
  %v4058 = vmul.f32 %v3956, %v4056
  %v4059 = vmul.f32 %v3957, %v4056
  %v4060 = vmul.f32 %v3958, %v4056
  %v4061 = vmul.f32 %v3959, %v4056
  %v4062 = vmul.f32 %v3960, %v4056
  %v4063 = vmul.f32 %v3961, %v4056
  %v4064 = vmul.f32 %v3962, %v4056
  %v4065 = vmul.f32 %v3963, %v4056
  %v4066 = vmul.f32 %v3964, %v4056
  %v4076 = vrot.slane %v4058, 3
  %v4077 = vrot.slane %v4059, 3
  %v4078 = vrot.slane %v4060, 3
  %v4079 = vrot.slane %v4061, 3
  %v4080 = vrot.slane %v4062, 3
  %v4081 = vrot.slane %v4063, 3
  %v4082 = vrot.slane %v4064, 3
  %v4083 = vrot.slane %v4065, 3
  %v4084 = vrot.slane %v4066, 3
  %v4094 = vsub.f32 %v3935, %v4076
  %v4095 = vsub.f32 %v3936, %v4077
  %v4096 = vsub.f32 %v3937, %v4078
  %v4097 = vsub.f32 %v3938, %v4079
  %v4098 = vsub.f32 %v3939, %v4080
  %v4099 = vsub.f32 %v3940, %v4081
  %v4100 = vsub.f32 %v3941, %v4082
  %v4101 = vsub.f32 %v3942, %v4083
  %v4102 = vsub.f32 %v3943, %v4084
  %v4103 = vsel 0, %v3955, %v4094
  %v4104 = vsel 0, %v3955, %v4095
  %v4105 = vsel 0, %v3955, %v4096
  %v4106 = vsel 1, %v3955, %v4097
  %v4107 = vsel 0, %v3955, %v4098
  %v4108 = vsel 0, %v3955, %v4099
  %v4109 = vsel 0, %v3955, %v4100
  %v4110 = vsel 0, %v3955, %v4101
  %v4111 = vsel 0, %v3955, %v4102
  %v4112 = vrcp.pop %v4045
  %v4113 = vmul.f32 1.0, %v4112
  %v4114 = vlaneseq
  %v4115 = vshrl.u32 %v4114, 7
  %v4116 = vsub.s32 4, %v4115
  %v4117 = vrot.slane %v4113, %v4116
  %v4118 = vmul.f32 %v4045, %v4117
  %v4119 = vmul.f32 %v4046, %v4117
  %v4121 = vrot.slane %v4113, 4
  %v4123 = vmul.f32 %v4107, %v4121
  %v4124 = vsel 0, 0.0, %v4037
  %v4125 = vsel 0, 0.0, %v4039
  %v4126 = vsel 0, 0.0, %v4041
  %v4127 = vsel 0, 0.0, %v4043
  %v4128 = vsel 1, 0.0, %v4045
  %v4129 = vsel 0, 0.0, %v4047
  %v4130 = vsel 0, 0.0, %v4049
  %v4131 = vsel 0, 0.0, %v4051
  %v4132 = vsel 0, 0.0, %v4053
  %v4133 = vlaneseq
  %v4134 = vshrl.u32 %v4133, 7
  %v4135 = vsub.s32 4, %v4134
  %v4136 = vrot.slane %v4124, %v4135
  %v4137 = vlaneseq
  %v4138 = vshrl.u32 %v4137, 7
  %v4139 = vsub.s32 4, %v4138
  %v4140 = vrot.slane %v4125, %v4139
  %v4141 = vlaneseq
  %v4142 = vshrl.u32 %v4141, 7
  %v4143 = vsub.s32 4, %v4142
  %v4144 = vrot.slane %v4126, %v4143
  %v4145 = vlaneseq
  %v4146 = vshrl.u32 %v4145, 7
  %v4147 = vsub.s32 4, %v4146
  %v4148 = vrot.slane %v4127, %v4147
  %v4149 = vlaneseq
  %v4150 = vshrl.u32 %v4149, 7
  %v4151 = vsub.s32 4, %v4150
  %v4152 = vrot.slane %v4128, %v4151
  %v4153 = vlaneseq
  %v4154 = vshrl.u32 %v4153, 7
  %v4155 = vsub.s32 4, %v4154
  %v4156 = vrot.slane %v4129, %v4155
  %v4157 = vlaneseq
  %v4158 = vshrl.u32 %v4157, 7
  %v4159 = vsub.s32 4, %v4158
  %v4160 = vrot.slane %v4130, %v4159
  %v4161 = vlaneseq
  %v4162 = vshrl.u32 %v4161, 7
  %v4163 = vsub.s32 4, %v4162
  %v4164 = vrot.slane %v4131, %v4163
  %v4165 = vlaneseq
  %v4166 = vshrl.u32 %v4165, 7
  %v4167 = vsub.s32 4, %v4166
  %v4168 = vrot.slane %v4132, %v4167
  %v4169 = vmul.f32 %v4136, %v4118
  %v4170 = vmul.f32 %v4136, %v4119
  %v4171 = vmul.f32 %v4140, %v4118
  %v4172 = vmul.f32 %v4140, %v4119
  %v4173 = vmul.f32 %v4144, %v4118
  %v4174 = vmul.f32 %v4144, %v4119
  %v4175 = vmul.f32 %v4148, %v4118
  %v4176 = vmul.f32 %v4148, %v4119
  %v4177 = vmul.f32 %v4152, %v4118
  %v4178 = vmul.f32 %v4152, %v4119
  %v4179 = vmul.f32 %v4156, %v4118
  %v4180 = vmul.f32 %v4156, %v4119
  %v4181 = vmul.f32 %v4160, %v4118
  %v4182 = vmul.f32 %v4160, %v4119
  %v4183 = vmul.f32 %v4164, %v4118
  %v4184 = vmul.f32 %v4164, %v4119
  %v4185 = vmul.f32 %v4168, %v4118
  %v4186 = vmul.f32 %v4168, %v4119
  %v4187 = vsub.f32 %v4037, %v4169
  %v4188 = vsub.f32 %v4038, %v4170
  %v4189 = vsub.f32 %v4039, %v4171
  %v4190 = vsub.f32 %v4040, %v4172
  %v4191 = vsub.f32 %v4041, %v4173
  %v4192 = vsub.f32 %v4042, %v4174
  %v4193 = vsub.f32 %v4043, %v4175
  %v4194 = vsub.f32 %v4044, %v4176
  %v4195 = vsub.f32 %v4045, %v4177
  %v4196 = vsub.f32 %v4046, %v4178
  %v4197 = vsub.f32 %v4047, %v4179
  %v4198 = vsub.f32 %v4048, %v4180
  %v4199 = vsub.f32 %v4049, %v4181
  %v4200 = vsub.f32 %v4050, %v4182
  %v4201 = vsub.f32 %v4051, %v4183
  %v4202 = vsub.f32 %v4052, %v4184
  %v4203 = vsub.f32 %v4053, %v4185
  %v4204 = vsub.f32 %v4054, %v4186
  %v4205 = vsel 0, %v4118, %v4187
  %v4206 = vsel 0, %v4119, %v4188
  %v4207 = vsel 0, %v4118, %v4189
  %v4208 = vsel 0, %v4119, %v4190
  %v4209 = vsel 0, %v4118, %v4191
  %v4210 = vsel 0, %v4119, %v4192
  %v4211 = vsel 0, %v4118, %v4193
  %v4212 = vsel 0, %v4119, %v4194
  %v4213 = vsel 1, %v4118, %v4195
  %v4214 = vsel 1, %v4119, %v4196
  %v4215 = vsel 0, %v4118, %v4197
  %v4216 = vsel 0, %v4119, %v4198
  %v4217 = vsel 0, %v4118, %v4199
  %v4218 = vsel 0, %v4119, %v4200
  %v4219 = vsel 0, %v4118, %v4201
  %v4220 = vsel 0, %v4119, %v4202
  %v4221 = vsel 0, %v4118, %v4203
  %v4222 = vsel 0, %v4119, %v4204
  %v4224 = vrot.slane %v4123, 4
  %v4226 = vmul.f32 %v4124, %v4224
  %v4227 = vmul.f32 %v4125, %v4224
  %v4228 = vmul.f32 %v4126, %v4224
  %v4229 = vmul.f32 %v4127, %v4224
  %v4230 = vmul.f32 %v4128, %v4224
  %v4231 = vmul.f32 %v4129, %v4224
  %v4232 = vmul.f32 %v4130, %v4224
  %v4233 = vmul.f32 %v4131, %v4224
  %v4234 = vmul.f32 %v4132, %v4224
  %v4244 = vrot.slane %v4226, 4
  %v4245 = vrot.slane %v4227, 4
  %v4246 = vrot.slane %v4228, 4
  %v4247 = vrot.slane %v4229, 4
  %v4248 = vrot.slane %v4230, 4
  %v4249 = vrot.slane %v4231, 4
  %v4250 = vrot.slane %v4232, 4
  %v4251 = vrot.slane %v4233, 4
  %v4252 = vrot.slane %v4234, 4
  %v4262 = vsub.f32 %v4103, %v4244
  %v4263 = vsub.f32 %v4104, %v4245
  %v4264 = vsub.f32 %v4105, %v4246
  %v4265 = vsub.f32 %v4106, %v4247
  %v4266 = vsub.f32 %v4107, %v4248
  %v4267 = vsub.f32 %v4108, %v4249
  %v4268 = vsub.f32 %v4109, %v4250
  %v4269 = vsub.f32 %v4110, %v4251
  %v4270 = vsub.f32 %v4111, %v4252
  %v4271 = vsel 0, %v4123, %v4262
  %v4272 = vsel 0, %v4123, %v4263
  %v4273 = vsel 0, %v4123, %v4264
  %v4274 = vsel 0, %v4123, %v4265
  %v4275 = vsel 1, %v4123, %v4266
  %v4276 = vsel 0, %v4123, %v4267
  %v4277 = vsel 0, %v4123, %v4268
  %v4278 = vsel 0, %v4123, %v4269
  %v4279 = vsel 0, %v4123, %v4270
  %v4280 = vrcp.pop %v4215
  %v4281 = vmul.f32 1.0, %v4280
  %v4282 = vlaneseq
  %v4283 = vshrl.u32 %v4282, 7
  %v4284 = vsub.s32 5, %v4283
  %v4285 = vrot.slane %v4281, %v4284
  %v4286 = vmul.f32 %v4215, %v4285
  %v4287 = vmul.f32 %v4216, %v4285
  %v4289 = vrot.slane %v4281, 5
  %v4291 = vmul.f32 %v4276, %v4289
  %v4292 = vsel 0, 0.0, %v4205
  %v4293 = vsel 0, 0.0, %v4207
  %v4294 = vsel 0, 0.0, %v4209
  %v4295 = vsel 0, 0.0, %v4211
  %v4296 = vsel 0, 0.0, %v4213
  %v4297 = vsel 1, 0.0, %v4215
  %v4298 = vsel 0, 0.0, %v4217
  %v4299 = vsel 0, 0.0, %v4219
  %v4300 = vsel 0, 0.0, %v4221
  %v4301 = vlaneseq
  %v4302 = vshrl.u32 %v4301, 7
  %v4303 = vsub.s32 5, %v4302
  %v4304 = vrot.slane %v4292, %v4303
  %v4305 = vlaneseq
  %v4306 = vshrl.u32 %v4305, 7
  %v4307 = vsub.s32 5, %v4306
  %v4308 = vrot.slane %v4293, %v4307
  %v4309 = vlaneseq
  %v4310 = vshrl.u32 %v4309, 7
  %v4311 = vsub.s32 5, %v4310
  %v4312 = vrot.slane %v4294, %v4311
  %v4313 = vlaneseq
  %v4314 = vshrl.u32 %v4313, 7
  %v4315 = vsub.s32 5, %v4314
  %v4316 = vrot.slane %v4295, %v4315
  %v4317 = vlaneseq
  %v4318 = vshrl.u32 %v4317, 7
  %v4319 = vsub.s32 5, %v4318
  %v4320 = vrot.slane %v4296, %v4319
  %v4321 = vlaneseq
  %v4322 = vshrl.u32 %v4321, 7
  %v4323 = vsub.s32 5, %v4322
  %v4324 = vrot.slane %v4297, %v4323
  %v4325 = vlaneseq
  %v4326 = vshrl.u32 %v4325, 7
  %v4327 = vsub.s32 5, %v4326
  %v4328 = vrot.slane %v4298, %v4327
  %v4329 = vlaneseq
  %v4330 = vshrl.u32 %v4329, 7
  %v4331 = vsub.s32 5, %v4330
  %v4332 = vrot.slane %v4299, %v4331
  %v4333 = vlaneseq
  %v4334 = vshrl.u32 %v4333, 7
  %v4335 = vsub.s32 5, %v4334
  %v4336 = vrot.slane %v4300, %v4335
  %v4337 = vmul.f32 %v4304, %v4286
  %v4338 = vmul.f32 %v4304, %v4287
  %v4339 = vmul.f32 %v4308, %v4286
  %v4340 = vmul.f32 %v4308, %v4287
  %v4341 = vmul.f32 %v4312, %v4286
  %v4342 = vmul.f32 %v4312, %v4287
  %v4343 = vmul.f32 %v4316, %v4286
  %v4344 = vmul.f32 %v4316, %v4287
  %v4345 = vmul.f32 %v4320, %v4286
  %v4346 = vmul.f32 %v4320, %v4287
  %v4347 = vmul.f32 %v4324, %v4286
  %v4348 = vmul.f32 %v4324, %v4287
  %v4349 = vmul.f32 %v4328, %v4286
  %v4350 = vmul.f32 %v4328, %v4287
  %v4351 = vmul.f32 %v4332, %v4286
  %v4352 = vmul.f32 %v4332, %v4287
  %v4353 = vmul.f32 %v4336, %v4286
  %v4354 = vmul.f32 %v4336, %v4287
  %v4355 = vsub.f32 %v4205, %v4337
  %v4356 = vsub.f32 %v4206, %v4338
  %v4357 = vsub.f32 %v4207, %v4339
  %v4358 = vsub.f32 %v4208, %v4340
  %v4359 = vsub.f32 %v4209, %v4341
  %v4360 = vsub.f32 %v4210, %v4342
  %v4361 = vsub.f32 %v4211, %v4343
  %v4362 = vsub.f32 %v4212, %v4344
  %v4363 = vsub.f32 %v4213, %v4345
  %v4364 = vsub.f32 %v4214, %v4346
  %v4365 = vsub.f32 %v4215, %v4347
  %v4366 = vsub.f32 %v4216, %v4348
  %v4367 = vsub.f32 %v4217, %v4349
  %v4368 = vsub.f32 %v4218, %v4350
  %v4369 = vsub.f32 %v4219, %v4351
  %v4370 = vsub.f32 %v4220, %v4352
  %v4371 = vsub.f32 %v4221, %v4353
  %v4372 = vsub.f32 %v4222, %v4354
  %v4373 = vsel 0, %v4286, %v4355
  %v4374 = vsel 0, %v4287, %v4356
  %v4375 = vsel 0, %v4286, %v4357
  %v4376 = vsel 0, %v4287, %v4358
  %v4377 = vsel 0, %v4286, %v4359
  %v4378 = vsel 0, %v4287, %v4360
  %v4379 = vsel 0, %v4286, %v4361
  %v4380 = vsel 0, %v4287, %v4362
  %v4381 = vsel 0, %v4286, %v4363
  %v4382 = vsel 0, %v4287, %v4364
  %v4383 = vsel 1, %v4286, %v4365
  %v4384 = vsel 1, %v4287, %v4366
  %v4385 = vsel 0, %v4286, %v4367
  %v4386 = vsel 0, %v4287, %v4368
  %v4387 = vsel 0, %v4286, %v4369
  %v4388 = vsel 0, %v4287, %v4370
  %v4389 = vsel 0, %v4286, %v4371
  %v4390 = vsel 0, %v4287, %v4372
  %v4392 = vrot.slane %v4291, 3
  %v4394 = vmul.f32 %v4292, %v4392
  %v4395 = vmul.f32 %v4293, %v4392
  %v4396 = vmul.f32 %v4294, %v4392
  %v4397 = vmul.f32 %v4295, %v4392
  %v4398 = vmul.f32 %v4296, %v4392
  %v4399 = vmul.f32 %v4297, %v4392
  %v4400 = vmul.f32 %v4298, %v4392
  %v4401 = vmul.f32 %v4299, %v4392
  %v4402 = vmul.f32 %v4300, %v4392
  %v4412 = vrot.slane %v4394, 5
  %v4413 = vrot.slane %v4395, 5
  %v4414 = vrot.slane %v4396, 5
  %v4415 = vrot.slane %v4397, 5
  %v4416 = vrot.slane %v4398, 5
  %v4417 = vrot.slane %v4399, 5
  %v4418 = vrot.slane %v4400, 5
  %v4419 = vrot.slane %v4401, 5
  %v4420 = vrot.slane %v4402, 5
  %v4430 = vsub.f32 %v4271, %v4412
  %v4431 = vsub.f32 %v4272, %v4413
  %v4432 = vsub.f32 %v4273, %v4414
  %v4433 = vsub.f32 %v4274, %v4415
  %v4434 = vsub.f32 %v4275, %v4416
  %v4435 = vsub.f32 %v4276, %v4417
  %v4436 = vsub.f32 %v4277, %v4418
  %v4437 = vsub.f32 %v4278, %v4419
  %v4438 = vsub.f32 %v4279, %v4420
  %v4439 = vsel 0, %v4291, %v4430
  %v4440 = vsel 0, %v4291, %v4431
  %v4441 = vsel 0, %v4291, %v4432
  %v4442 = vsel 0, %v4291, %v4433
  %v4443 = vsel 0, %v4291, %v4434
  %v4444 = vsel 1, %v4291, %v4435
  %v4445 = vsel 0, %v4291, %v4436
  %v4446 = vsel 0, %v4291, %v4437
  %v4447 = vsel 0, %v4291, %v4438
  %v4448 = vrcp.pop %v4385
  %v4449 = vmul.f32 1.0, %v4448
  %v4450 = vlaneseq
  %v4451 = vshrl.u32 %v4450, 7
  %v4452 = vsub.s32 6, %v4451
  %v4453 = vrot.slane %v4449, %v4452
  %v4454 = vmul.f32 %v4385, %v4453
  %v4455 = vmul.f32 %v4386, %v4453
  %v4457 = vrot.slane %v4449, 6
  %v4459 = vmul.f32 %v4445, %v4457
  %v4460 = vsel 0, 0.0, %v4373
  %v4461 = vsel 0, 0.0, %v4375
  %v4462 = vsel 0, 0.0, %v4377
  %v4463 = vsel 0, 0.0, %v4379
  %v4464 = vsel 0, 0.0, %v4381
  %v4465 = vsel 0, 0.0, %v4383
  %v4466 = vsel 1, 0.0, %v4385
  %v4467 = vsel 0, 0.0, %v4387
  %v4468 = vsel 0, 0.0, %v4389
  %v4469 = vlaneseq
  %v4470 = vshrl.u32 %v4469, 7
  %v4471 = vsub.s32 6, %v4470
  %v4472 = vrot.slane %v4460, %v4471
  %v4473 = vlaneseq
  %v4474 = vshrl.u32 %v4473, 7
  %v4475 = vsub.s32 6, %v4474
  %v4476 = vrot.slane %v4461, %v4475
  %v4477 = vlaneseq
  %v4478 = vshrl.u32 %v4477, 7
  %v4479 = vsub.s32 6, %v4478
  %v4480 = vrot.slane %v4462, %v4479
  %v4481 = vlaneseq
  %v4482 = vshrl.u32 %v4481, 7
  %v4483 = vsub.s32 6, %v4482
  %v4484 = vrot.slane %v4463, %v4483
  %v4485 = vlaneseq
  %v4486 = vshrl.u32 %v4485, 7
  %v4487 = vsub.s32 6, %v4486
  %v4488 = vrot.slane %v4464, %v4487
  %v4489 = vlaneseq
  %v4490 = vshrl.u32 %v4489, 7
  %v4491 = vsub.s32 6, %v4490
  %v4492 = vrot.slane %v4465, %v4491
  %v4493 = vlaneseq
  %v4494 = vshrl.u32 %v4493, 7
  %v4495 = vsub.s32 6, %v4494
  %v4496 = vrot.slane %v4466, %v4495
  %v4497 = vlaneseq
  %v4498 = vshrl.u32 %v4497, 7
  %v4499 = vsub.s32 6, %v4498
  %v4500 = vrot.slane %v4467, %v4499
  %v4501 = vlaneseq
  %v4502 = vshrl.u32 %v4501, 7
  %v4503 = vsub.s32 6, %v4502
  %v4504 = vrot.slane %v4468, %v4503
  %v4505 = vmul.f32 %v4472, %v4454
  %v4506 = vmul.f32 %v4472, %v4455
  %v4507 = vmul.f32 %v4476, %v4454
  %v4508 = vmul.f32 %v4476, %v4455
  %v4509 = vmul.f32 %v4480, %v4454
  %v4510 = vmul.f32 %v4480, %v4455
  %v4511 = vmul.f32 %v4484, %v4454
  %v4512 = vmul.f32 %v4484, %v4455
  %v4513 = vmul.f32 %v4488, %v4454
  %v4514 = vmul.f32 %v4488, %v4455
  %v4515 = vmul.f32 %v4492, %v4454
  %v4516 = vmul.f32 %v4492, %v4455
  %v4517 = vmul.f32 %v4496, %v4454
  %v4518 = vmul.f32 %v4496, %v4455
  %v4519 = vmul.f32 %v4500, %v4454
  %v4520 = vmul.f32 %v4500, %v4455
  %v4521 = vmul.f32 %v4504, %v4454
  %v4522 = vmul.f32 %v4504, %v4455
  %v4523 = vsub.f32 %v4373, %v4505
  %v4524 = vsub.f32 %v4374, %v4506
  %v4525 = vsub.f32 %v4375, %v4507
  %v4526 = vsub.f32 %v4376, %v4508
  %v4527 = vsub.f32 %v4377, %v4509
  %v4528 = vsub.f32 %v4378, %v4510
  %v4529 = vsub.f32 %v4379, %v4511
  %v4530 = vsub.f32 %v4380, %v4512
  %v4531 = vsub.f32 %v4381, %v4513
  %v4532 = vsub.f32 %v4382, %v4514
  %v4533 = vsub.f32 %v4383, %v4515
  %v4534 = vsub.f32 %v4384, %v4516
  %v4535 = vsub.f32 %v4385, %v4517
  %v4536 = vsub.f32 %v4386, %v4518
  %v4537 = vsub.f32 %v4387, %v4519
  %v4538 = vsub.f32 %v4388, %v4520
  %v4539 = vsub.f32 %v4389, %v4521
  %v4540 = vsub.f32 %v4390, %v4522
  %v4541 = vsel 0, %v4454, %v4523
  %v4542 = vsel 0, %v4455, %v4524
  %v4543 = vsel 0, %v4454, %v4525
  %v4544 = vsel 0, %v4455, %v4526
  %v4545 = vsel 0, %v4454, %v4527
  %v4546 = vsel 0, %v4455, %v4528
  %v4547 = vsel 0, %v4454, %v4529
  %v4548 = vsel 0, %v4455, %v4530
  %v4549 = vsel 0, %v4454, %v4531
  %v4550 = vsel 0, %v4455, %v4532
  %v4551 = vsel 0, %v4454, %v4533
  %v4552 = vsel 0, %v4455, %v4534
  %v4553 = vsel 1, %v4454, %v4535
  %v4554 = vsel 1, %v4455, %v4536
  %v4555 = vsel 0, %v4454, %v4537
  %v4556 = vsel 0, %v4455, %v4538
  %v4557 = vsel 0, %v4454, %v4539
  %v4558 = vsel 0, %v4455, %v4540
  %v4560 = vrot.slane %v4459, 2
  %v4562 = vmul.f32 %v4460, %v4560
  %v4563 = vmul.f32 %v4461, %v4560
  %v4564 = vmul.f32 %v4462, %v4560
  %v4565 = vmul.f32 %v4463, %v4560
  %v4566 = vmul.f32 %v4464, %v4560
  %v4567 = vmul.f32 %v4465, %v4560
  %v4568 = vmul.f32 %v4466, %v4560
  %v4569 = vmul.f32 %v4467, %v4560
  %v4570 = vmul.f32 %v4468, %v4560
  %v4580 = vrot.slane %v4562, 6
  %v4581 = vrot.slane %v4563, 6
  %v4582 = vrot.slane %v4564, 6
  %v4583 = vrot.slane %v4565, 6
  %v4584 = vrot.slane %v4566, 6
  %v4585 = vrot.slane %v4567, 6
  %v4586 = vrot.slane %v4568, 6
  %v4587 = vrot.slane %v4569, 6
  %v4588 = vrot.slane %v4570, 6
  %v4598 = vsub.f32 %v4439, %v4580
  %v4599 = vsub.f32 %v4440, %v4581
  %v4600 = vsub.f32 %v4441, %v4582
  %v4601 = vsub.f32 %v4442, %v4583
  %v4602 = vsub.f32 %v4443, %v4584
  %v4603 = vsub.f32 %v4444, %v4585
  %v4604 = vsub.f32 %v4445, %v4586
  %v4605 = vsub.f32 %v4446, %v4587
  %v4606 = vsub.f32 %v4447, %v4588
  %v4607 = vsel 0, %v4459, %v4598
  %v4608 = vsel 0, %v4459, %v4599
  %v4609 = vsel 0, %v4459, %v4600
  %v4610 = vsel 0, %v4459, %v4601
  %v4611 = vsel 0, %v4459, %v4602
  %v4612 = vsel 0, %v4459, %v4603
  %v4613 = vsel 1, %v4459, %v4604
  %v4614 = vsel 0, %v4459, %v4605
  %v4615 = vsel 0, %v4459, %v4606
  %v4616 = vrcp.pop %v4555
  %v4617 = vmul.f32 1.0, %v4616
  %v4618 = vlaneseq
  %v4619 = vshrl.u32 %v4618, 7
  %v4620 = vsub.s32 7, %v4619
  %v4621 = vrot.slane %v4617, %v4620
  %v4622 = vmul.f32 %v4556, %v4621
  %v4624 = vrot.slane %v4617, 7
  %v4626 = vmul.f32 %v4614, %v4624
  %v4627 = vsel 0, 0.0, %v4541
  %v4628 = vsel 0, 0.0, %v4543
  %v4629 = vsel 0, 0.0, %v4545
  %v4630 = vsel 0, 0.0, %v4547
  %v4631 = vsel 0, 0.0, %v4549
  %v4632 = vsel 0, 0.0, %v4551
  %v4633 = vsel 0, 0.0, %v4553
  %v4634 = vsel 1, 0.0, %v4555
  %v4635 = vsel 0, 0.0, %v4557
  %v4636 = vlaneseq
  %v4637 = vshrl.u32 %v4636, 7
  %v4638 = vsub.s32 7, %v4637
  %v4639 = vrot.slane %v4627, %v4638
  %v4640 = vlaneseq
  %v4641 = vshrl.u32 %v4640, 7
  %v4642 = vsub.s32 7, %v4641
  %v4643 = vrot.slane %v4628, %v4642
  %v4644 = vlaneseq
  %v4645 = vshrl.u32 %v4644, 7
  %v4646 = vsub.s32 7, %v4645
  %v4647 = vrot.slane %v4629, %v4646
  %v4648 = vlaneseq
  %v4649 = vshrl.u32 %v4648, 7
  %v4650 = vsub.s32 7, %v4649
  %v4651 = vrot.slane %v4630, %v4650
  %v4652 = vlaneseq
  %v4653 = vshrl.u32 %v4652, 7
  %v4654 = vsub.s32 7, %v4653
  %v4655 = vrot.slane %v4631, %v4654
  %v4656 = vlaneseq
  %v4657 = vshrl.u32 %v4656, 7
  %v4658 = vsub.s32 7, %v4657
  %v4659 = vrot.slane %v4632, %v4658
  %v4660 = vlaneseq
  %v4661 = vshrl.u32 %v4660, 7
  %v4662 = vsub.s32 7, %v4661
  %v4663 = vrot.slane %v4633, %v4662
  %v4664 = vlaneseq
  %v4665 = vshrl.u32 %v4664, 7
  %v4666 = vsub.s32 7, %v4665
  %v4667 = vrot.slane %v4634, %v4666
  %v4668 = vlaneseq
  %v4669 = vshrl.u32 %v4668, 7
  %v4670 = vsub.s32 7, %v4669
  %v4671 = vrot.slane %v4635, %v4670
  %v4672 = vmul.f32 %v4639, %v4622
  %v4673 = vmul.f32 %v4643, %v4622
  %v4674 = vmul.f32 %v4647, %v4622
  %v4675 = vmul.f32 %v4651, %v4622
  %v4676 = vmul.f32 %v4655, %v4622
  %v4677 = vmul.f32 %v4659, %v4622
  %v4678 = vmul.f32 %v4663, %v4622
  %v4679 = vmul.f32 %v4667, %v4622
  %v4680 = vmul.f32 %v4671, %v4622
  %v4681 = vsub.f32 %v4542, %v4672
  %v4682 = vsub.f32 %v4544, %v4673
  %v4683 = vsub.f32 %v4546, %v4674
  %v4684 = vsub.f32 %v4548, %v4675
  %v4685 = vsub.f32 %v4550, %v4676
  %v4686 = vsub.f32 %v4552, %v4677
  %v4687 = vsub.f32 %v4554, %v4678
  %v4688 = vsub.f32 %v4556, %v4679
  %v4689 = vsub.f32 %v4558, %v4680
  %v4690 = vsel 0, %v4622, %v4681
  %v4691 = vsel 0, %v4622, %v4682
  %v4692 = vsel 0, %v4622, %v4683
  %v4693 = vsel 0, %v4622, %v4684
  %v4694 = vsel 0, %v4622, %v4685
  %v4695 = vsel 0, %v4622, %v4686
  %v4696 = vsel 0, %v4622, %v4687
  %v4697 = vsel 1, %v4622, %v4688
  %v4698 = vsel 0, %v4622, %v4689
  %v4700 = vrot.slane %v4626, 1
  %v4702 = vmul.f32 %v4627, %v4700
  %v4703 = vmul.f32 %v4628, %v4700
  %v4704 = vmul.f32 %v4629, %v4700
  %v4705 = vmul.f32 %v4630, %v4700
  %v4706 = vmul.f32 %v4631, %v4700
  %v4707 = vmul.f32 %v4632, %v4700
  %v4708 = vmul.f32 %v4633, %v4700
  %v4709 = vmul.f32 %v4634, %v4700
  %v4710 = vmul.f32 %v4635, %v4700
  %v4720 = vrot.slane %v4702, 7
  %v4721 = vrot.slane %v4703, 7
  %v4722 = vrot.slane %v4704, 7
  %v4723 = vrot.slane %v4705, 7
  %v4724 = vrot.slane %v4706, 7
  %v4725 = vrot.slane %v4707, 7
  %v4726 = vrot.slane %v4708, 7
  %v4727 = vrot.slane %v4709, 7
  %v4728 = vrot.slane %v4710, 7
  %v4738 = vsub.f32 %v4607, %v4720
  %v4739 = vsub.f32 %v4608, %v4721
  %v4740 = vsub.f32 %v4609, %v4722
  %v4741 = vsub.f32 %v4610, %v4723
  %v4742 = vsub.f32 %v4611, %v4724
  %v4743 = vsub.f32 %v4612, %v4725
  %v4744 = vsub.f32 %v4613, %v4726
  %v4745 = vsub.f32 %v4614, %v4727
  %v4746 = vsub.f32 %v4615, %v4728
  %v4747 = vsel 0, %v4626, %v4738
  %v4748 = vsel 0, %v4626, %v4739
  %v4749 = vsel 0, %v4626, %v4740
  %v4750 = vsel 0, %v4626, %v4741
  %v4751 = vsel 0, %v4626, %v4742
  %v4752 = vsel 0, %v4626, %v4743
  %v4753 = vsel 0, %v4626, %v4744
  %v4754 = vsel 1, %v4626, %v4745
  %v4755 = vsel 0, %v4626, %v4746
  %v4756 = vrcp.pop %v4698
  %v4757 = vmul.f32 1.0, %v4756
  %v4758 = vmul.f32 %v4755, %v4757
  %v4759 = vsel 0, 0.0, %v4690
  %v4760 = vsel 0, 0.0, %v4691
  %v4761 = vsel 0, 0.0, %v4692
  %v4762 = vsel 0, 0.0, %v4693
  %v4763 = vsel 0, 0.0, %v4694
  %v4764 = vsel 0, 0.0, %v4695
  %v4765 = vsel 0, 0.0, %v4696
  %v4766 = vsel 0, 0.0, %v4697
  %v4767 = vsel 1, 0.0, %v4698
  %v4768 = vmul.f32 %v4759, %v4758
  %v4769 = vmul.f32 %v4760, %v4758
  %v4770 = vmul.f32 %v4761, %v4758
  %v4771 = vmul.f32 %v4762, %v4758
  %v4772 = vmul.f32 %v4763, %v4758
  %v4773 = vmul.f32 %v4764, %v4758
  %v4774 = vmul.f32 %v4765, %v4758
  %v4775 = vmul.f32 %v4766, %v4758
  %v4776 = vmul.f32 %v4767, %v4758
  %v4777 = vsub.f32 %v4747, %v4768
  %v4778 = vsub.f32 %v4748, %v4769
  %v4779 = vsub.f32 %v4749, %v4770
  %v4780 = vsub.f32 %v4750, %v4771
  %v4781 = vsub.f32 %v4751, %v4772
  %v4782 = vsub.f32 %v4752, %v4773
  %v4783 = vsub.f32 %v4753, %v4774
  %v4784 = vsub.f32 %v4754, %v4775
  %v4785 = vsub.f32 %v4755, %v4776
  %v4786 = vsel 0, %v4758, %v4777
  %v4787 = vsel 0, %v4758, %v4778
  %v4788 = vsel 0, %v4758, %v4779
  %v4789 = vsel 0, %v4758, %v4780
  %v4790 = vsel 0, %v4758, %v4781
  %v4791 = vsel 0, %v4758, %v4782
  %v4792 = vsel 0, %v4758, %v4783
  %v4793 = vsel 0, %v4758, %v4784
  %v4794 = vsel 1, %v4758, %v4785
  %v4795 = vmul.f32 %v4786, 0.1
  %v4796 = vmul.f32 %v4787, 0.1
  %v4797 = vmul.f32 %v4788, 0.1
  %v4798 = vmul.f32 %v4789, 0.1
  %v4799 = vmul.f32 %v4790, 0.1
  %v4800 = vmul.f32 %v4791, 0.1
  %v4801 = vmul.f32 %v4792, 0.1
  %v4802 = vmul.f32 %v4793, 0.1
  %v4803 = vmul.f32 %v4794, 0.1
  %v4804 = vsub.f32 %v4795, %v52
  %v4805 = vsub.f32 %v4796, %v53
  %v4806 = vsub.f32 %v4797, %v54
  %v4807 = vsub.f32 %v4798, %v55
  %v4808 = vsub.f32 %v4799, %v56
  %v4809 = vsub.f32 %v4800, %v57
  %v4810 = vsub.f32 %v4801, %v58
  %v4811 = vsub.f32 %v4802, %v59
  %v4812 = vsub.f32 %v4803, %v60
  %v4813 = vmax.f32 %v4804, 0.0
  %v4814 = vmax.f32 %v4805, 0.0
  %v4815 = vmax.f32 %v4806, 0.0
  %v4816 = vmax.f32 %v4807, 0.0
  %v4817 = vmax.f32 %v4808, 0.0
  %v4818 = vmax.f32 %v4809, 0.0
  %v4819 = vmax.f32 %v4810, 0.0
  %v4820 = vmax.f32 %v4811, 0.0
  %v4821 = vmax.f32 %v4812, 0.0
  %v4822 = vsel %vm2943, %v4813, 0.0
  %v4823 = vsel %vm2943, %v4814, 0.0
  %v4824 = vadd.f32 %v4822, %v4823
  %v4825 = vsel %vm2943, %v4815, 0.0
  %v4826 = vadd.f32 %v4824, %v4825
  %v4827 = vsel %vm2943, %v4816, 0.0
  %v4828 = vadd.f32 %v4826, %v4827
  %v4829 = vsel %vm2943, %v4817, 0.0
  %v4830 = vadd.f32 %v4828, %v4829
  %v4831 = vsel %vm2943, %v4818, 0.0
  %v4832 = vadd.f32 %v4830, %v4831
  %v4833 = vsel %vm2943, %v4819, 0.0
  %v4834 = vadd.f32 %v4832, %v4833
  %v4835 = vsel %vm2943, %v4820, 0.0
  %v4836 = vadd.f32 %v4834, %v4835
  %v4837 = vsel %vm2943, %v4821, 0.0
  %v4838 = vadd.f32 %v4836, %v4837
  %v4839 = vrcp.pop %v4838
  %v4840 = vmul.f32 %v4813, %v4839
  %v4841 = vmul.f32 %v4814, %v4839
  %v4842 = vmul.f32 %v4815, %v4839
  %v4843 = vmul.f32 %v4816, %v4839
  %v4844 = vmul.f32 %v4817, %v4839
  %v4845 = vmul.f32 %v4818, %v4839
  %v4846 = vmul.f32 %v4819, %v4839
  %v4847 = vmul.f32 %v4820, %v4839
  %v4848 = vmul.f32 %v4821, %v4839
  %v4849 = vsel 0, %v4840, 0.0
  %v4850 = vsel 1, %v4841, 0.0
  %v4851 = vsel 1, %v4842, 0.0
  %v4852 = vsel 1, %v4843, 0.0
  %v4853 = vsel 1, %v4844, 0.0
  %v4854 = vsel 1, %v4845, 0.0
  %v4855 = vsel 1, %v4846, 0.0
  %v4856 = vsel 1, %v4847, 0.0
  %v4857 = vsel 1, %v4848, 0.0
  %v4858 = vlaneseq
  %v4859 = vshrl.u32 %v4858, 7
  %v4860 = vsub.s32 0, %v4859
  %v4861 = vrot.slane %v4849, %v4860
  %v4862 = vlaneseq
  %v4863 = vshrl.u32 %v4862, 7
  %v4864 = vsub.s32 0, %v4863
  %v4865 = vrot.slane %v4850, %v4864
  %v4866 = vlaneseq
  %v4867 = vshrl.u32 %v4866, 7
  %v4868 = vsub.s32 0, %v4867
  %v4869 = vrot.slane %v4851, %v4868
  %v4870 = vlaneseq
  %v4871 = vshrl.u32 %v4870, 7
  %v4872 = vsub.s32 0, %v4871
  %v4873 = vrot.slane %v4852, %v4872
  %v4874 = vlaneseq
  %v4875 = vshrl.u32 %v4874, 7
  %v4876 = vsub.s32 0, %v4875
  %v4877 = vrot.slane %v4853, %v4876
  %v4878 = vlaneseq
  %v4879 = vshrl.u32 %v4878, 7
  %v4880 = vsub.s32 0, %v4879
  %v4881 = vrot.slane %v4854, %v4880
  %v4882 = vlaneseq
  %v4883 = vshrl.u32 %v4882, 7
  %v4884 = vsub.s32 0, %v4883
  %v4885 = vrot.slane %v4855, %v4884
  %v4886 = vlaneseq
  %v4887 = vshrl.u32 %v4886, 7
  %v4888 = vsub.s32 0, %v4887
  %v4889 = vrot.slane %v4856, %v4888
  %v4890 = vlaneseq
  %v4891 = vshrl.u32 %v4890, 7
  %v4892 = vsub.s32 0, %v4891
  %v4893 = vrot.slane %v4857, %v4892
  %v4894 = vmul.f32 %v4861, %v16
  %v4895 = vmul.f32 %v4861, %v17
  %v4896 = vmul.f32 %v4861, %v18
  %v4897 = vmul.f32 %v4861, %v19
  %v4898 = vmul.f32 %v4865, %v20
  %v4899 = vmul.f32 %v4865, %v21
  %v4900 = vmul.f32 %v4865, %v22
  %v4901 = vmul.f32 %v4865, %v23
  %v4902 = vmul.f32 %v4869, %v24
  %v4903 = vmul.f32 %v4869, %v25
  %v4904 = vmul.f32 %v4869, %v26
  %v4905 = vmul.f32 %v4869, %v27
  %v4906 = vmul.f32 %v4873, %v28
  %v4907 = vmul.f32 %v4873, %v29
  %v4908 = vmul.f32 %v4873, %v30
  %v4909 = vmul.f32 %v4873, %v31
  %v4910 = vmul.f32 %v4877, %v32
  %v4911 = vmul.f32 %v4877, %v33
  %v4912 = vmul.f32 %v4877, %v34
  %v4913 = vmul.f32 %v4877, %v35
  %v4914 = vmul.f32 %v4881, %v36
  %v4915 = vmul.f32 %v4881, %v37
  %v4916 = vmul.f32 %v4881, %v38
  %v4917 = vmul.f32 %v4881, %v39
  %v4918 = vmul.f32 %v4885, %v40
  %v4919 = vmul.f32 %v4885, %v41
  %v4920 = vmul.f32 %v4885, %v42
  %v4921 = vmul.f32 %v4885, %v43
  %v4922 = vmul.f32 %v4889, %v44
  %v4923 = vmul.f32 %v4889, %v45
  %v4924 = vmul.f32 %v4889, %v46
  %v4925 = vmul.f32 %v4889, %v47
  %v4926 = vmul.f32 %v4893, %v48
  %v4927 = vmul.f32 %v4893, %v49
  %v4928 = vmul.f32 %v4893, %v50
  %v4929 = vmul.f32 %v4893, %v51
  %v4930 = vsel %vm202, %v4894, 0.0
  %v4931 = vsel %vm202, %v4898, 0.0
  %v4932 = vadd.f32 %v4930, %v4931
  %v4933 = vsel %vm202, %v4902, 0.0
  %v4934 = vadd.f32 %v4932, %v4933
  %v4935 = vsel %vm202, %v4906, 0.0
  %v4936 = vadd.f32 %v4934, %v4935
  %v4937 = vsel %vm202, %v4910, 0.0
  %v4938 = vadd.f32 %v4936, %v4937
  %v4939 = vsel %vm202, %v4914, 0.0
  %v4940 = vadd.f32 %v4938, %v4939
  %v4941 = vsel %vm202, %v4918, 0.0
  %v4942 = vadd.f32 %v4940, %v4941
  %v4943 = vsel %vm202, %v4922, 0.0
  %v4944 = vadd.f32 %v4942, %v4943
  %v4945 = vsel %vm202, %v4926, 0.0
  %v4946 = vadd.f32 %v4944, %v4945
  %v4947 = vsel %vm202, %v4895, 0.0
  %v4948 = vsel %vm202, %v4899, 0.0
  %v4949 = vadd.f32 %v4947, %v4948
  %v4950 = vsel %vm202, %v4903, 0.0
  %v4951 = vadd.f32 %v4949, %v4950
  %v4952 = vsel %vm202, %v4907, 0.0
  %v4953 = vadd.f32 %v4951, %v4952
  %v4954 = vsel %vm202, %v4911, 0.0
  %v4955 = vadd.f32 %v4953, %v4954
  %v4956 = vsel %vm202, %v4915, 0.0
  %v4957 = vadd.f32 %v4955, %v4956
  %v4958 = vsel %vm202, %v4919, 0.0
  %v4959 = vadd.f32 %v4957, %v4958
  %v4960 = vsel %vm202, %v4923, 0.0
  %v4961 = vadd.f32 %v4959, %v4960
  %v4962 = vsel %vm202, %v4927, 0.0
  %v4963 = vadd.f32 %v4961, %v4962
  %v4964 = vsel %vm202, %v4896, 0.0
  %v4965 = vsel %vm202, %v4900, 0.0
  %v4966 = vadd.f32 %v4964, %v4965
  %v4967 = vsel %vm202, %v4904, 0.0
  %v4968 = vadd.f32 %v4966, %v4967
  %v4969 = vsel %vm202, %v4908, 0.0
  %v4970 = vadd.f32 %v4968, %v4969
  %v4971 = vsel %vm202, %v4912, 0.0
  %v4972 = vadd.f32 %v4970, %v4971
  %v4973 = vsel %vm202, %v4916, 0.0
  %v4974 = vadd.f32 %v4972, %v4973
  %v4975 = vsel %vm202, %v4920, 0.0
  %v4976 = vadd.f32 %v4974, %v4975
  %v4977 = vsel %vm202, %v4924, 0.0
  %v4978 = vadd.f32 %v4976, %v4977
  %v4979 = vsel %vm202, %v4928, 0.0
  %v4980 = vadd.f32 %v4978, %v4979
  %v4981 = vsel %vm202, %v4897, 0.0
  %v4982 = vsel %vm202, %v4901, 0.0
  %v4983 = vadd.f32 %v4981, %v4982
  %v4984 = vsel %vm202, %v4905, 0.0
  %v4985 = vadd.f32 %v4983, %v4984
  %v4986 = vsel %vm202, %v4909, 0.0
  %v4987 = vadd.f32 %v4985, %v4986
  %v4988 = vsel %vm202, %v4913, 0.0
  %v4989 = vadd.f32 %v4987, %v4988
  %v4990 = vsel %vm202, %v4917, 0.0
  %v4991 = vadd.f32 %v4989, %v4990
  %v4992 = vsel %vm202, %v4921, 0.0
  %v4993 = vadd.f32 %v4991, %v4992
  %v4994 = vsel %vm202, %v4925, 0.0
  %v4995 = vadd.f32 %v4993, %v4994
  %v4996 = vsel %vm202, %v4929, 0.0
  %v4997 = vadd.f32 %v4995, %v4996
  %4998 = vst.msk [vmem:[%s3] sm:$0xff] %vm202, %v4946
  %4999 = vst.msk [vmem:[%s3 + $0x8] sm:$0xff] %vm202, %v4963
  %5000 = vst.msk [vmem:[%s3 + $0x10] sm:$0xff] %vm202, %v4980
  %5001 = vst.msk [vmem:[%s3 + $0x18] sm:$0xff] %vm202, %v4997
  %5002 = vst.msk [vmem:[%s4] sm:$0x1] %vm2943, %v4795
  %5003 = vst.msk [vmem:[%s4 + $0x1] sm:$0x1] %vm2943, %v4796
  %5004 = vst.msk [vmem:[%s4 + $0x2] sm:$0x1] %vm2943, %v4797
  %5005 = vst.msk [vmem:[%s4 + $0x3] sm:$0x1] %vm2943, %v4798
  %5006 = vst.msk [vmem:[%s4 + $0x4] sm:$0x1] %vm2943, %v4799
  %5007 = vst.msk [vmem:[%s4 + $0x5] sm:$0x1] %vm2943, %v4800
  %5008 = vst.msk [vmem:[%s4 + $0x6] sm:$0x1] %vm2943, %v4801
  %5009 = vst.msk [vmem:[%s4 + $0x7] sm:$0x1] %vm2943, %v4802
  %5010 = vst.msk [vmem:[%s4 + $0x8] sm:$0x1] %vm2943, %v4803
  // Predicated region
  $region14: #{tpu_custom_call.1} parent=0 // pred_check
    _
  $region15: #{tpu_custom_call.1} parent=0 // pred_check_branch
    %5012 = sbr.rel (0) target = $region17
  $region16: #{tpu_custom_call.1} parent=0 // pred_region
    _
  $region17: #{tpu_custom_call.1} parent=0 // pred_fallthru
    _
  // Predicated region
  $region18: #{tpu_custom_call.1} parent=0 // pred_check
    _
  $region19: #{tpu_custom_call.1} parent=0 // pred_check_branch
    %5014 = sbr.rel (0) target = $region21
  $region20: #{tpu_custom_call.1} parent=0 // pred_region
    _
  $region21: #{tpu_custom_call.1} parent=0 // pred_fallthru
    _
  // Predicated region
  $region22: #{tpu_custom_call.1} parent=0 // pred_check
    _
  $region23: #{tpu_custom_call.1} parent=0 // pred_check_branch
    %5016 = sbr.rel (0) target = $region25
  $region24: #{tpu_custom_call.1} parent=0 // pred_region
    _
  $region25: #{tpu_custom_call.1} parent=0 // pred_fallthru
    _
  // Predicated region
  $region26: #{tpu_custom_call.1} parent=0 // pred_check
    _
  $region27: #{tpu_custom_call.1} parent=0 // pred_check_branch
    %5018 = sbr.rel (0) target = $region29
  $region28: #{tpu_custom_call.1} parent=0 // pred_region
    _
  $region29: #{tpu_custom_call.1} parent=0 // pred_fallthru
    _

</llo_original>
